<compile_context>
chip_gen: v5e
topology: v5e:2x2
jax: 0.10.0
libtpu: 0.0.40
codegen_flags: <defaults>
</compile_context>

<pallas_src>
import jax
import jax.numpy as jnp
from jax import lax
from jax.experimental import pallas as pl
from jax.experimental.pallas import tpu as pltpu

BN_EPS = 1e-5


def _round_up(n, m):
    return (n + m - 1) // m * m


def _bn_relu(h, gamma, beta):
    """Train-mode BatchNorm1d (biased batch variance) + fused affine + ReLU on (B, F)."""
    mean = jnp.mean(h, axis=0, keepdims=True)                        # (1, F)
    var = jnp.mean((h - mean) * (h - mean), axis=0, keepdims=True)   # biased var, (1, F)
    scale = gamma * lax.rsqrt(var + BN_EPS)                          # (1, F)
    shift = beta - mean * scale                                      # (1, F)
    return jnp.maximum(h * scale + shift, 0.0)                       # 2 broadcast ops/elem


def fcnn_kernel(x_ref, w1_ref, gh_ref, bh_ref, go_ref, bo_ref,
                w2_hbm, w3_hbm,
                out_ref,
                w2_vmem, w3_vmem, sem):
    # Kick off w2 / w3 HBM -> VMEM copies; layer-1 compute runs underneath them.
    w2_cp = pltpu.make_async_copy(w2_hbm, w2_vmem, sem.at[0])
    w3_cp = pltpu.make_async_copy(w3_hbm, w3_vmem, sem.at[1])
    w2_cp.start()
    w3_cp.start()

    x = x_ref[...]
    gamma_h = gh_ref[...]
    beta_h = bh_ref[...]

    # input_to_hidden_layer -> batch_norm_hidden -> ReLU -> (dropout = identity)
    # (Linear bias omitted: it is exactly cancelled by the batch-norm mean subtraction.)
    h = jnp.dot(x, w1_ref[...].astype(jnp.float32),
                preferred_element_type=jnp.float32)
    h = _bn_relu(h, gamma_h, beta_h)

    w2_cp.wait()
    w2 = w2_vmem[...].astype(jnp.float32)

    # hidden_to_hidden_layer (1st use) -> batch_norm_hidden -> ReLU -> (dropout)
    h = _bn_relu(jnp.dot(h, w2, preferred_element_type=jnp.float32), gamma_h, beta_h)
    # hidden_to_hidden_layer (2nd use, same weights) -> batch_norm_hidden -> ReLU -> (dropout)
    h = _bn_relu(jnp.dot(h, w2, preferred_element_type=jnp.float32), gamma_h, beta_h)

    w3_cp.wait()
    # hidden_to_output_layer -> batch_norm_output -> ReLU
    o = jnp.dot(h, w3_vmem[...].astype(jnp.float32),
                preferred_element_type=jnp.float32)
    out_ref[...] = _bn_relu(o, go_ref[...], bo_ref[...]).astype(out_ref.dtype)


def fcnn_forward(x, params):
    """x: (B, input_size) float32.  params: logical-size f32 params (see init_params)."""
    B, in_dim = x.shape
    hidden = params["w1"].shape[1]
    out_dim = params["w3"].shape[1]
    Hp = _round_up(hidden, 128)   # 750 -> 768: lane-dense, 128/256-aligned MXU tiles
    Op = _round_up(out_dim, 128)  # 64  -> 128: unmasked output stores

    def pad_to(a, rows, cols):
        return jnp.pad(a, ((0, rows - a.shape[0]), (0, cols - a.shape[1])))

    # Weights stored / transferred as bf16 (kernel is weight-DMA bound); biases dropped
    # (exactly cancelled by train-mode BN).  Padded gamma/beta lanes are 0 so padded
    # features stay exactly 0 through BN + ReLU.
    w1 = pad_to(params["w1"], in_dim, Hp).astype(jnp.bfloat16)
    w2 = pad_to(params["w2"], Hp, Hp).astype(jnp.bfloat16)
    w3 = pad_to(params["w3"], Hp, Op).astype(jnp.bfloat16)
    gh = pad_to(params["gamma_h"], 1, Hp)
    bh = pad_to(params["beta_h"], 1, Hp)
    go = pad_to(params["gamma_o"], 1, Op)
    bo = pad_to(params["beta_o"], 1, Op)

    operands = (x, w1, gh, bh, go, bo, w2, w3)

    def vmem_spec(arr):
        nd = arr.ndim
        return pl.BlockSpec(arr.shape, lambda *_: (0,) * nd)

    out_padded = pl.pallas_call(
        fcnn_kernel,
        out_shape=jax.ShapeDtypeStruct((B, Op), jnp.float32),
        grid_spec=pltpu.PrefetchScalarGridSpec(
            num_scalar_prefetch=0,
            grid=(1,),
            in_specs=[vmem_spec(x), vmem_spec(w1),
                      vmem_spec(gh), vmem_spec(bh),
                      vmem_spec(go), vmem_spec(bo),
                      pl.BlockSpec(memory_space=pl.ANY),   # w2: raw HBM, manual DMA
                      pl.BlockSpec(memory_space=pl.ANY)],  # w3: raw HBM, manual DMA
            out_specs=pl.BlockSpec((B, Op), lambda *_: (0, 0)),
            scratch_shapes=[
                pltpu.VMEM((Hp, Hp), jnp.bfloat16),        # w2 landing buffer
                pltpu.VMEM((Hp, Op), jnp.bfloat16),        # w3 landing buffer
                pltpu.SemaphoreType.DMA((2,)),
            ],
        ),
        compiler_params=pltpu.CompilerParams(
            dimension_semantics=("arbitrary",),
        ),
    )(*operands)
    return out_padded[:, :out_dim]


def init_params(key, input_size, hidden_size, output_size):
    """PyTorch-style Linear init (U[-1/sqrt(fan_in), 1/sqrt(fan_in)]).

    Weights are stored pre-transposed as (in_features, out_features); biases and
    BatchNorm affine params as (1, features) rows.  Biases are kept here (and in the
    reference) to document that dropping them inside the kernel is a no-op under
    train-mode BatchNorm.
    """
    def linear(k, fan_in, fan_out):
        kw, kb = jax.random.split(k)
        bound = 1.0 / jnp.sqrt(fan_in)
        w = jax.random.uniform(kw, (fan_in, fan_out), jnp.float32, -bound, bound)
        b = jax.random.uniform(kb, (1, fan_out), jnp.float32, -bound, bound)
        return w, b

    k1, k2, k3 = jax.random.split(key, 3)
    w1, b1 = linear(k1, input_size, hidden_size)
    w2, b2 = linear(k2, hidden_size, hidden_size)
    w3, b3 = linear(k3, hidden_size, output_size)
    return {
        "w1": w1, "b1": b1,
        "w2": w2, "b2": b2,
        "w3": w3, "b3": b3,
        "gamma_h": jnp.ones((1, hidden_size), jnp.float32),
        "beta_h": jnp.zeros((1, hidden_size), jnp.float32),
        "gamma_o": jnp.ones((1, output_size), jnp.float32),
        "beta_o": jnp.zeros((1, output_size), jnp.float32),
    }


def fcnn_reference(x, p):
    """Pure-JAX reference at the logical (unpadded) sizes, keeping the Linear biases.

    It uses the same bf16-quantized weight values as the kernel wrapper, so the
    tolerance check isolates kernel correctness (padding, bias-drop, fused BN,
    manual DMA overlap) rather than bf16 weight rounding.
    """
    def q(w):
        return w.astype(jnp.bfloat16).astype(jnp.float32)

    def bn_relu(h, g, b):
        m = jnp.mean(h, axis=0, keepdims=True)
        v = jnp.mean((h - m) ** 2, axis=0, keepdims=True)
        return jnp.maximum((h - m) / jnp.sqrt(v + BN_EPS) * g + b, 0.0)

    h = bn_relu(x @ q(p["w1"]) + p["b1"], p["gamma_h"], p["beta_h"])
    h = bn_relu(h @ q(p["w2"]) + p["b2"], p["gamma_h"], p["beta_h"])
    h = bn_relu(h @ q(p["w2"]) + p["b2"], p["gamma_h"], p["beta_h"])
    return bn_relu(h @ q(p["w3"]) + p["b3"], p["gamma_o"], p["beta_o"])


if __name__ == "__main__":
    # Module defaults: input 64*6=384, hidden 750, output 64.  Small batch of 8.
    INPUT_SIZE, HIDDEN_SIZE, OUTPUT_SIZE = 64 * 6, 750, 64
    BATCH = 8

    key = jax.random.PRNGKey(0)
    k_params, k_x = jax.random.split(key)
    params = init_params(k_params, INPUT_SIZE, HIDDEN_SIZE, OUTPUT_SIZE)
    x = jax.random.normal(k_x, (BATCH, INPUT_SIZE), jnp.float32)

    out = jax.block_until_ready(fcnn_forward(x, params))
    ref = jax.block_until_ready(fcnn_reference(x, params))

    assert out.shape == (BATCH, OUTPUT_SIZE), out.shape
    # Both sides use the same bf16-quantized weights; remaining divergence is only fp
    # reassociation / matmul pass ordering, comfortably within 2e-3.
    assert jnp.allclose(out, ref, atol=2e-3, rtol=2e-3), \
        float(jnp.max(jnp.abs(out - ref)))
    print("KERNEL_OK")
</pallas_src>

<mosaic_0001>
module attributes {stable_mosaic.version = 11 : i64} {
  func.func @fcnn_kernel(%arg0: i32, %arg1: memref<8x384xf32, #tpu.memory_space<vmem>>, %arg2: memref<384x768xbf16, #tpu.memory_space<vmem>>, %arg3: memref<1x768xf32, #tpu.memory_space<vmem>>, %arg4: memref<1x768xf32, #tpu.memory_space<vmem>>, %arg5: memref<1x128xf32, #tpu.memory_space<vmem>>, %arg6: memref<1x128xf32, #tpu.memory_space<vmem>>, %arg7: memref<768x768xbf16, #tpu.memory_space<any>>, %arg8: memref<768x128xbf16, #tpu.memory_space<any>>, %arg9: memref<8x128xf32, #tpu.memory_space<vmem>>, %arg10: memref<768x768xbf16, #tpu.memory_space<vmem>>, %arg11: memref<768x128xbf16, #tpu.memory_space<vmem>>, %arg12: memref<2x!tpu.dma_semaphore, #tpu.memory_space<semaphore_mem>>) attributes {dimension_semantics = [#tpu.dimension_semantics<arbitrary>], iteration_bounds = array<i64: 1>, scalar_prefetch = 0 : i64, scratch_operands = 3 : i64, tpu.core_type = #tpu.core_type<tc>, window_params = [{pipeline_mode = #tpu.pipeline_mode<synchronous>, transform_indices = @transform_0, window_bounds = array<i64: 8, 384>}, {pipeline_mode = #tpu.pipeline_mode<synchronous>, transform_indices = @transform_1, window_bounds = array<i64: 384, 768>}, {pipeline_mode = #tpu.pipeline_mode<synchronous>, transform_indices = @transform_2, window_bounds = array<i64: 1, 768>}, {pipeline_mode = #tpu.pipeline_mode<synchronous>, transform_indices = @transform_3, window_bounds = array<i64: 1, 768>}, {pipeline_mode = #tpu.pipeline_mode<synchronous>, transform_indices = @transform_4, window_bounds = array<i64: 1, 128>}, {pipeline_mode = #tpu.pipeline_mode<synchronous>, transform_indices = @transform_5, window_bounds = array<i64: 1, 128>}, {}, {}, {pipeline_mode = #tpu.pipeline_mode<synchronous>, transform_indices = @transform_8, window_bounds = array<i64: 8, 128>}]} {
    %c0_i32 = arith.constant 0 : i32
    %0 = tpu.memref_slice %arg12[%c0_i32] : memref<2x!tpu.dma_semaphore, #tpu.memory_space<semaphore_mem>> -> memref<1x!tpu.dma_semaphore, #tpu.memory_space<semaphore_mem>>
    %1 = tpu.memref_squeeze %0 : memref<1x!tpu.dma_semaphore, #tpu.memory_space<semaphore_mem>> -> memref<!tpu.dma_semaphore, #tpu.memory_space<semaphore_mem>>
    tpu.enqueue_dma source(%arg7 : memref<768x768xbf16, #tpu.memory_space<any>>) target(%arg10 : memref<768x768xbf16, #tpu.memory_space<vmem>>) target_semaphore(%1 : memref<!tpu.dma_semaphore, #tpu.memory_space<semaphore_mem>>)
    %c1_i32 = arith.constant 1 : i32
    %2 = tpu.memref_slice %arg12[%c1_i32] : memref<2x!tpu.dma_semaphore, #tpu.memory_space<semaphore_mem>> -> memref<1x!tpu.dma_semaphore, #tpu.memory_space<semaphore_mem>>
    %3 = tpu.memref_squeeze %2 : memref<1x!tpu.dma_semaphore, #tpu.memory_space<semaphore_mem>> -> memref<!tpu.dma_semaphore, #tpu.memory_space<semaphore_mem>>
    tpu.enqueue_dma source(%arg8 : memref<768x128xbf16, #tpu.memory_space<any>>) target(%arg11 : memref<768x128xbf16, #tpu.memory_space<vmem>>) target_semaphore(%3 : memref<!tpu.dma_semaphore, #tpu.memory_space<semaphore_mem>>)
    %c0 = arith.constant 0 : index
    %c0_0 = arith.constant 0 : index
    %4 = vector.load %arg1[%c0, %c0_0] : memref<8x384xf32, #tpu.memory_space<vmem>>, vector<8x384xf32>
    %c0_1 = arith.constant 0 : index
    %c0_2 = arith.constant 0 : index
    %5 = vector.load %arg3[%c0_1, %c0_2] : memref<1x768xf32, #tpu.memory_space<vmem>>, vector<1x768xf32>
    %c0_3 = arith.constant 0 : index
    %c0_4 = arith.constant 0 : index
    %6 = vector.load %arg4[%c0_3, %c0_4] : memref<1x768xf32, #tpu.memory_space<vmem>>, vector<1x768xf32>
    %c0_5 = arith.constant 0 : index
    %c0_6 = arith.constant 0 : index
    %7 = vector.load %arg2[%c0_5, %c0_6] : memref<384x768xbf16, #tpu.memory_space<vmem>>, vector<384x768xbf16>
    %8 = arith.extf %7 : vector<384x768xbf16> to vector<384x768xf32>
    %cst = arith.constant dense<0.000000e+00> : vector<8x768xf32>
    %9 = tpu.matmul %4, %8, %cst {dimension_numbers = #tpu.dot_dimension_numbers<[1], [0], [0], [1], [0, 0, 1, 1], [], []>} : vector<8x384xf32>, vector<384x768xf32>, vector<8x768xf32> -> vector<8x768xf32>
    %cst_7 = arith.constant dense<0.000000e+00> : vector<768xf32>
    %10 = vector.multi_reduction <add>, %9, %cst_7 [0] : vector<8x768xf32> to vector<768xf32>
    %11 = vector.shape_cast %10 : vector<768xf32> to vector<1x768xf32>
    %cst_8 = arith.constant 8.000000e+00 : f32
    %12 = vector.broadcast %cst_8 : f32 to vector<1x768xf32>
    %13 = arith.divf %11, %12 : vector<1x768xf32>
    %14 = vector.broadcast %13 : vector<1x768xf32> to vector<8x768xf32>
    %15 = arith.subf %9, %14 : vector<8x768xf32>
    %16 = vector.broadcast %13 : vector<1x768xf32> to vector<8x768xf32>
    %17 = arith.subf %9, %16 : vector<8x768xf32>
    %18 = arith.mulf %15, %17 : vector<8x768xf32>
    %cst_9 = arith.constant dense<0.000000e+00> : vector<768xf32>
    %19 = vector.multi_reduction <add>, %18, %cst_9 [0] : vector<8x768xf32> to vector<768xf32>
    %20 = vector.shape_cast %19 : vector<768xf32> to vector<1x768xf32>
    %cst_10 = arith.constant 8.000000e+00 : f32
    %21 = vector.broadcast %cst_10 : f32 to vector<1x768xf32>
    %22 = arith.divf %20, %21 : vector<1x768xf32>
    %cst_11 = arith.constant 9.99999974E-6 : f32
    %23 = vector.broadcast %cst_11 : f32 to vector<1x768xf32>
    %24 = arith.addf %22, %23 : vector<1x768xf32>
    %25 = math.rsqrt %24 : vector<1x768xf32>
    %26 = arith.mulf %5, %25 : vector<1x768xf32>
    %27 = arith.mulf %13, %26 : vector<1x768xf32>
    %28 = arith.subf %6, %27 : vector<1x768xf32>
    %29 = vector.broadcast %26 : vector<1x768xf32> to vector<8x768xf32>
    %30 = arith.mulf %9, %29 : vector<8x768xf32>
    %31 = vector.broadcast %28 : vector<1x768xf32> to vector<8x768xf32>
    %32 = arith.addf %30, %31 : vector<8x768xf32>
    %cst_12 = arith.constant 0.000000e+00 : f32
    %33 = vector.broadcast %cst_12 : f32 to vector<8x768xf32>
    %34 = arith.maximumf %32, %33 : vector<8x768xf32>
    %c0_i32_13 = arith.constant 0 : i32
    %35 = tpu.memref_slice %arg12[%c0_i32_13] : memref<2x!tpu.dma_semaphore, #tpu.memory_space<semaphore_mem>> -> memref<1x!tpu.dma_semaphore, #tpu.memory_space<semaphore_mem>>
    %36 = tpu.memref_squeeze %35 : memref<1x!tpu.dma_semaphore, #tpu.memory_space<semaphore_mem>> -> memref<!tpu.dma_semaphore, #tpu.memory_space<semaphore_mem>>
    tpu.wait_dma2 semaphore(%36 : memref<!tpu.dma_semaphore, #tpu.memory_space<semaphore_mem>>) src(%arg7 : memref<768x768xbf16, #tpu.memory_space<any>>) dst(%arg10 : memref<768x768xbf16, #tpu.memory_space<vmem>>)
    %c0_14 = arith.constant 0 : index
    %c0_15 = arith.constant 0 : index
    %37 = vector.load %arg10[%c0_14, %c0_15] : memref<768x768xbf16, #tpu.memory_space<vmem>>, vector<768x768xbf16>
    %38 = arith.extf %37 : vector<768x768xbf16> to vector<768x768xf32>
    %cst_16 = arith.constant dense<0.000000e+00> : vector<8x768xf32>
    %39 = tpu.matmul %34, %38, %cst_16 {dimension_numbers = #tpu.dot_dimension_numbers<[1], [0], [0], [1], [0, 0, 1, 1], [], []>} : vector<8x768xf32>, vector<768x768xf32>, vector<8x768xf32> -> vector<8x768xf32>
    %cst_17 = arith.constant dense<0.000000e+00> : vector<768xf32>
    %40 = vector.multi_reduction <add>, %39, %cst_17 [0] : vector<8x768xf32> to vector<768xf32>
    %41 = vector.shape_cast %40 : vector<768xf32> to vector<1x768xf32>
    %cst_18 = arith.constant 8.000000e+00 : f32
    %42 = vector.broadcast %cst_18 : f32 to vector<1x768xf32>
    %43 = arith.divf %41, %42 : vector<1x768xf32>
    %44 = vector.broadcast %43 : vector<1x768xf32> to vector<8x768xf32>
    %45 = arith.subf %39, %44 : vector<8x768xf32>
    %46 = vector.broadcast %43 : vector<1x768xf32> to vector<8x768xf32>
    %47 = arith.subf %39, %46 : vector<8x768xf32>
    %48 = arith.mulf %45, %47 : vector<8x768xf32>
    %cst_19 = arith.constant dense<0.000000e+00> : vector<768xf32>
    %49 = vector.multi_reduction <add>, %48, %cst_19 [0] : vector<8x768xf32> to vector<768xf32>
    %50 = vector.shape_cast %49 : vector<768xf32> to vector<1x768xf32>
    %cst_20 = arith.constant 8.000000e+00 : f32
    %51 = vector.broadcast %cst_20 : f32 to vector<1x768xf32>
    %52 = arith.divf %50, %51 : vector<1x768xf32>
    %cst_21 = arith.constant 9.99999974E-6 : f32
    %53 = vector.broadcast %cst_21 : f32 to vector<1x768xf32>
    %54 = arith.addf %52, %53 : vector<1x768xf32>
    %55 = math.rsqrt %54 : vector<1x768xf32>
    %56 = arith.mulf %5, %55 : vector<1x768xf32>
    %57 = arith.mulf %43, %56 : vector<1x768xf32>
    %58 = arith.subf %6, %57 : vector<1x768xf32>
    %59 = vector.broadcast %56 : vector<1x768xf32> to vector<8x768xf32>
    %60 = arith.mulf %39, %59 : vector<8x768xf32>
    %61 = vector.broadcast %58 : vector<1x768xf32> to vector<8x768xf32>
    %62 = arith.addf %60, %61 : vector<8x768xf32>
    %cst_22 = arith.constant 0.000000e+00 : f32
    %63 = vector.broadcast %cst_22 : f32 to vector<8x768xf32>
    %64 = arith.maximumf %62, %63 : vector<8x768xf32>
    %cst_23 = arith.constant dense<0.000000e+00> : vector<8x768xf32>
    %65 = tpu.matmul %64, %38, %cst_23 {dimension_numbers = #tpu.dot_dimension_numbers<[1], [0], [0], [1], [0, 0, 1, 1], [], []>} : vector<8x768xf32>, vector<768x768xf32>, vector<8x768xf32> -> vector<8x768xf32>
    %cst_24 = arith.constant dense<0.000000e+00> : vector<768xf32>
    %66 = vector.multi_reduction <add>, %65, %cst_24 [0] : vector<8x768xf32> to vector<768xf32>
    %67 = vector.shape_cast %66 : vector<768xf32> to vector<1x768xf32>
    %cst_25 = arith.constant 8.000000e+00 : f32
    %68 = vector.broadcast %cst_25 : f32 to vector<1x768xf32>
    %69 = arith.divf %67, %68 : vector<1x768xf32>
    %70 = vector.broadcast %69 : vector<1x768xf32> to vector<8x768xf32>
    %71 = arith.subf %65, %70 : vector<8x768xf32>
    %72 = vector.broadcast %69 : vector<1x768xf32> to vector<8x768xf32>
    %73 = arith.subf %65, %72 : vector<8x768xf32>
    %74 = arith.mulf %71, %73 : vector<8x768xf32>
    %cst_26 = arith.constant dense<0.000000e+00> : vector<768xf32>
    %75 = vector.multi_reduction <add>, %74, %cst_26 [0] : vector<8x768xf32> to vector<768xf32>
    %76 = vector.shape_cast %75 : vector<768xf32> to vector<1x768xf32>
    %cst_27 = arith.constant 8.000000e+00 : f32
    %77 = vector.broadcast %cst_27 : f32 to vector<1x768xf32>
    %78 = arith.divf %76, %77 : vector<1x768xf32>
    %cst_28 = arith.constant 9.99999974E-6 : f32
    %79 = vector.broadcast %cst_28 : f32 to vector<1x768xf32>
    %80 = arith.addf %78, %79 : vector<1x768xf32>
    %81 = math.rsqrt %80 : vector<1x768xf32>
    %82 = arith.mulf %5, %81 : vector<1x768xf32>
    %83 = arith.mulf %69, %82 : vector<1x768xf32>
    %84 = arith.subf %6, %83 : vector<1x768xf32>
    %85 = vector.broadcast %82 : vector<1x768xf32> to vector<8x768xf32>
    %86 = arith.mulf %65, %85 : vector<8x768xf32>
    %87 = vector.broadcast %84 : vector<1x768xf32> to vector<8x768xf32>
    %88 = arith.addf %86, %87 : vector<8x768xf32>
    %cst_29 = arith.constant 0.000000e+00 : f32
    %89 = vector.broadcast %cst_29 : f32 to vector<8x768xf32>
    %90 = arith.maximumf %88, %89 : vector<8x768xf32>
    %c1_i32_30 = arith.constant 1 : i32
    %91 = tpu.memref_slice %arg12[%c1_i32_30] : memref<2x!tpu.dma_semaphore, #tpu.memory_space<semaphore_mem>> -> memref<1x!tpu.dma_semaphore, #tpu.memory_space<semaphore_mem>>
    %92 = tpu.memref_squeeze %91 : memref<1x!tpu.dma_semaphore, #tpu.memory_space<semaphore_mem>> -> memref<!tpu.dma_semaphore, #tpu.memory_space<semaphore_mem>>
    tpu.wait_dma2 semaphore(%92 : memref<!tpu.dma_semaphore, #tpu.memory_space<semaphore_mem>>) src(%arg8 : memref<768x128xbf16, #tpu.memory_space<any>>) dst(%arg11 : memref<768x128xbf16, #tpu.memory_space<vmem>>)
    %c0_31 = arith.constant 0 : index
    %c0_32 = arith.constant 0 : index
    %93 = vector.load %arg11[%c0_31, %c0_32] : memref<768x128xbf16, #tpu.memory_space<vmem>>, vector<768x128xbf16>
    %94 = arith.extf %93 : vector<768x128xbf16> to vector<768x128xf32>
    %cst_33 = arith.constant dense<0.000000e+00> : vector<8x128xf32>
    %95 = tpu.matmul %90, %94, %cst_33 {dimension_numbers = #tpu.dot_dimension_numbers<[1], [0], [0], [1], [0, 0, 1, 1], [], []>} : vector<8x768xf32>, vector<768x128xf32>, vector<8x128xf32> -> vector<8x128xf32>
    %c0_34 = arith.constant 0 : index
    %c0_35 = arith.constant 0 : index
    %96 = vector.load %arg5[%c0_34, %c0_35] : memref<1x128xf32, #tpu.memory_space<vmem>>, vector<1x128xf32>
    %c0_36 = arith.constant 0 : index
    %c0_37 = arith.constant 0 : index
    %97 = vector.load %arg6[%c0_36, %c0_37] : memref<1x128xf32, #tpu.memory_space<vmem>>, vector<1x128xf32>
    %cst_38 = arith.constant dense<0.000000e+00> : vector<128xf32>
    %98 = vector.multi_reduction <add>, %95, %cst_38 [0] : vector<8x128xf32> to vector<128xf32>
    %99 = vector.shape_cast %98 : vector<128xf32> to vector<1x128xf32>
    %cst_39 = arith.constant 8.000000e+00 : f32
    %100 = vector.broadcast %cst_39 : f32 to vector<1x128xf32>
    %101 = arith.divf %99, %100 : vector<1x128xf32>
    %102 = vector.broadcast %101 : vector<1x128xf32> to vector<8x128xf32>
    %103 = arith.subf %95, %102 : vector<8x128xf32>
    %104 = vector.broadcast %101 : vector<1x128xf32> to vector<8x128xf32>
    %105 = arith.subf %95, %104 : vector<8x128xf32>
    %106 = arith.mulf %103, %105 : vector<8x128xf32>
    %cst_40 = arith.constant dense<0.000000e+00> : vector<128xf32>
    %107 = vector.multi_reduction <add>, %106, %cst_40 [0] : vector<8x128xf32> to vector<128xf32>
    %108 = vector.shape_cast %107 : vector<128xf32> to vector<1x128xf32>
    %cst_41 = arith.constant 8.000000e+00 : f32
    %109 = vector.broadcast %cst_41 : f32 to vector<1x128xf32>
    %110 = arith.divf %108, %109 : vector<1x128xf32>
    %cst_42 = arith.constant 9.99999974E-6 : f32
    %111 = vector.broadcast %cst_42 : f32 to vector<1x128xf32>
    %112 = arith.addf %110, %111 : vector<1x128xf32>
    %113 = math.rsqrt %112 : vector<1x128xf32>
    %114 = arith.mulf %96, %113 : vector<1x128xf32>
    %115 = arith.mulf %101, %114 : vector<1x128xf32>
    %116 = arith.subf %97, %115 : vector<1x128xf32>
    %117 = vector.broadcast %114 : vector<1x128xf32> to vector<8x128xf32>
    %118 = arith.mulf %95, %117 : vector<8x128xf32>
    %119 = vector.broadcast %116 : vector<1x128xf32> to vector<8x128xf32>
    %120 = arith.addf %118, %119 : vector<8x128xf32>
    %cst_43 = arith.constant 0.000000e+00 : f32
    %121 = vector.broadcast %cst_43 : f32 to vector<8x128xf32>
    %122 = arith.maximumf %120, %121 : vector<8x128xf32>
    %c0_44 = arith.constant 0 : index
    %c0_45 = arith.constant 0 : index
    %123 = vector.load %arg9[%c0_44, %c0_45] : memref<8x128xf32, #tpu.memory_space<vmem>>, vector<8x128xf32>
    tpu.vector_store %arg9[%c0_44, %c0_45], %122 {strides = array<i32>} : memref<8x128xf32, #tpu.memory_space<vmem>>, vector<8x128xf32>,
    return
  }
  func.func @transform_0(%arg0: i32) -> (i32, i32) {
    %c0_i32 = arith.constant 0 : i32
    %c0_i32_0 = arith.constant 0 : i32
    %c0_i32_1 = arith.constant 0 : i32
    return %c0_i32, %c0_i32_0 : i32, i32
  }
  func.func @transform_1(%arg0: i32) -> (i32, i32) {
    %c0_i32 = arith.constant 0 : i32
    %c0_i32_0 = arith.constant 0 : i32
    %c0_i32_1 = arith.constant 0 : i32
    return %c0_i32, %c0_i32_0 : i32, i32
  }
  func.func @transform_2(%arg0: i32) -> (i32, i32) {
    %c0_i32 = arith.constant 0 : i32
    %c0_i32_0 = arith.constant 0 : i32
    %c0_i32_1 = arith.constant 0 : i32
    return %c0_i32, %c0_i32_0 : i32, i32
  }
  func.func @transform_3(%arg0: i32) -> (i32, i32) {
    %c0_i32 = arith.constant 0 : i32
    %c0_i32_0 = arith.constant 0 : i32
    %c0_i32_1 = arith.constant 0 : i32
    return %c0_i32, %c0_i32_0 : i32, i32
  }
  func.func @transform_4(%arg0: i32) -> (i32, i32) {
    %c0_i32 = arith.constant 0 : i32
    %c0_i32_0 = arith.constant 0 : i32
    %c0_i32_1 = arith.constant 0 : i32
    return %c0_i32, %c0_i32_0 : i32, i32
  }
  func.func @transform_5(%arg0: i32) -> (i32, i32) {
    %c0_i32 = arith.constant 0 : i32
    %c0_i32_0 = arith.constant 0 : i32
    %c0_i32_1 = arith.constant 0 : i32
    return %c0_i32, %c0_i32_0 : i32, i32
  }
  func.func @transform_8(%arg0: i32) -> (i32, i32) {
    %c0_i32 = arith.constant 0 : i32
    %c0_i32_0 = arith.constant 0 : i32
    %c0_i32_1 = arith.constant 0 : i32
    return %c0_i32, %c0_i32_0 : i32, i32
  }
}

</mosaic_0001>

<llo_original>
// kernel: tpu_custom_call.1
$region0: #{tpu_custom_call.1}
  #allocation0 [shape = 'u32[]', space=smem, size = 0x4, offset = 0x4, fixed_abs, tag = 'smem constant byte address 0x4 - core index']
  #allocation1 [shape = 'u32[72,128]{1,0:T(1,128)}', space=vmem, size = 0x9000, scoped, tag = 'internal scratch']
  #allocation2 [shape = 'bf16[768,768]{1,0:T(8,128)(2,1)}', space=vmem, size = 0x120000, scoped, tag = 'scratch operand']
  #allocation3 [shape = 'bf16[768,128]{1,0:T(8,128)(2,1)}', space=vmem, size = 0x30000, scoped, tag = 'scratch operand']
  #allocation4 [shape = 's32[2]{0}', space=sflag, size = 0x8, scoped, tag = 'scratch operand']
  #allocation17 [shape = 's32[]', space=sflag, size = 0x4, offset = 0, fixed_abs, tag = 'sflag constant byte address 0x0 - dummy sync flag']
  #allocation18 [shape = 's32[]', space=sflag, size = 0x4, offset = 0, fixed_abs, tag = 'sflag constant byte address 0x0 - dummy sync flag']
  #allocation19 [shape = 'u32[]', space=smem, size = 0x4, offset = 0x44, fixed_abs, tag = 'smem constant byte address 0x44 - assertion arg 0']
  #allocation20 [shape = 'u32[]', space=smem, size = 0x4, offset = 0x48, fixed_abs, tag = 'smem constant byte address 0x48 - assertion arg 1']
  #allocation21 [shape = 's32[]', space=sflag, size = 0x4, offset = 0, fixed_abs, tag = 'sflag constant byte address 0x0 - dummy sync flag']
  #allocation22 [shape = 's32[]', space=sflag, size = 0x4, offset = 0, fixed_abs, tag = 'sflag constant byte address 0x0 - dummy sync flag']
  %s0 = inlined_call_operand.hbm [shape: f32[8,384], index: 0, kind: input, shape index: {}]
  %s1 = inlined_call_operand.hbm [shape: bf16[384,768], index: 1, kind: input, shape index: {}]
  %s2 = inlined_call_operand.hbm [shape: f32[1,768], index: 2, kind: input, shape index: {}]
  %s3 = inlined_call_operand.hbm [shape: f32[1,768], index: 3, kind: input, shape index: {}]
  %s4 = inlined_call_operand.hbm [shape: f32[1,128], index: 4, kind: input, shape index: {}]
  %s5 = inlined_call_operand.hbm [shape: f32[1,128], index: 5, kind: input, shape index: {}]
  %s6 = inlined_call_operand.hbm [shape: bf16[768,768], index: 6, kind: input, shape index: {}]
  %s7 = inlined_call_operand.hbm [shape: bf16[768,128], index: 7, kind: input, shape index: {}]
  %s8 = inlined_call_operand.hbm [shape: f32[8,128], index: 8, kind: output, shape index: {}]
  %s9 = sld [smem:[#allocation0]]
  $region66: #{tpu_custom_call.1} parent=0
    _
  %s11 = ssub.s32 1, %s9
  %s12 = scalar_select 0, %s11, %s9
  $region1: #{tpu_custom_call.1} parent=0
    #allocation5 [shape = 'u8[12288]{0}', space=vmem, size = 0x3000, scoped, tag = 'input window, operand 0, single buffered']
    #allocation6 [shape = 's32[1]{0}', space=sflag, size = 0x4, scoped, tag = 'scoped memory for tpu_custom_call.1']
    #allocation7 [shape = 's32[1]{0}', space=sflag, size = 0x4, scoped, tag = 'scoped memory for tpu_custom_call.1']
    #allocation8 [shape = 'u8[589824]{0}', space=vmem, size = 0x90000, scoped, tag = 'input window, operand 1, single buffered']
    #allocation9 [shape = 's32[1]{0}', space=sflag, size = 0x4, scoped, tag = 'scoped memory for tpu_custom_call.1']
    #allocation10 [shape = 'u8[3072]{0}', space=vmem, size = 0xc00, scoped, tag = 'input window, operand 2, single buffered']
    #allocation11 [shape = 'u8[3072]{0}', space=vmem, size = 0xc00, scoped, tag = 'input window, operand 3, single buffered']
    #allocation12 [shape = 's32[1]{0}', space=sflag, size = 0x4, scoped, tag = 'scoped memory for tpu_custom_call.1']
    #allocation13 [shape = 'u8[512]{0}', space=vmem, size = 0x400, scoped, tag = 'input window, operand 4, single buffered']
    #allocation14 [shape = 'u8[512]{0}', space=vmem, size = 0x400, scoped, tag = 'input window, operand 5, single buffered']
    #allocation15 [shape = 's32[1]{0}', space=sflag, size = 0x4, scoped, tag = 'scoped memory for tpu_custom_call.1']
    #allocation16 [shape = 'u8[4096]{0}', space=vmem, size = 0x1000, scoped, tag = 'output window, operand 0, single buffered']
    %13 = vsyncpa [#allocation6], 0
    %14 = vsyncpa [#allocation9], 0
    %15 = vsyncpa [#allocation12], 0
    %16 = vsyncpa [#allocation15], 0
    %17 = vsyncpa [#allocation7], 0
    // Predicated region
    $region2: #{tpu_custom_call.1} parent=1 // pred_check
      _
    $region3: #{tpu_custom_call.1} parent=1 // pred_check_branch
      %19 = sbr.rel (0) target = $region5
    $region4: #{tpu_custom_call.1} parent=1 // pred_region
      %21 = vsyncadd [#allocation6], 0
      %s23 = sshll.u32 %s0, 4
      %s24 = int_to_ptr.hbm [resolvable:$true] %s23
      %s25 = sshll.u32 [#allocation5], 4
      %s26 = int_to_ptr.vmem [resolvable:$true] %s25
      %28 = dma.hbm_to_vmem [thread:$0]  %s24, 384, %s26, [#allocation6]
    $region5: #{tpu_custom_call.1} parent=1 // pred_fallthru
      _
    // Predicated region
    $region6: #{tpu_custom_call.1} parent=1 // pred_check
      _
    $region7: #{tpu_custom_call.1} parent=1 // pred_check_branch
      %30 = sbr.rel (0) target = $region9
    $region8: #{tpu_custom_call.1} parent=1 // pred_region
      %32 = vsyncadd [#allocation9], 0
      %s33 = sshll.u32 %s1, 4
      %s34 = int_to_ptr.hbm [resolvable:$true] %s33
      %s35 = sshll.u32 [#allocation8], 4
      %s36 = int_to_ptr.vmem [resolvable:$true] %s35
      %41 = dma.hbm_to_vmem [thread:$0]  %s34, 18432, %s36, [#allocation9], 384, 384, 24
    $region9: #{tpu_custom_call.1} parent=1 // pred_fallthru
      _
    // Predicated region
    $region10: #{tpu_custom_call.1} parent=1 // pred_check
      _
    $region11: #{tpu_custom_call.1} parent=1 // pred_check_branch
      %43 = sbr.rel (0) target = $region13
    $region12: #{tpu_custom_call.1} parent=1 // pred_region
      %45 = vsyncadd [#allocation9], 0
      %s47 = sshll.u32 %s2, 4
      %s48 = int_to_ptr.hbm [resolvable:$true] %s47
      %s49 = sshll.u32 [#allocation10], 4
      %s50 = int_to_ptr.vmem [resolvable:$true] %s49
      %52 = dma.hbm_to_vmem [thread:$0]  %s48, 96, %s50, [#allocation9]
    $region13: #{tpu_custom_call.1} parent=1 // pred_fallthru
      _
    // Predicated region
    $region14: #{tpu_custom_call.1} parent=1 // pred_check
      _
    $region15: #{tpu_custom_call.1} parent=1 // pred_check_branch
      %54 = sbr.rel (0) target = $region17
    $region16: #{tpu_custom_call.1} parent=1 // pred_region
      %56 = vsyncadd [#allocation12], 0
      %s58 = sshll.u32 %s3, 4
      %s59 = int_to_ptr.hbm [resolvable:$true] %s58
      %s60 = sshll.u32 [#allocation11], 4
      %s61 = int_to_ptr.vmem [resolvable:$true] %s60
      %63 = dma.hbm_to_vmem [thread:$0]  %s59, 96, %s61, [#allocation12]
    $region17: #{tpu_custom_call.1} parent=1 // pred_fallthru
      _
    // Predicated region
    $region18: #{tpu_custom_call.1} parent=1 // pred_check
      _
    $region19: #{tpu_custom_call.1} parent=1 // pred_check_branch
      %65 = sbr.rel (0) target = $region21
    $region20: #{tpu_custom_call.1} parent=1 // pred_region
      %67 = vsyncadd [#allocation12], 0
      %s69 = sshll.u32 %s4, 4
      %s70 = int_to_ptr.hbm [resolvable:$true] %s69
      %s71 = sshll.u32 [#allocation13], 4
      %s72 = int_to_ptr.vmem [resolvable:$true] %s71
      %74 = dma.hbm_to_vmem [thread:$0]  %s70, 16, %s72, [#allocation12]
    $region21: #{tpu_custom_call.1} parent=1 // pred_fallthru
      _
    // Predicated region
    $region22: #{tpu_custom_call.1} parent=1 // pred_check
      _
    $region23: #{tpu_custom_call.1} parent=1 // pred_check_branch
      %76 = sbr.rel (0) target = $region25
    $region24: #{tpu_custom_call.1} parent=1 // pred_region
      %78 = vsyncadd [#allocation15], 0
      %s80 = sshll.u32 %s5, 4
      %s81 = int_to_ptr.hbm [resolvable:$true] %s80
      %s82 = sshll.u32 [#allocation14], 4
      %s83 = int_to_ptr.vmem [resolvable:$true] %s82
      %85 = dma.hbm_to_vmem [thread:$0]  %s81, 16, %s83, [#allocation15]
    $region25: #{tpu_custom_call.1} parent=1 // pred_fallthru
      _
    // Predicated region
    $region26: #{tpu_custom_call.1} parent=1 // pred_check
      _
    $region27: #{tpu_custom_call.1} parent=1 // pred_check_branch
      %87 = sbr.rel (0) target = $region29
    $region28: #{tpu_custom_call.1} parent=1 // pred_region
      %89 = dma.done [#allocation6], 384
    $region29: #{tpu_custom_call.1} parent=1 // pred_fallthru
      _
    // Predicated region
    $region30: #{tpu_custom_call.1} parent=1 // pred_check
      _
    $region31: #{tpu_custom_call.1} parent=1 // pred_check_branch
      %91 = sbr.rel (0) target = $region33
    $region32: #{tpu_custom_call.1} parent=1 // pred_region
      %93 = dma.done [#allocation9], 18432
    $region33: #{tpu_custom_call.1} parent=1 // pred_fallthru
      _
    // Predicated region
    $region34: #{tpu_custom_call.1} parent=1 // pred_check
      _
    $region35: #{tpu_custom_call.1} parent=1 // pred_check_branch
      %95 = sbr.rel (0) target = $region37
    $region36: #{tpu_custom_call.1} parent=1 // pred_region
      %97 = dma.done [#allocation9], 96
    $region37: #{tpu_custom_call.1} parent=1 // pred_fallthru
      _
    // Predicated region
    $region38: #{tpu_custom_call.1} parent=1 // pred_check
      _
    $region39: #{tpu_custom_call.1} parent=1 // pred_check_branch
      %99 = sbr.rel (0) target = $region41
    $region40: #{tpu_custom_call.1} parent=1 // pred_region
      %101 = dma.done [#allocation12], 96
    $region41: #{tpu_custom_call.1} parent=1 // pred_fallthru
      _
    // Predicated region
    $region42: #{tpu_custom_call.1} parent=1 // pred_check
      _
    $region43: #{tpu_custom_call.1} parent=1 // pred_check_branch
      %103 = sbr.rel (0) target = $region45
    $region44: #{tpu_custom_call.1} parent=1 // pred_region
      %105 = dma.done [#allocation12], 16
    $region45: #{tpu_custom_call.1} parent=1 // pred_fallthru
      _
    // Predicated region
    $region46: #{tpu_custom_call.1} parent=1 // pred_check
      _
    $region47: #{tpu_custom_call.1} parent=1 // pred_check_branch
      %107 = sbr.rel (0) target = $region49
    $region48: #{tpu_custom_call.1} parent=1 // pred_region
      %109 = dma.done [#allocation15], 16
    $region49: #{tpu_custom_call.1} parent=1 // pred_fallthru
      _
    // Predicated region
    $region50: #{tpu_custom_call.1} parent=1 // pred_check
      _
    $region51: #{tpu_custom_call.1} parent=1 // pred_check_branch
      %111 = sbr.rel target = $region53
    $region52: #{tpu_custom_call.1} parent=1 // pred_region
      %112 = sst [smem:[#allocation19]] [#allocation18]
      %113 = sst [smem:[#allocation20]] [#allocation17]
    $region53: #{tpu_custom_call.1} parent=1 // pred_fallthru
      _
    %115 = shalt.err (0)
    %s117 = sshll.u32 %s6, 4
    %s118 = int_to_ptr.hbm [resolvable:$true] %s117
    %s119 = sshll.u32 [#allocation2], 4
    %s120 = int_to_ptr.vmem [resolvable:$true] %s119
    %122 = dma.hbm_to_vmem [thread:$0]  %s118, 36864, %s120, [#allocation4]
    %s123 = scalar_lea.sflag [#allocation4], 1
    // Predicated region
    $region54: #{tpu_custom_call.1} parent=1 // pred_check
      _
    $region55: #{tpu_custom_call.1} parent=1 // pred_check_branch
      %125 = sbr.rel target = $region57
    $region56: #{tpu_custom_call.1} parent=1 // pred_region
      %126 = sst [smem:[#allocation19]] [#allocation22]
      %127 = sst [smem:[#allocation20]] [#allocation21]
    $region57: #{tpu_custom_call.1} parent=1 // pred_fallthru
      _
    %129 = shalt.err (0)
    %s131 = sshll.u32 %s7, 4
    %s132 = int_to_ptr.hbm [resolvable:$true] %s131
    %s133 = sshll.u32 [#allocation3], 4
    %s134 = int_to_ptr.vmem [resolvable:$true] %s133
    %136 = dma.hbm_to_vmem [thread:$0]  %s132, 6144, %s134, %s123
    %v137 = vld [vmem:[#allocation5] sm:$0xff]
    %v138 = vld [vmem:[#allocation5 + $0x8] sm:$0xff]
    %v139 = vld [vmem:[#allocation5 + $0x10] sm:$0xff]
    %v140 = vld [vmem:[#allocation10] sm:$0x3f]
    %v141 = vld [vmem:[#allocation11] sm:$0x3f]
    %v142 = vld [vmem:[#allocation8] sm:$0xff]
    %v143 = vld [vmem:[#allocation8 + $0x8] sm:$0xff]
    %v144 = vld [vmem:[#allocation8 + $0x10] sm:$0xff]
    %v145 = vld [vmem:[#allocation8 + $0x18] sm:$0xff]
    %v146 = vld [vmem:[#allocation8 + $0x20] sm:$0xff]
    %v147 = vld [vmem:[#allocation8 + $0x28] sm:$0xff]
    %v148 = vld [vmem:[#allocation8 + $0x30] sm:$0xff]
    %v149 = vld [vmem:[#allocation8 + $0x38] sm:$0xff]
    %v150 = vld [vmem:[#allocation8 + $0x40] sm:$0xff]
    %v151 = vld [vmem:[#allocation8 + $0x48] sm:$0xff]
    %v152 = vld [vmem:[#allocation8 + $0x50] sm:$0xff]
    %v153 = vld [vmem:[#allocation8 + $0x58] sm:$0xff]
    %v154 = vld [vmem:[#allocation8 + $0x60] sm:$0xff]
    %v155 = vld [vmem:[#allocation8 + $0x68] sm:$0xff]
    %v156 = vld [vmem:[#allocation8 + $0x70] sm:$0xff]
    %v157 = vld [vmem:[#allocation8 + $0x78] sm:$0xff]
    %v158 = vld [vmem:[#allocation8 + $0x80] sm:$0xff]
    %v159 = vld [vmem:[#allocation8 + $0x88] sm:$0xff]
    %v160 = vld [vmem:[#allocation8 + $0x90] sm:$0xff]
    %v161 = vld [vmem:[#allocation8 + $0x98] sm:$0xff]
    %v162 = vld [vmem:[#allocation8 + $0xa0] sm:$0xff]
    %v163 = vld [vmem:[#allocation8 + $0xa8] sm:$0xff]
    %v164 = vld [vmem:[#allocation8 + $0xb0] sm:$0xff]
    %v165 = vld [vmem:[#allocation8 + $0xb8] sm:$0xff]
    %v166 = vld [vmem:[#allocation8 + $0xc0] sm:$0xff]
    %v167 = vld [vmem:[#allocation8 + $0xc8] sm:$0xff]
    %v168 = vld [vmem:[#allocation8 + $0xd0] sm:$0xff]
    %v169 = vld [vmem:[#allocation8 + $0xd8] sm:$0xff]
    %v170 = vld [vmem:[#allocation8 + $0xe0] sm:$0xff]
    %v171 = vld [vmem:[#allocation8 + $0xe8] sm:$0xff]
    %v172 = vld [vmem:[#allocation8 + $0xf0] sm:$0xff]
    %v173 = vld [vmem:[#allocation8 + $0xf8] sm:$0xff]
    %v174 = vld [vmem:[#allocation8 + $0x100] sm:$0xff]
    %v175 = vld [vmem:[#allocation8 + $0x108] sm:$0xff]
    %v176 = vld [vmem:[#allocation8 + $0x110] sm:$0xff]
    %v177 = vld [vmem:[#allocation8 + $0x118] sm:$0xff]
    %v178 = vld [vmem:[#allocation8 + $0x120] sm:$0xff]
    %v179 = vld [vmem:[#allocation8 + $0x128] sm:$0xff]
    %v180 = vld [vmem:[#allocation8 + $0x130] sm:$0xff]
    %v181 = vld [vmem:[#allocation8 + $0x138] sm:$0xff]
    %v182 = vld [vmem:[#allocation8 + $0x140] sm:$0xff]
    %v183 = vld [vmem:[#allocation8 + $0x148] sm:$0xff]
    %v184 = vld [vmem:[#allocation8 + $0x150] sm:$0xff]
    %v185 = vld [vmem:[#allocation8 + $0x158] sm:$0xff]
    %v186 = vld [vmem:[#allocation8 + $0x160] sm:$0xff]
    %v187 = vld [vmem:[#allocation8 + $0x168] sm:$0xff]
    %v188 = vld [vmem:[#allocation8 + $0x170] sm:$0xff]
    %v189 = vld [vmem:[#allocation8 + $0x178] sm:$0xff]
    %v190 = vld [vmem:[#allocation8 + $0x180] sm:$0xff]
    %v191 = vld [vmem:[#allocation8 + $0x188] sm:$0xff]
    %v192 = vld [vmem:[#allocation8 + $0x190] sm:$0xff]
    %v193 = vld [vmem:[#allocation8 + $0x198] sm:$0xff]
    %v194 = vld [vmem:[#allocation8 + $0x1a0] sm:$0xff]
    %v195 = vld [vmem:[#allocation8 + $0x1a8] sm:$0xff]
    %v196 = vld [vmem:[#allocation8 + $0x1b0] sm:$0xff]
    %v197 = vld [vmem:[#allocation8 + $0x1b8] sm:$0xff]
    %v198 = vld [vmem:[#allocation8 + $0x1c0] sm:$0xff]
    %v199 = vld [vmem:[#allocation8 + $0x1c8] sm:$0xff]
    %v200 = vld [vmem:[#allocation8 + $0x1d0] sm:$0xff]
    %v201 = vld [vmem:[#allocation8 + $0x1d8] sm:$0xff]
    %v202 = vld [vmem:[#allocation8 + $0x1e0] sm:$0xff]
    %v203 = vld [vmem:[#allocation8 + $0x1e8] sm:$0xff]
    %v204 = vld [vmem:[#allocation8 + $0x1f0] sm:$0xff]
    %v205 = vld [vmem:[#allocation8 + $0x1f8] sm:$0xff]
    %v206 = vld [vmem:[#allocation8 + $0x200] sm:$0xff]
    %v207 = vld [vmem:[#allocation8 + $0x208] sm:$0xff]
    %v208 = vld [vmem:[#allocation8 + $0x210] sm:$0xff]
    %v209 = vld [vmem:[#allocation8 + $0x218] sm:$0xff]
    %v210 = vld [vmem:[#allocation8 + $0x220] sm:$0xff]
    %v211 = vld [vmem:[#allocation8 + $0x228] sm:$0xff]
    %v212 = vld [vmem:[#allocation8 + $0x230] sm:$0xff]
    %v213 = vld [vmem:[#allocation8 + $0x238] sm:$0xff]
    %v214 = vld [vmem:[#allocation8 + $0x240] sm:$0xff]
    %v215 = vld [vmem:[#allocation8 + $0x248] sm:$0xff]
    %v216 = vld [vmem:[#allocation8 + $0x250] sm:$0xff]
    %v217 = vld [vmem:[#allocation8 + $0x258] sm:$0xff]
    %v218 = vld [vmem:[#allocation8 + $0x260] sm:$0xff]
    %v219 = vld [vmem:[#allocation8 + $0x268] sm:$0xff]
    %v220 = vld [vmem:[#allocation8 + $0x270] sm:$0xff]
    %v221 = vld [vmem:[#allocation8 + $0x278] sm:$0xff]
    %v222 = vld [vmem:[#allocation8 + $0x280] sm:$0xff]
    %v223 = vld [vmem:[#allocation8 + $0x288] sm:$0xff]
    %v224 = vld [vmem:[#allocation8 + $0x290] sm:$0xff]
    %v225 = vld [vmem:[#allocation8 + $0x298] sm:$0xff]
    %v226 = vld [vmem:[#allocation8 + $0x2a0] sm:$0xff]
    %v227 = vld [vmem:[#allocation8 + $0x2a8] sm:$0xff]
    %v228 = vld [vmem:[#allocation8 + $0x2b0] sm:$0xff]
    %v229 = vld [vmem:[#allocation8 + $0x2b8] sm:$0xff]
    %v230 = vld [vmem:[#allocation8 + $0x2c0] sm:$0xff]
    %v231 = vld [vmem:[#allocation8 + $0x2c8] sm:$0xff]
    %v232 = vld [vmem:[#allocation8 + $0x2d0] sm:$0xff]
    %v233 = vld [vmem:[#allocation8 + $0x2d8] sm:$0xff]
    %v234 = vld [vmem:[#allocation8 + $0x2e0] sm:$0xff]
    %v235 = vld [vmem:[#allocation8 + $0x2e8] sm:$0xff]
    %v236 = vld [vmem:[#allocation8 + $0x2f0] sm:$0xff]
    %v237 = vld [vmem:[#allocation8 + $0x2f8] sm:$0xff]
    %v238 = vld [vmem:[#allocation8 + $0x300] sm:$0xff]
    %v239 = vld [vmem:[#allocation8 + $0x308] sm:$0xff]
    %v240 = vld [vmem:[#allocation8 + $0x310] sm:$0xff]
    %v241 = vld [vmem:[#allocation8 + $0x318] sm:$0xff]
    %v242 = vld [vmem:[#allocation8 + $0x320] sm:$0xff]
    %v243 = vld [vmem:[#allocation8 + $0x328] sm:$0xff]
    %v244 = vld [vmem:[#allocation8 + $0x330] sm:$0xff]
    %v245 = vld [vmem:[#allocation8 + $0x338] sm:$0xff]
    %v246 = vld [vmem:[#allocation8 + $0x340] sm:$0xff]
    %v247 = vld [vmem:[#allocation8 + $0x348] sm:$0xff]
    %v248 = vld [vmem:[#allocation8 + $0x350] sm:$0xff]
    %v249 = vld [vmem:[#allocation8 + $0x358] sm:$0xff]
    %v250 = vld [vmem:[#allocation8 + $0x360] sm:$0xff]
    %v251 = vld [vmem:[#allocation8 + $0x368] sm:$0xff]
    %v252 = vld [vmem:[#allocation8 + $0x370] sm:$0xff]
    %v253 = vld [vmem:[#allocation8 + $0x378] sm:$0xff]
    %v254 = vld [vmem:[#allocation8 + $0x380] sm:$0xff]
    %v255 = vld [vmem:[#allocation8 + $0x388] sm:$0xff]
    %v256 = vld [vmem:[#allocation8 + $0x390] sm:$0xff]
    %v257 = vld [vmem:[#allocation8 + $0x398] sm:$0xff]
    %v258 = vld [vmem:[#allocation8 + $0x3a0] sm:$0xff]
    %v259 = vld [vmem:[#allocation8 + $0x3a8] sm:$0xff]
    %v260 = vld [vmem:[#allocation8 + $0x3b0] sm:$0xff]
    %v261 = vld [vmem:[#allocation8 + $0x3b8] sm:$0xff]
    %v262 = vld [vmem:[#allocation8 + $0x3c0] sm:$0xff]
    %v263 = vld [vmem:[#allocation8 + $0x3c8] sm:$0xff]
    %v264 = vld [vmem:[#allocation8 + $0x3d0] sm:$0xff]
    %v265 = vld [vmem:[#allocation8 + $0x3d8] sm:$0xff]
    %v266 = vld [vmem:[#allocation8 + $0x3e0] sm:$0xff]
    %v267 = vld [vmem:[#allocation8 + $0x3e8] sm:$0xff]
    %v268 = vld [vmem:[#allocation8 + $0x3f0] sm:$0xff]
    %v269 = vld [vmem:[#allocation8 + $0x3f8] sm:$0xff]
    %v270 = vld [vmem:[#allocation8 + $0x400] sm:$0xff]
    %v271 = vld [vmem:[#allocation8 + $0x408] sm:$0xff]
    %v272 = vld [vmem:[#allocation8 + $0x410] sm:$0xff]
    %v273 = vld [vmem:[#allocation8 + $0x418] sm:$0xff]
    %v274 = vld [vmem:[#allocation8 + $0x420] sm:$0xff]
    %v275 = vld [vmem:[#allocation8 + $0x428] sm:$0xff]
    %v276 = vld [vmem:[#allocation8 + $0x430] sm:$0xff]
    %v277 = vld [vmem:[#allocation8 + $0x438] sm:$0xff]
    %v278 = vld [vmem:[#allocation8 + $0x440] sm:$0xff]
    %v279 = vld [vmem:[#allocation8 + $0x448] sm:$0xff]
    %v280 = vld [vmem:[#allocation8 + $0x450] sm:$0xff]
    %v281 = vld [vmem:[#allocation8 + $0x458] sm:$0xff]
    %v282 = vld [vmem:[#allocation8 + $0x460] sm:$0xff]
    %v283 = vld [vmem:[#allocation8 + $0x468] sm:$0xff]
    %v284 = vld [vmem:[#allocation8 + $0x470] sm:$0xff]
    %v285 = vld [vmem:[#allocation8 + $0x478] sm:$0xff]
    %v286 = vunpack.c.l.bf16 %v142
    %v287 = vunpack.c.h.bf16 %v142
    %v288 = vunpack.c.l.bf16 %v143
    %v289 = vunpack.c.h.bf16 %v143
    %v290 = vunpack.c.l.bf16 %v144
    %v291 = vunpack.c.h.bf16 %v144
    %v292 = vunpack.c.l.bf16 %v145
    %v293 = vunpack.c.h.bf16 %v145
    %v294 = vunpack.c.l.bf16 %v146
    %v295 = vunpack.c.h.bf16 %v146
    %v296 = vunpack.c.l.bf16 %v147
    %v297 = vunpack.c.h.bf16 %v147
    %v298 = vunpack.c.l.bf16 %v148
    %v299 = vunpack.c.h.bf16 %v148
    %v300 = vunpack.c.l.bf16 %v149
    %v301 = vunpack.c.h.bf16 %v149
    %v302 = vunpack.c.l.bf16 %v150
    %v303 = vunpack.c.h.bf16 %v150
    %v304 = vunpack.c.l.bf16 %v151
    %v305 = vunpack.c.h.bf16 %v151
    %v306 = vunpack.c.l.bf16 %v152
    %v307 = vunpack.c.h.bf16 %v152
    %v308 = vunpack.c.l.bf16 %v153
    %v309 = vunpack.c.h.bf16 %v153
    %v310 = vunpack.c.l.bf16 %v154
    %v311 = vunpack.c.h.bf16 %v154
    %v312 = vunpack.c.l.bf16 %v155
    %v313 = vunpack.c.h.bf16 %v155
    %v314 = vunpack.c.l.bf16 %v156
    %v315 = vunpack.c.h.bf16 %v156
    %v316 = vunpack.c.l.bf16 %v157
    %v317 = vunpack.c.h.bf16 %v157
    %v318 = vunpack.c.l.bf16 %v158
    %v319 = vunpack.c.h.bf16 %v158
    %v320 = vunpack.c.l.bf16 %v159
    %v321 = vunpack.c.h.bf16 %v159
    %v322 = vunpack.c.l.bf16 %v160
    %v323 = vunpack.c.h.bf16 %v160
    %v324 = vunpack.c.l.bf16 %v161
    %v325 = vunpack.c.h.bf16 %v161
    %v326 = vunpack.c.l.bf16 %v162
    %v327 = vunpack.c.h.bf16 %v162
    %v328 = vunpack.c.l.bf16 %v163
    %v329 = vunpack.c.h.bf16 %v163
    %v330 = vunpack.c.l.bf16 %v164
    %v331 = vunpack.c.h.bf16 %v164
    %v332 = vunpack.c.l.bf16 %v165
    %v333 = vunpack.c.h.bf16 %v165
    %v334 = vunpack.c.l.bf16 %v166
    %v335 = vunpack.c.h.bf16 %v166
    %v336 = vunpack.c.l.bf16 %v167
    %v337 = vunpack.c.h.bf16 %v167
    %v338 = vunpack.c.l.bf16 %v168
    %v339 = vunpack.c.h.bf16 %v168
    %v340 = vunpack.c.l.bf16 %v169
    %v341 = vunpack.c.h.bf16 %v169
    %v342 = vunpack.c.l.bf16 %v170
    %v343 = vunpack.c.h.bf16 %v170
    %v344 = vunpack.c.l.bf16 %v171
    %v345 = vunpack.c.h.bf16 %v171
    %v346 = vunpack.c.l.bf16 %v172
    %v347 = vunpack.c.h.bf16 %v172
    %v348 = vunpack.c.l.bf16 %v173
    %v349 = vunpack.c.h.bf16 %v173
    %v350 = vunpack.c.l.bf16 %v174
    %v351 = vunpack.c.h.bf16 %v174
    %v352 = vunpack.c.l.bf16 %v175
    %v353 = vunpack.c.h.bf16 %v175
    %v354 = vunpack.c.l.bf16 %v176
    %v355 = vunpack.c.h.bf16 %v176
    %v356 = vunpack.c.l.bf16 %v177
    %v357 = vunpack.c.h.bf16 %v177
    %v358 = vunpack.c.l.bf16 %v178
    %v359 = vunpack.c.h.bf16 %v178
    %v360 = vunpack.c.l.bf16 %v179
    %v361 = vunpack.c.h.bf16 %v179
    %v362 = vunpack.c.l.bf16 %v180
    %v363 = vunpack.c.h.bf16 %v180
    %v364 = vunpack.c.l.bf16 %v181
    %v365 = vunpack.c.h.bf16 %v181
    %v366 = vunpack.c.l.bf16 %v182
    %v367 = vunpack.c.h.bf16 %v182
    %v368 = vunpack.c.l.bf16 %v183
    %v369 = vunpack.c.h.bf16 %v183
    %v370 = vunpack.c.l.bf16 %v184
    %v371 = vunpack.c.h.bf16 %v184
    %v372 = vunpack.c.l.bf16 %v185
    %v373 = vunpack.c.h.bf16 %v185
    %v374 = vunpack.c.l.bf16 %v186
    %v375 = vunpack.c.h.bf16 %v186
    %v376 = vunpack.c.l.bf16 %v187
    %v377 = vunpack.c.h.bf16 %v187
    %v378 = vunpack.c.l.bf16 %v188
    %v379 = vunpack.c.h.bf16 %v188
    %v380 = vunpack.c.l.bf16 %v189
    %v381 = vunpack.c.h.bf16 %v189
    %v382 = vunpack.c.l.bf16 %v190
    %v383 = vunpack.c.h.bf16 %v190
    %v384 = vunpack.c.l.bf16 %v191
    %v385 = vunpack.c.h.bf16 %v191
    %v386 = vunpack.c.l.bf16 %v192
    %v387 = vunpack.c.h.bf16 %v192
    %v388 = vunpack.c.l.bf16 %v193
    %v389 = vunpack.c.h.bf16 %v193
    %v390 = vunpack.c.l.bf16 %v194
    %v391 = vunpack.c.h.bf16 %v194
    %v392 = vunpack.c.l.bf16 %v195
    %v393 = vunpack.c.h.bf16 %v195
    %v394 = vunpack.c.l.bf16 %v196
    %v395 = vunpack.c.h.bf16 %v196
    %v396 = vunpack.c.l.bf16 %v197
    %v397 = vunpack.c.h.bf16 %v197
    %v398 = vunpack.c.l.bf16 %v198
    %v399 = vunpack.c.h.bf16 %v198
    %v400 = vunpack.c.l.bf16 %v199
    %v401 = vunpack.c.h.bf16 %v199
    %v402 = vunpack.c.l.bf16 %v200
    %v403 = vunpack.c.h.bf16 %v200
    %v404 = vunpack.c.l.bf16 %v201
    %v405 = vunpack.c.h.bf16 %v201
    %v406 = vunpack.c.l.bf16 %v202
    %v407 = vunpack.c.h.bf16 %v202
    %v408 = vunpack.c.l.bf16 %v203
    %v409 = vunpack.c.h.bf16 %v203
    %v410 = vunpack.c.l.bf16 %v204
    %v411 = vunpack.c.h.bf16 %v204
    %v412 = vunpack.c.l.bf16 %v205
    %v413 = vunpack.c.h.bf16 %v205
    %v414 = vunpack.c.l.bf16 %v206
    %v415 = vunpack.c.h.bf16 %v206
    %v416 = vunpack.c.l.bf16 %v207
    %v417 = vunpack.c.h.bf16 %v207
    %v418 = vunpack.c.l.bf16 %v208
    %v419 = vunpack.c.h.bf16 %v208
    %v420 = vunpack.c.l.bf16 %v209
    %v421 = vunpack.c.h.bf16 %v209
    %v422 = vunpack.c.l.bf16 %v210
    %v423 = vunpack.c.h.bf16 %v210
    %v424 = vunpack.c.l.bf16 %v211
    %v425 = vunpack.c.h.bf16 %v211
    %v426 = vunpack.c.l.bf16 %v212
    %v427 = vunpack.c.h.bf16 %v212
    %v428 = vunpack.c.l.bf16 %v213
    %v429 = vunpack.c.h.bf16 %v213
    %v430 = vunpack.c.l.bf16 %v214
    %v431 = vunpack.c.h.bf16 %v214
    %v432 = vunpack.c.l.bf16 %v215
    %v433 = vunpack.c.h.bf16 %v215
    %v434 = vunpack.c.l.bf16 %v216
    %v435 = vunpack.c.h.bf16 %v216
    %v436 = vunpack.c.l.bf16 %v217
    %v437 = vunpack.c.h.bf16 %v217
    %v438 = vunpack.c.l.bf16 %v218
    %v439 = vunpack.c.h.bf16 %v218
    %v440 = vunpack.c.l.bf16 %v219
    %v441 = vunpack.c.h.bf16 %v219
    %v442 = vunpack.c.l.bf16 %v220
    %v443 = vunpack.c.h.bf16 %v220
    %v444 = vunpack.c.l.bf16 %v221
    %v445 = vunpack.c.h.bf16 %v221
    %v446 = vunpack.c.l.bf16 %v222
    %v447 = vunpack.c.h.bf16 %v222
    %v448 = vunpack.c.l.bf16 %v223
    %v449 = vunpack.c.h.bf16 %v223
    %v450 = vunpack.c.l.bf16 %v224
    %v451 = vunpack.c.h.bf16 %v224
    %v452 = vunpack.c.l.bf16 %v225
    %v453 = vunpack.c.h.bf16 %v225
    %v454 = vunpack.c.l.bf16 %v226
    %v455 = vunpack.c.h.bf16 %v226
    %v456 = vunpack.c.l.bf16 %v227
    %v457 = vunpack.c.h.bf16 %v227
    %v458 = vunpack.c.l.bf16 %v228
    %v459 = vunpack.c.h.bf16 %v228
    %v460 = vunpack.c.l.bf16 %v229
    %v461 = vunpack.c.h.bf16 %v229
    %v462 = vunpack.c.l.bf16 %v230
    %v463 = vunpack.c.h.bf16 %v230
    %v464 = vunpack.c.l.bf16 %v231
    %v465 = vunpack.c.h.bf16 %v231
    %v466 = vunpack.c.l.bf16 %v232
    %v467 = vunpack.c.h.bf16 %v232
    %v468 = vunpack.c.l.bf16 %v233
    %v469 = vunpack.c.h.bf16 %v233
    %v470 = vunpack.c.l.bf16 %v234
    %v471 = vunpack.c.h.bf16 %v234
    %v472 = vunpack.c.l.bf16 %v235
    %v473 = vunpack.c.h.bf16 %v235
    %v474 = vunpack.c.l.bf16 %v236
    %v475 = vunpack.c.h.bf16 %v236
    %v476 = vunpack.c.l.bf16 %v237
    %v477 = vunpack.c.h.bf16 %v237
    %v478 = vunpack.c.l.bf16 %v238
    %v479 = vunpack.c.h.bf16 %v238
    %v480 = vunpack.c.l.bf16 %v239
    %v481 = vunpack.c.h.bf16 %v239
    %v482 = vunpack.c.l.bf16 %v240
    %v483 = vunpack.c.h.bf16 %v240
    %v484 = vunpack.c.l.bf16 %v241
    %v485 = vunpack.c.h.bf16 %v241
    %v486 = vunpack.c.l.bf16 %v242
    %v487 = vunpack.c.h.bf16 %v242
    %v488 = vunpack.c.l.bf16 %v243
    %v489 = vunpack.c.h.bf16 %v243
    %v490 = vunpack.c.l.bf16 %v244
    %v491 = vunpack.c.h.bf16 %v244
    %v492 = vunpack.c.l.bf16 %v245
    %v493 = vunpack.c.h.bf16 %v245
    %v494 = vunpack.c.l.bf16 %v246
    %v495 = vunpack.c.h.bf16 %v246
    %v496 = vunpack.c.l.bf16 %v247
    %v497 = vunpack.c.h.bf16 %v247
    %v498 = vunpack.c.l.bf16 %v248
    %v499 = vunpack.c.h.bf16 %v248
    %v500 = vunpack.c.l.bf16 %v249
    %v501 = vunpack.c.h.bf16 %v249
    %v502 = vunpack.c.l.bf16 %v250
    %v503 = vunpack.c.h.bf16 %v250
    %v504 = vunpack.c.l.bf16 %v251
    %v505 = vunpack.c.h.bf16 %v251
    %v506 = vunpack.c.l.bf16 %v252
    %v507 = vunpack.c.h.bf16 %v252
    %v508 = vunpack.c.l.bf16 %v253
    %v509 = vunpack.c.h.bf16 %v253
    %v510 = vunpack.c.l.bf16 %v254
    %v511 = vunpack.c.h.bf16 %v254
    %v512 = vunpack.c.l.bf16 %v255
    %v513 = vunpack.c.h.bf16 %v255
    %v514 = vunpack.c.l.bf16 %v256
    %v515 = vunpack.c.h.bf16 %v256
    %v516 = vunpack.c.l.bf16 %v257
    %v517 = vunpack.c.h.bf16 %v257
    %v518 = vunpack.c.l.bf16 %v258
    %v519 = vunpack.c.h.bf16 %v258
    %v520 = vunpack.c.l.bf16 %v259
    %v521 = vunpack.c.h.bf16 %v259
    %v522 = vunpack.c.l.bf16 %v260
    %v523 = vunpack.c.h.bf16 %v260
    %v524 = vunpack.c.l.bf16 %v261
    %v525 = vunpack.c.h.bf16 %v261
    %v526 = vunpack.c.l.bf16 %v262
    %v527 = vunpack.c.h.bf16 %v262
    %v528 = vunpack.c.l.bf16 %v263
    %v529 = vunpack.c.h.bf16 %v263
    %v530 = vunpack.c.l.bf16 %v264
    %v531 = vunpack.c.h.bf16 %v264
    %v532 = vunpack.c.l.bf16 %v265
    %v533 = vunpack.c.h.bf16 %v265
    %v534 = vunpack.c.l.bf16 %v266
    %v535 = vunpack.c.h.bf16 %v266
    %v536 = vunpack.c.l.bf16 %v267
    %v537 = vunpack.c.h.bf16 %v267
    %v538 = vunpack.c.l.bf16 %v268
    %v539 = vunpack.c.h.bf16 %v268
    %v540 = vunpack.c.l.bf16 %v269
    %v541 = vunpack.c.h.bf16 %v269
    %v542 = vunpack.c.l.bf16 %v270
    %v543 = vunpack.c.h.bf16 %v270
    %v544 = vunpack.c.l.bf16 %v271
    %v545 = vunpack.c.h.bf16 %v271
    %v546 = vunpack.c.l.bf16 %v272
    %v547 = vunpack.c.h.bf16 %v272
    %v548 = vunpack.c.l.bf16 %v273
    %v549 = vunpack.c.h.bf16 %v273
    %v550 = vunpack.c.l.bf16 %v274
    %v551 = vunpack.c.h.bf16 %v274
    %v552 = vunpack.c.l.bf16 %v275
    %v553 = vunpack.c.h.bf16 %v275
    %v554 = vunpack.c.l.bf16 %v276
    %v555 = vunpack.c.h.bf16 %v276
    %v556 = vunpack.c.l.bf16 %v277
    %v557 = vunpack.c.h.bf16 %v277
    %v558 = vunpack.c.l.bf16 %v278
    %v559 = vunpack.c.h.bf16 %v278
    %v560 = vunpack.c.l.bf16 %v279
    %v561 = vunpack.c.h.bf16 %v279
    %v562 = vunpack.c.l.bf16 %v280
    %v563 = vunpack.c.h.bf16 %v280
    %v564 = vunpack.c.l.bf16 %v281
    %v565 = vunpack.c.h.bf16 %v281
    %v566 = vunpack.c.l.bf16 %v282
    %v567 = vunpack.c.h.bf16 %v282
    %v568 = vunpack.c.l.bf16 %v283
    %v569 = vunpack.c.h.bf16 %v283
    %v570 = vunpack.c.l.bf16 %v284
    %v571 = vunpack.c.h.bf16 %v284
    %v572 = vunpack.c.l.bf16 %v285
    %v573 = vunpack.c.h.bf16 %v285
    %574 = vmatpush.msra.mxu0 %v376
    %575 = vmatpush.msra.mxu0 %v370
    %576 = vmatpush.msra.mxu0 %v364
    %577 = vmatpush.msra.mxu0 %v358
    %578 = vmatpush.msra.mxu0 %v352
    %579 = vmatpush.msra.mxu0 %v346
    %580 = vmatpush.msra.mxu0 %v340
    %581 = vmatpush.msra.mxu0 %v334
    %582 = vmatpush.msra.mxu0 %v328
    %583 = vmatpush.msra.mxu0 %v322
    %584 = vmatpush.msra.mxu0 %v316
    %585 = vmatpush.msra.mxu0 %v310
    %586 = vmatpush.msra.mxu0 %v304
    %587 = vmatpush.msra.mxu0 %v298
    %588 = vmatpush.msra.mxu0 %v292
    %589 = vmatpush.msra.mxu0 %v286
    %590 = vmatmul.f32.gmra.mxu0 %v137
    %v591 = vpop.f32.mrf.mxu0
    %v592 = vadd.f32 0.0, %v591
    %593 = vdwg.mxu0
    %594 = vmatpush.msra.mxu0 %v472
    %595 = vmatpush.msra.mxu0 %v466
    %596 = vmatpush.msra.mxu0 %v460
    %597 = vmatpush.msra.mxu0 %v454
    %598 = vmatpush.msra.mxu0 %v448
    %599 = vmatpush.msra.mxu0 %v442
    %600 = vmatpush.msra.mxu0 %v436
    %601 = vmatpush.msra.mxu0 %v430
    %602 = vmatpush.msra.mxu0 %v424
    %603 = vmatpush.msra.mxu0 %v418
    %604 = vmatpush.msra.mxu0 %v412
    %605 = vmatpush.msra.mxu0 %v406
    %606 = vmatpush.msra.mxu0 %v400
    %607 = vmatpush.msra.mxu0 %v394
    %608 = vmatpush.msra.mxu0 %v388
    %609 = vmatpush.msra.mxu0 %v382
    %610 = vmatmul.f32.gmra.mxu0 %v138
    %v611 = vpop.f32.mrf.mxu0
    %v612 = vadd.f32 %v592, %v611
    %613 = vdwg.mxu0
    %614 = vmatpush.msra.mxu0 %v568
    %615 = vmatpush.msra.mxu0 %v562
    %616 = vmatpush.msra.mxu0 %v556
    %617 = vmatpush.msra.mxu0 %v550
    %618 = vmatpush.msra.mxu0 %v544
    %619 = vmatpush.msra.mxu0 %v538
    %620 = vmatpush.msra.mxu0 %v532
    %621 = vmatpush.msra.mxu0 %v526
    %622 = vmatpush.msra.mxu0 %v520
    %623 = vmatpush.msra.mxu0 %v514
    %624 = vmatpush.msra.mxu0 %v508
    %625 = vmatpush.msra.mxu0 %v502
    %626 = vmatpush.msra.mxu0 %v496
    %627 = vmatpush.msra.mxu0 %v490
    %628 = vmatpush.msra.mxu0 %v484
    %629 = vmatpush.msra.mxu0 %v478
    %630 = vmatmul.f32.gmra.mxu0 %v139
    %v631 = vpop.f32.mrf.mxu0
    %v632 = vadd.f32 %v612, %v631
    %633 = vdwg.mxu0
    %634 = vmatpush.msra.mxu0 %v377
    %635 = vmatpush.msra.mxu0 %v371
    %636 = vmatpush.msra.mxu0 %v365
    %637 = vmatpush.msra.mxu0 %v359
    %638 = vmatpush.msra.mxu0 %v353
    %639 = vmatpush.msra.mxu0 %v347
    %640 = vmatpush.msra.mxu0 %v341
    %641 = vmatpush.msra.mxu0 %v335
    %642 = vmatpush.msra.mxu0 %v329
    %643 = vmatpush.msra.mxu0 %v323
    %644 = vmatpush.msra.mxu0 %v317
    %645 = vmatpush.msra.mxu0 %v311
    %646 = vmatpush.msra.mxu0 %v305
    %647 = vmatpush.msra.mxu0 %v299
    %648 = vmatpush.msra.mxu0 %v293
    %649 = vmatpush.msra.mxu0 %v287
    %650 = vmatmul.f32.gmra.mxu0 %v137
    %v651 = vpop.f32.mrf.mxu0
    %v652 = vadd.f32 0.0, %v651
    %653 = vdwg.mxu0
    %654 = vmatpush.msra.mxu0 %v473
    %655 = vmatpush.msra.mxu0 %v467
    %656 = vmatpush.msra.mxu0 %v461
    %657 = vmatpush.msra.mxu0 %v455
    %658 = vmatpush.msra.mxu0 %v449
    %659 = vmatpush.msra.mxu0 %v443
    %660 = vmatpush.msra.mxu0 %v437
    %661 = vmatpush.msra.mxu0 %v431
    %662 = vmatpush.msra.mxu0 %v425
    %663 = vmatpush.msra.mxu0 %v419
    %664 = vmatpush.msra.mxu0 %v413
    %665 = vmatpush.msra.mxu0 %v407
    %666 = vmatpush.msra.mxu0 %v401
    %667 = vmatpush.msra.mxu0 %v395
    %668 = vmatpush.msra.mxu0 %v389
    %669 = vmatpush.msra.mxu0 %v383
    %670 = vmatmul.f32.gmra.mxu0 %v138
    %v671 = vpop.f32.mrf.mxu0
    %v672 = vadd.f32 %v652, %v671
    %673 = vdwg.mxu0
    %674 = vmatpush.msra.mxu0 %v569
    %675 = vmatpush.msra.mxu0 %v563
    %676 = vmatpush.msra.mxu0 %v557
    %677 = vmatpush.msra.mxu0 %v551
    %678 = vmatpush.msra.mxu0 %v545
    %679 = vmatpush.msra.mxu0 %v539
    %680 = vmatpush.msra.mxu0 %v533
    %681 = vmatpush.msra.mxu0 %v527
    %682 = vmatpush.msra.mxu0 %v521
    %683 = vmatpush.msra.mxu0 %v515
    %684 = vmatpush.msra.mxu0 %v509
    %685 = vmatpush.msra.mxu0 %v503
    %686 = vmatpush.msra.mxu0 %v497
    %687 = vmatpush.msra.mxu0 %v491
    %688 = vmatpush.msra.mxu0 %v485
    %689 = vmatpush.msra.mxu0 %v479
    %690 = vmatmul.f32.gmra.mxu0 %v139
    %v691 = vpop.f32.mrf.mxu0
    %v692 = vadd.f32 %v672, %v691
    %693 = vdwg.mxu0
    %694 = vmatpush.msra.mxu0 %v378
    %695 = vmatpush.msra.mxu0 %v372
    %696 = vmatpush.msra.mxu0 %v366
    %697 = vmatpush.msra.mxu0 %v360
    %698 = vmatpush.msra.mxu0 %v354
    %699 = vmatpush.msra.mxu0 %v348
    %700 = vmatpush.msra.mxu0 %v342
    %701 = vmatpush.msra.mxu0 %v336
    %702 = vmatpush.msra.mxu0 %v330
    %703 = vmatpush.msra.mxu0 %v324
    %704 = vmatpush.msra.mxu0 %v318
    %705 = vmatpush.msra.mxu0 %v312
    %706 = vmatpush.msra.mxu0 %v306
    %707 = vmatpush.msra.mxu0 %v300
    %708 = vmatpush.msra.mxu0 %v294
    %709 = vmatpush.msra.mxu0 %v288
    %710 = vmatmul.f32.gmra.mxu0 %v137
    %v711 = vpop.f32.mrf.mxu0
    %v712 = vadd.f32 0.0, %v711
    %713 = vdwg.mxu0
    %714 = vmatpush.msra.mxu0 %v474
    %715 = vmatpush.msra.mxu0 %v468
    %716 = vmatpush.msra.mxu0 %v462
    %717 = vmatpush.msra.mxu0 %v456
    %718 = vmatpush.msra.mxu0 %v450
    %719 = vmatpush.msra.mxu0 %v444
    %720 = vmatpush.msra.mxu0 %v438
    %721 = vmatpush.msra.mxu0 %v432
    %722 = vmatpush.msra.mxu0 %v426
    %723 = vmatpush.msra.mxu0 %v420
    %724 = vmatpush.msra.mxu0 %v414
    %725 = vmatpush.msra.mxu0 %v408
    %726 = vmatpush.msra.mxu0 %v402
    %727 = vmatpush.msra.mxu0 %v396
    %728 = vmatpush.msra.mxu0 %v390
    %729 = vmatpush.msra.mxu0 %v384
    %730 = vmatmul.f32.gmra.mxu0 %v138
    %v731 = vpop.f32.mrf.mxu0
    %v732 = vadd.f32 %v712, %v731
    %733 = vdwg.mxu0
    %734 = vmatpush.msra.mxu0 %v570
    %735 = vmatpush.msra.mxu0 %v564
    %736 = vmatpush.msra.mxu0 %v558
    %737 = vmatpush.msra.mxu0 %v552
    %738 = vmatpush.msra.mxu0 %v546
    %739 = vmatpush.msra.mxu0 %v540
    %740 = vmatpush.msra.mxu0 %v534
    %741 = vmatpush.msra.mxu0 %v528
    %742 = vmatpush.msra.mxu0 %v522
    %743 = vmatpush.msra.mxu0 %v516
    %744 = vmatpush.msra.mxu0 %v510
    %745 = vmatpush.msra.mxu0 %v504
    %746 = vmatpush.msra.mxu0 %v498
    %747 = vmatpush.msra.mxu0 %v492
    %748 = vmatpush.msra.mxu0 %v486
    %749 = vmatpush.msra.mxu0 %v480
    %750 = vmatmul.f32.gmra.mxu0 %v139
    %v751 = vpop.f32.mrf.mxu0
    %v752 = vadd.f32 %v732, %v751
    %753 = vdwg.mxu0
    %754 = vmatpush.msra.mxu0 %v379
    %755 = vmatpush.msra.mxu0 %v373
    %756 = vmatpush.msra.mxu0 %v367
    %757 = vmatpush.msra.mxu0 %v361
    %758 = vmatpush.msra.mxu0 %v355
    %759 = vmatpush.msra.mxu0 %v349
    %760 = vmatpush.msra.mxu0 %v343
    %761 = vmatpush.msra.mxu0 %v337
    %762 = vmatpush.msra.mxu0 %v331
    %763 = vmatpush.msra.mxu0 %v325
    %764 = vmatpush.msra.mxu0 %v319
    %765 = vmatpush.msra.mxu0 %v313
    %766 = vmatpush.msra.mxu0 %v307
    %767 = vmatpush.msra.mxu0 %v301
    %768 = vmatpush.msra.mxu0 %v295
    %769 = vmatpush.msra.mxu0 %v289
    %770 = vmatmul.f32.gmra.mxu0 %v137
    %v771 = vpop.f32.mrf.mxu0
    %v772 = vadd.f32 0.0, %v771
    %773 = vdwg.mxu0
    %774 = vmatpush.msra.mxu0 %v475
    %775 = vmatpush.msra.mxu0 %v469
    %776 = vmatpush.msra.mxu0 %v463
    %777 = vmatpush.msra.mxu0 %v457
    %778 = vmatpush.msra.mxu0 %v451
    %779 = vmatpush.msra.mxu0 %v445
    %780 = vmatpush.msra.mxu0 %v439
    %781 = vmatpush.msra.mxu0 %v433
    %782 = vmatpush.msra.mxu0 %v427
    %783 = vmatpush.msra.mxu0 %v421
    %784 = vmatpush.msra.mxu0 %v415
    %785 = vmatpush.msra.mxu0 %v409
    %786 = vmatpush.msra.mxu0 %v403
    %787 = vmatpush.msra.mxu0 %v397
    %788 = vmatpush.msra.mxu0 %v391
    %789 = vmatpush.msra.mxu0 %v385
    %790 = vmatmul.f32.gmra.mxu0 %v138
    %v791 = vpop.f32.mrf.mxu0
    %v792 = vadd.f32 %v772, %v791
    %793 = vdwg.mxu0
    %794 = vmatpush.msra.mxu0 %v571
    %795 = vmatpush.msra.mxu0 %v565
    %796 = vmatpush.msra.mxu0 %v559
    %797 = vmatpush.msra.mxu0 %v553
    %798 = vmatpush.msra.mxu0 %v547
    %799 = vmatpush.msra.mxu0 %v541
    %800 = vmatpush.msra.mxu0 %v535
    %801 = vmatpush.msra.mxu0 %v529
    %802 = vmatpush.msra.mxu0 %v523
    %803 = vmatpush.msra.mxu0 %v517
    %804 = vmatpush.msra.mxu0 %v511
    %805 = vmatpush.msra.mxu0 %v505
    %806 = vmatpush.msra.mxu0 %v499
    %807 = vmatpush.msra.mxu0 %v493
    %808 = vmatpush.msra.mxu0 %v487
    %809 = vmatpush.msra.mxu0 %v481
    %810 = vmatmul.f32.gmra.mxu0 %v139
    %v811 = vpop.f32.mrf.mxu0
    %v812 = vadd.f32 %v792, %v811
    %813 = vdwg.mxu0
    %814 = vmatpush.msra.mxu0 %v380
    %815 = vmatpush.msra.mxu0 %v374
    %816 = vmatpush.msra.mxu0 %v368
    %817 = vmatpush.msra.mxu0 %v362
    %818 = vmatpush.msra.mxu0 %v356
    %819 = vmatpush.msra.mxu0 %v350
    %820 = vmatpush.msra.mxu0 %v344
    %821 = vmatpush.msra.mxu0 %v338
    %822 = vmatpush.msra.mxu0 %v332
    %823 = vmatpush.msra.mxu0 %v326
    %824 = vmatpush.msra.mxu0 %v320
    %825 = vmatpush.msra.mxu0 %v314
    %826 = vmatpush.msra.mxu0 %v308
    %827 = vmatpush.msra.mxu0 %v302
    %828 = vmatpush.msra.mxu0 %v296
    %829 = vmatpush.msra.mxu0 %v290
    %830 = vmatmul.f32.gmra.mxu0 %v137
    %v831 = vpop.f32.mrf.mxu0
    %v832 = vadd.f32 0.0, %v831
    %833 = vdwg.mxu0
    %834 = vmatpush.msra.mxu0 %v476
    %835 = vmatpush.msra.mxu0 %v470
    %836 = vmatpush.msra.mxu0 %v464
    %837 = vmatpush.msra.mxu0 %v458
    %838 = vmatpush.msra.mxu0 %v452
    %839 = vmatpush.msra.mxu0 %v446
    %840 = vmatpush.msra.mxu0 %v440
    %841 = vmatpush.msra.mxu0 %v434
    %842 = vmatpush.msra.mxu0 %v428
    %843 = vmatpush.msra.mxu0 %v422
    %844 = vmatpush.msra.mxu0 %v416
    %845 = vmatpush.msra.mxu0 %v410
    %846 = vmatpush.msra.mxu0 %v404
    %847 = vmatpush.msra.mxu0 %v398
    %848 = vmatpush.msra.mxu0 %v392
    %849 = vmatpush.msra.mxu0 %v386
    %850 = vmatmul.f32.gmra.mxu0 %v138
    %v851 = vpop.f32.mrf.mxu0
    %v852 = vadd.f32 %v832, %v851
    %853 = vdwg.mxu0
    %854 = vmatpush.msra.mxu0 %v572
    %855 = vmatpush.msra.mxu0 %v566
    %856 = vmatpush.msra.mxu0 %v560
    %857 = vmatpush.msra.mxu0 %v554
    %858 = vmatpush.msra.mxu0 %v548
    %859 = vmatpush.msra.mxu0 %v542
    %860 = vmatpush.msra.mxu0 %v536
    %861 = vmatpush.msra.mxu0 %v530
    %862 = vmatpush.msra.mxu0 %v524
    %863 = vmatpush.msra.mxu0 %v518
    %864 = vmatpush.msra.mxu0 %v512
    %865 = vmatpush.msra.mxu0 %v506
    %866 = vmatpush.msra.mxu0 %v500
    %867 = vmatpush.msra.mxu0 %v494
    %868 = vmatpush.msra.mxu0 %v488
    %869 = vmatpush.msra.mxu0 %v482
    %870 = vmatmul.f32.gmra.mxu0 %v139
    %v871 = vpop.f32.mrf.mxu0
    %v872 = vadd.f32 %v852, %v871
    %873 = vdwg.mxu0
    %874 = vmatpush.msra.mxu0 %v381
    %875 = vmatpush.msra.mxu0 %v375
    %876 = vmatpush.msra.mxu0 %v369
    %877 = vmatpush.msra.mxu0 %v363
    %878 = vmatpush.msra.mxu0 %v357
    %879 = vmatpush.msra.mxu0 %v351
    %880 = vmatpush.msra.mxu0 %v345
    %881 = vmatpush.msra.mxu0 %v339
    %882 = vmatpush.msra.mxu0 %v333
    %883 = vmatpush.msra.mxu0 %v327
    %884 = vmatpush.msra.mxu0 %v321
    %885 = vmatpush.msra.mxu0 %v315
    %886 = vmatpush.msra.mxu0 %v309
    %887 = vmatpush.msra.mxu0 %v303
    %888 = vmatpush.msra.mxu0 %v297
    %889 = vmatpush.msra.mxu0 %v291
    %890 = vmatmul.f32.gmra.mxu0 %v137
    %v891 = vpop.f32.mrf.mxu0
    %v892 = vadd.f32 0.0, %v891
    %893 = vdwg.mxu0
    %894 = vmatpush.msra.mxu0 %v477
    %895 = vmatpush.msra.mxu0 %v471
    %896 = vmatpush.msra.mxu0 %v465
    %897 = vmatpush.msra.mxu0 %v459
    %898 = vmatpush.msra.mxu0 %v453
    %899 = vmatpush.msra.mxu0 %v447
    %900 = vmatpush.msra.mxu0 %v441
    %901 = vmatpush.msra.mxu0 %v435
    %902 = vmatpush.msra.mxu0 %v429
    %903 = vmatpush.msra.mxu0 %v423
    %904 = vmatpush.msra.mxu0 %v417
    %905 = vmatpush.msra.mxu0 %v411
    %906 = vmatpush.msra.mxu0 %v405
    %907 = vmatpush.msra.mxu0 %v399
    %908 = vmatpush.msra.mxu0 %v393
    %909 = vmatpush.msra.mxu0 %v387
    %910 = vmatmul.f32.gmra.mxu0 %v138
    %v911 = vpop.f32.mrf.mxu0
    %v912 = vadd.f32 %v892, %v911
    %913 = vdwg.mxu0
    %914 = vmatpush.msra.mxu0 %v573
    %915 = vmatpush.msra.mxu0 %v567
    %916 = vmatpush.msra.mxu0 %v561
    %917 = vmatpush.msra.mxu0 %v555
    %918 = vmatpush.msra.mxu0 %v549
    %919 = vmatpush.msra.mxu0 %v543
    %920 = vmatpush.msra.mxu0 %v537
    %921 = vmatpush.msra.mxu0 %v531
    %922 = vmatpush.msra.mxu0 %v525
    %923 = vmatpush.msra.mxu0 %v519
    %924 = vmatpush.msra.mxu0 %v513
    %925 = vmatpush.msra.mxu0 %v507
    %926 = vmatpush.msra.mxu0 %v501
    %927 = vmatpush.msra.mxu0 %v495
    %928 = vmatpush.msra.mxu0 %v489
    %929 = vmatpush.msra.mxu0 %v483
    %930 = vmatmul.f32.gmra.mxu0 %v139
    %v931 = vpop.f32.mrf.mxu0
    %v932 = vadd.f32 %v912, %v931
    %933 = vdwg.mxu0
    %v934 = vrot.slane %v632, 4
    %v935 = vadd.f32 %v632, %v934
    %v936 = vrot.slane %v935, 2
    %v937 = vadd.f32 %v935, %v936
    %v938 = vrot.slane %v937, 1
    %v939 = vadd.f32 %v937, %v938
    %v940 = vrot.slane %v692, 4
    %v941 = vadd.f32 %v692, %v940
    %v942 = vrot.slane %v941, 2
    %v943 = vadd.f32 %v941, %v942
    %v944 = vrot.slane %v943, 1
    %v945 = vadd.f32 %v943, %v944
    %v946 = vrot.slane %v752, 4
    %v947 = vadd.f32 %v752, %v946
    %v948 = vrot.slane %v947, 2
    %v949 = vadd.f32 %v947, %v948
    %v950 = vrot.slane %v949, 1
    %v951 = vadd.f32 %v949, %v950
    %v952 = vrot.slane %v812, 4
    %v953 = vadd.f32 %v812, %v952
    %v954 = vrot.slane %v953, 2
    %v955 = vadd.f32 %v953, %v954
    %v956 = vrot.slane %v955, 1
    %v957 = vadd.f32 %v955, %v956
    %v958 = vrot.slane %v872, 4
    %v959 = vadd.f32 %v872, %v958
    %v960 = vrot.slane %v959, 2
    %v961 = vadd.f32 %v959, %v960
    %v962 = vrot.slane %v961, 1
    %v963 = vadd.f32 %v961, %v962
    %v964 = vrot.slane %v932, 4
    %v965 = vadd.f32 %v932, %v964
    %v966 = vrot.slane %v965, 2
    %v967 = vadd.f32 %v965, %v966
    %v968 = vrot.slane %v967, 1
    %v969 = vadd.f32 %v967, %v968
    %v970 = vrcp.pop 8.0
    %v971 = vmul.f32 8.0, %v970
    %v972 = vsub.f32 1.0, %v971
    %v973 = vmul.f32 %v970, %v972
    %v974 = vadd.f32 %v970, %v973
    %vm975 = vweird.f32 %v970
    %v976 = vsel %vm975, %v970, %v974
    %v977 = vmul.f32 %v939, %v976
    %v978 = vmul.f32 %v945, %v976
    %v979 = vmul.f32 %v951, %v976
    %v980 = vmul.f32 %v957, %v976
    %v981 = vmul.f32 %v963, %v976
    %v982 = vmul.f32 %v969, %v976
    %v983 = vsub.f32 %v632, %v977
    %v984 = vsub.f32 %v692, %v978
    %v985 = vsub.f32 %v752, %v979
    %v986 = vsub.f32 %v812, %v980
    %v987 = vsub.f32 %v872, %v981
    %v988 = vsub.f32 %v932, %v982
    %v989 = vmul.f32 %v983, %v983
    %v990 = vmul.f32 %v984, %v984
    %v991 = vmul.f32 %v985, %v985
    %v992 = vmul.f32 %v986, %v986
    %v993 = vmul.f32 %v987, %v987
    %v994 = vmul.f32 %v988, %v988
    %v995 = vrot.slane %v989, 4
    %v996 = vadd.f32 %v989, %v995
    %v997 = vrot.slane %v996, 2
    %v998 = vadd.f32 %v996, %v997
    %v999 = vrot.slane %v998, 1
    %v1000 = vadd.f32 %v998, %v999
    %v1001 = vrot.slane %v990, 4
    %v1002 = vadd.f32 %v990, %v1001
    %v1003 = vrot.slane %v1002, 2
    %v1004 = vadd.f32 %v1002, %v1003
    %v1005 = vrot.slane %v1004, 1
    %v1006 = vadd.f32 %v1004, %v1005
    %v1007 = vrot.slane %v991, 4
    %v1008 = vadd.f32 %v991, %v1007
    %v1009 = vrot.slane %v1008, 2
    %v1010 = vadd.f32 %v1008, %v1009
    %v1011 = vrot.slane %v1010, 1
    %v1012 = vadd.f32 %v1010, %v1011
    %v1013 = vrot.slane %v992, 4
    %v1014 = vadd.f32 %v992, %v1013
    %v1015 = vrot.slane %v1014, 2
    %v1016 = vadd.f32 %v1014, %v1015
    %v1017 = vrot.slane %v1016, 1
    %v1018 = vadd.f32 %v1016, %v1017
    %v1019 = vrot.slane %v993, 4
    %v1020 = vadd.f32 %v993, %v1019
    %v1021 = vrot.slane %v1020, 2
    %v1022 = vadd.f32 %v1020, %v1021
    %v1023 = vrot.slane %v1022, 1
    %v1024 = vadd.f32 %v1022, %v1023
    %v1025 = vrot.slane %v994, 4
    %v1026 = vadd.f32 %v994, %v1025
    %v1027 = vrot.slane %v1026, 2
    %v1028 = vadd.f32 %v1026, %v1027
    %v1029 = vrot.slane %v1028, 1
    %v1030 = vadd.f32 %v1028, %v1029
    %v1031 = vmul.f32 %v1000, %v976
    %v1032 = vmul.f32 %v1006, %v976
    %v1033 = vmul.f32 %v1012, %v976
    %v1034 = vmul.f32 %v1018, %v976
    %v1035 = vmul.f32 %v1024, %v976
    %v1036 = vmul.f32 %v1030, %v976
    %v1037 = vadd.f32 %v1031, 1e-05
    %v1038 = vadd.f32 %v1032, 1e-05
    %v1039 = vadd.f32 %v1033, 1e-05
    %v1040 = vadd.f32 %v1034, 1e-05
    %v1041 = vadd.f32 %v1035, 1e-05
    %v1042 = vadd.f32 %v1036, 1e-05
    %v1043 = vrsqrt.pop %v1037
    %v1044 = vmul.f32 %v1043, %v1037
    %v1045 = vmul.f32 %v1044, %v1043
    %v1046 = vmul.f32 0.5, %v1045
    %v1047 = vsub.f32 1.5, %v1046
    %v1048 = vmul.f32 %v1043, %v1047
    %vm1049 = vweird.f32 %v1037
    %vm1050 = vweird.f32 %v1043
    %vm1051 = vmor %vm1049, %vm1050
    %v1052 = vsel %vm1051, %v1043, %v1048
    %v1053 = vrsqrt.pop %v1038
    %v1054 = vmul.f32 %v1053, %v1038
    %v1055 = vmul.f32 %v1054, %v1053
    %v1056 = vmul.f32 0.5, %v1055
    %v1057 = vsub.f32 1.5, %v1056
    %v1058 = vmul.f32 %v1053, %v1057
    %vm1059 = vweird.f32 %v1038
    %vm1060 = vweird.f32 %v1053
    %vm1061 = vmor %vm1059, %vm1060
    %v1062 = vsel %vm1061, %v1053, %v1058
    %v1063 = vrsqrt.pop %v1039
    %v1064 = vmul.f32 %v1063, %v1039
    %v1065 = vmul.f32 %v1064, %v1063
    %v1066 = vmul.f32 0.5, %v1065
    %v1067 = vsub.f32 1.5, %v1066
    %v1068 = vmul.f32 %v1063, %v1067
    %vm1069 = vweird.f32 %v1039
    %vm1070 = vweird.f32 %v1063
    %vm1071 = vmor %vm1069, %vm1070
    %v1072 = vsel %vm1071, %v1063, %v1068
    %v1073 = vrsqrt.pop %v1040
    %v1074 = vmul.f32 %v1073, %v1040
    %v1075 = vmul.f32 %v1074, %v1073
    %v1076 = vmul.f32 0.5, %v1075
    %v1077 = vsub.f32 1.5, %v1076
    %v1078 = vmul.f32 %v1073, %v1077
    %vm1079 = vweird.f32 %v1040
    %vm1080 = vweird.f32 %v1073
    %vm1081 = vmor %vm1079, %vm1080
    %v1082 = vsel %vm1081, %v1073, %v1078
    %v1083 = vrsqrt.pop %v1041
    %v1084 = vmul.f32 %v1083, %v1041
    %v1085 = vmul.f32 %v1084, %v1083
    %v1086 = vmul.f32 0.5, %v1085
    %v1087 = vsub.f32 1.5, %v1086
    %v1088 = vmul.f32 %v1083, %v1087
    %vm1089 = vweird.f32 %v1041
    %vm1090 = vweird.f32 %v1083
    %vm1091 = vmor %vm1089, %vm1090
    %v1092 = vsel %vm1091, %v1083, %v1088
    %v1093 = vrsqrt.pop %v1042
    %v1094 = vmul.f32 %v1093, %v1042
    %v1095 = vmul.f32 %v1094, %v1093
    %v1096 = vmul.f32 0.5, %v1095
    %v1097 = vsub.f32 1.5, %v1096
    %v1098 = vmul.f32 %v1093, %v1097
    %vm1099 = vweird.f32 %v1042
    %vm1100 = vweird.f32 %v1093
    %vm1101 = vmor %vm1099, %vm1100
    %v1102 = vsel %vm1101, %v1093, %v1098
    %v1109 = vrot.slane %v1062, 7
    %v1110 = vrot.slane %v1072, 6
    %v1111 = vrot.slane %v1082, 5
    %v1112 = vrot.slane %v1092, 4
    %v1113 = vrot.slane %v1102, 3
    %vm1114 = vcmask 1040384
    %v1115 = vsel %vm1114, %v1052, %v1109
    %vm1116 = vcmask 1041408
    %v1117 = vsel %vm1116, %v1115, %v1110
    %vm1118 = vcmask 1043459
    %v1119 = vsel %vm1118, %v1111, %v1112
    %vm1120 = vcmask 1044483
    %v1121 = vsel %vm1120, %v1119, %v1113
    %vm1122 = vcmask 1042432
    %v1123 = vsel %vm1122, %v1117, %v1121
    %v1125 = vmul.f32 %v140, %v1123
    %v1127 = vperm.slane %v1125, 0
    %v1128 = vperm.slane %v1125, 1
    %v1129 = vperm.slane %v1125, 2
    %v1130 = vperm.slane %v1125, 3
    %v1131 = vperm.slane %v1125, 4
    %v1132 = vperm.slane %v1125, 5
    %v1139 = vmul.f32 %v977, %v1127
    %v1140 = vmul.f32 %v978, %v1128
    %v1141 = vmul.f32 %v979, %v1129
    %v1142 = vmul.f32 %v980, %v1130
    %v1143 = vmul.f32 %v981, %v1131
    %v1144 = vmul.f32 %v982, %v1132
    %v1151 = vrot.slane %v1140, 7
    %v1152 = vrot.slane %v1141, 6
    %v1153 = vrot.slane %v1142, 5
    %v1154 = vrot.slane %v1143, 4
    %v1155 = vrot.slane %v1144, 3
    %v1156 = vsel %vm1114, %v1139, %v1151
    %v1157 = vsel %vm1116, %v1156, %v1152
    %v1158 = vsel %vm1118, %v1153, %v1154
    %v1159 = vsel %vm1120, %v1158, %v1155
    %v1160 = vsel %vm1122, %v1157, %v1159
    %v1162 = vsub.f32 %v141, %v1160
    %v1163 = vmul.f32 %v632, %v1127
    %v1164 = vmul.f32 %v692, %v1128
    %v1165 = vmul.f32 %v752, %v1129
    %v1166 = vmul.f32 %v812, %v1130
    %v1167 = vmul.f32 %v872, %v1131
    %v1168 = vmul.f32 %v932, %v1132
    %v1170 = vperm.slane %v1162, 0
    %v1171 = vperm.slane %v1162, 1
    %v1172 = vperm.slane %v1162, 2
    %v1173 = vperm.slane %v1162, 3
    %v1174 = vperm.slane %v1162, 4
    %v1175 = vperm.slane %v1162, 5
    %v1182 = vadd.f32 %v1163, %v1170
    %v1183 = vadd.f32 %v1164, %v1171
    %v1184 = vadd.f32 %v1165, %v1172
    %v1185 = vadd.f32 %v1166, %v1173
    %v1186 = vadd.f32 %v1167, %v1174
    %v1187 = vadd.f32 %v1168, %v1175
    %v1188 = vmax.f32 %v1182, 0.0
    %v1189 = vmax.f32 %v1183, 0.0
    %v1190 = vmax.f32 %v1184, 0.0
    %v1191 = vmax.f32 %v1185, 0.0
    %v1192 = vmax.f32 %v1186, 0.0
    %v1193 = vmax.f32 %v1187, 0.0
    %s1194 = smul.u32 4, 96
    %s1195 = smul.u32 %s1194, 6
    %s1196 = sshll.u32 %s1195, 4
    %1197 = dma.done [#allocation4], %s1196
    %v1198 = vld [vmem:[#allocation2] sm:$0xff]
    %v1199 = vld [vmem:[#allocation2 + $0x8] sm:$0xff]
    %v1200 = vld [vmem:[#allocation2 + $0x10] sm:$0xff]
    %v1201 = vld [vmem:[#allocation2 + $0x18] sm:$0xff]
    %v1202 = vld [vmem:[#allocation2 + $0x20] sm:$0xff]
    %v1203 = vld [vmem:[#allocation2 + $0x28] sm:$0xff]
    %v1204 = vld [vmem:[#allocation2 + $0x30] sm:$0xff]
    %v1205 = vld [vmem:[#allocation2 + $0x38] sm:$0xff]
    %v1206 = vld [vmem:[#allocation2 + $0x40] sm:$0xff]
    %v1207 = vld [vmem:[#allocation2 + $0x48] sm:$0xff]
    %v1208 = vld [vmem:[#allocation2 + $0x50] sm:$0xff]
    %v1209 = vld [vmem:[#allocation2 + $0x58] sm:$0xff]
    %v1210 = vld [vmem:[#allocation2 + $0x60] sm:$0xff]
    %v1211 = vld [vmem:[#allocation2 + $0x68] sm:$0xff]
    %v1212 = vld [vmem:[#allocation2 + $0x70] sm:$0xff]
    %v1213 = vld [vmem:[#allocation2 + $0x78] sm:$0xff]
    %v1214 = vld [vmem:[#allocation2 + $0x80] sm:$0xff]
    %v1215 = vld [vmem:[#allocation2 + $0x88] sm:$0xff]
    %v1216 = vld [vmem:[#allocation2 + $0x90] sm:$0xff]
    %v1217 = vld [vmem:[#allocation2 + $0x98] sm:$0xff]
    %v1218 = vld [vmem:[#allocation2 + $0xa0] sm:$0xff]
    %v1219 = vld [vmem:[#allocation2 + $0xa8] sm:$0xff]
    %v1220 = vld [vmem:[#allocation2 + $0xb0] sm:$0xff]
    %v1221 = vld [vmem:[#allocation2 + $0xb8] sm:$0xff]
    %v1222 = vld [vmem:[#allocation2 + $0xc0] sm:$0xff]
    %v1223 = vld [vmem:[#allocation2 + $0xc8] sm:$0xff]
    %v1224 = vld [vmem:[#allocation2 + $0xd0] sm:$0xff]
    %v1225 = vld [vmem:[#allocation2 + $0xd8] sm:$0xff]
    %v1226 = vld [vmem:[#allocation2 + $0xe0] sm:$0xff]
    %v1227 = vld [vmem:[#allocation2 + $0xe8] sm:$0xff]
    %v1228 = vld [vmem:[#allocation2 + $0xf0] sm:$0xff]
    %v1229 = vld [vmem:[#allocation2 + $0xf8] sm:$0xff]
    %v1230 = vld [vmem:[#allocation2 + $0x100] sm:$0xff]
    %v1231 = vld [vmem:[#allocation2 + $0x108] sm:$0xff]
    %v1232 = vld [vmem:[#allocation2 + $0x110] sm:$0xff]
    %v1233 = vld [vmem:[#allocation2 + $0x118] sm:$0xff]
    %v1234 = vld [vmem:[#allocation2 + $0x120] sm:$0xff]
    %v1235 = vld [vmem:[#allocation2 + $0x128] sm:$0xff]
    %v1236 = vld [vmem:[#allocation2 + $0x130] sm:$0xff]
    %v1237 = vld [vmem:[#allocation2 + $0x138] sm:$0xff]
    %v1238 = vld [vmem:[#allocation2 + $0x140] sm:$0xff]
    %v1239 = vld [vmem:[#allocation2 + $0x148] sm:$0xff]
    %v1240 = vld [vmem:[#allocation2 + $0x150] sm:$0xff]
    %v1241 = vld [vmem:[#allocation2 + $0x158] sm:$0xff]
    %v1242 = vld [vmem:[#allocation2 + $0x160] sm:$0xff]
    %v1243 = vld [vmem:[#allocation2 + $0x168] sm:$0xff]
    %v1244 = vld [vmem:[#allocation2 + $0x170] sm:$0xff]
    %v1245 = vld [vmem:[#allocation2 + $0x178] sm:$0xff]
    %v1246 = vld [vmem:[#allocation2 + $0x180] sm:$0xff]
    %v1247 = vld [vmem:[#allocation2 + $0x188] sm:$0xff]
    %v1248 = vld [vmem:[#allocation2 + $0x190] sm:$0xff]
    %v1249 = vld [vmem:[#allocation2 + $0x198] sm:$0xff]
    %v1250 = vld [vmem:[#allocation2 + $0x1a0] sm:$0xff]
    %v1251 = vld [vmem:[#allocation2 + $0x1a8] sm:$0xff]
    %v1252 = vld [vmem:[#allocation2 + $0x1b0] sm:$0xff]
    %v1253 = vld [vmem:[#allocation2 + $0x1b8] sm:$0xff]
    %v1254 = vld [vmem:[#allocation2 + $0x1c0] sm:$0xff]
    %v1255 = vld [vmem:[#allocation2 + $0x1c8] sm:$0xff]
    %v1256 = vld [vmem:[#allocation2 + $0x1d0] sm:$0xff]
    %v1257 = vld [vmem:[#allocation2 + $0x1d8] sm:$0xff]
    %v1258 = vld [vmem:[#allocation2 + $0x1e0] sm:$0xff]
    %v1259 = vld [vmem:[#allocation2 + $0x1e8] sm:$0xff]
    %v1260 = vld [vmem:[#allocation2 + $0x1f0] sm:$0xff]
    %v1261 = vld [vmem:[#allocation2 + $0x1f8] sm:$0xff]
    %v1262 = vld [vmem:[#allocation2 + $0x200] sm:$0xff]
    %v1263 = vld [vmem:[#allocation2 + $0x208] sm:$0xff]
    %v1264 = vld [vmem:[#allocation2 + $0x210] sm:$0xff]
    %v1265 = vld [vmem:[#allocation2 + $0x218] sm:$0xff]
    %v1266 = vld [vmem:[#allocation2 + $0x220] sm:$0xff]
    %v1267 = vld [vmem:[#allocation2 + $0x228] sm:$0xff]
    %v1268 = vld [vmem:[#allocation2 + $0x230] sm:$0xff]
    %v1269 = vld [vmem:[#allocation2 + $0x238] sm:$0xff]
    %v1270 = vld [vmem:[#allocation2 + $0x240] sm:$0xff]
    %v1271 = vld [vmem:[#allocation2 + $0x248] sm:$0xff]
    %v1272 = vld [vmem:[#allocation2 + $0x250] sm:$0xff]
    %v1273 = vld [vmem:[#allocation2 + $0x258] sm:$0xff]
    %v1274 = vld [vmem:[#allocation2 + $0x260] sm:$0xff]
    %v1275 = vld [vmem:[#allocation2 + $0x268] sm:$0xff]
    %v1276 = vld [vmem:[#allocation2 + $0x270] sm:$0xff]
    %v1277 = vld [vmem:[#allocation2 + $0x278] sm:$0xff]
    %v1278 = vld [vmem:[#allocation2 + $0x280] sm:$0xff]
    %v1279 = vld [vmem:[#allocation2 + $0x288] sm:$0xff]
    %v1280 = vld [vmem:[#allocation2 + $0x290] sm:$0xff]
    %v1281 = vld [vmem:[#allocation2 + $0x298] sm:$0xff]
    %v1282 = vld [vmem:[#allocation2 + $0x2a0] sm:$0xff]
    %v1283 = vld [vmem:[#allocation2 + $0x2a8] sm:$0xff]
    %v1284 = vld [vmem:[#allocation2 + $0x2b0] sm:$0xff]
    %v1285 = vld [vmem:[#allocation2 + $0x2b8] sm:$0xff]
    %v1286 = vld [vmem:[#allocation2 + $0x2c0] sm:$0xff]
    %v1287 = vld [vmem:[#allocation2 + $0x2c8] sm:$0xff]
    %v1288 = vld [vmem:[#allocation2 + $0x2d0] sm:$0xff]
    %v1289 = vld [vmem:[#allocation2 + $0x2d8] sm:$0xff]
    %v1290 = vld [vmem:[#allocation2 + $0x2e0] sm:$0xff]
    %v1291 = vld [vmem:[#allocation2 + $0x2e8] sm:$0xff]
    %v1292 = vld [vmem:[#allocation2 + $0x2f0] sm:$0xff]
    %v1293 = vld [vmem:[#allocation2 + $0x2f8] sm:$0xff]
    %v1294 = vld [vmem:[#allocation2 + $0x300] sm:$0xff]
    %v1295 = vld [vmem:[#allocation2 + $0x308] sm:$0xff]
    %v1296 = vld [vmem:[#allocation2 + $0x310] sm:$0xff]
    %v1297 = vld [vmem:[#allocation2 + $0x318] sm:$0xff]
    %v1298 = vld [vmem:[#allocation2 + $0x320] sm:$0xff]
    %v1299 = vld [vmem:[#allocation2 + $0x328] sm:$0xff]
    %v1300 = vld [vmem:[#allocation2 + $0x330] sm:$0xff]
    %v1301 = vld [vmem:[#allocation2 + $0x338] sm:$0xff]
    %v1302 = vld [vmem:[#allocation2 + $0x340] sm:$0xff]
    %v1303 = vld [vmem:[#allocation2 + $0x348] sm:$0xff]
    %v1304 = vld [vmem:[#allocation2 + $0x350] sm:$0xff]
    %v1305 = vld [vmem:[#allocation2 + $0x358] sm:$0xff]
    %v1306 = vld [vmem:[#allocation2 + $0x360] sm:$0xff]
    %v1307 = vld [vmem:[#allocation2 + $0x368] sm:$0xff]
    %v1308 = vld [vmem:[#allocation2 + $0x370] sm:$0xff]
    %v1309 = vld [vmem:[#allocation2 + $0x378] sm:$0xff]
    %v1310 = vld [vmem:[#allocation2 + $0x380] sm:$0xff]
    %v1311 = vld [vmem:[#allocation2 + $0x388] sm:$0xff]
    %v1312 = vld [vmem:[#allocation2 + $0x390] sm:$0xff]
    %v1313 = vld [vmem:[#allocation2 + $0x398] sm:$0xff]
    %v1314 = vld [vmem:[#allocation2 + $0x3a0] sm:$0xff]
    %v1315 = vld [vmem:[#allocation2 + $0x3a8] sm:$0xff]
    %v1316 = vld [vmem:[#allocation2 + $0x3b0] sm:$0xff]
    %v1317 = vld [vmem:[#allocation2 + $0x3b8] sm:$0xff]
    %v1318 = vld [vmem:[#allocation2 + $0x3c0] sm:$0xff]
    %v1319 = vld [vmem:[#allocation2 + $0x3c8] sm:$0xff]
    %v1320 = vld [vmem:[#allocation2 + $0x3d0] sm:$0xff]
    %v1321 = vld [vmem:[#allocation2 + $0x3d8] sm:$0xff]
    %v1322 = vld [vmem:[#allocation2 + $0x3e0] sm:$0xff]
    %v1323 = vld [vmem:[#allocation2 + $0x3e8] sm:$0xff]
    %v1324 = vld [vmem:[#allocation2 + $0x3f0] sm:$0xff]
    %v1325 = vld [vmem:[#allocation2 + $0x3f8] sm:$0xff]
    %v1326 = vld [vmem:[#allocation2 + $0x400] sm:$0xff]
    %v1327 = vld [vmem:[#allocation2 + $0x408] sm:$0xff]
    %v1328 = vld [vmem:[#allocation2 + $0x410] sm:$0xff]
    %v1329 = vld [vmem:[#allocation2 + $0x418] sm:$0xff]
    %v1330 = vld [vmem:[#allocation2 + $0x420] sm:$0xff]
    %v1331 = vld [vmem:[#allocation2 + $0x428] sm:$0xff]
    %v1332 = vld [vmem:[#allocation2 + $0x430] sm:$0xff]
    %v1333 = vld [vmem:[#allocation2 + $0x438] sm:$0xff]
    %v1334 = vld [vmem:[#allocation2 + $0x440] sm:$0xff]
    %v1335 = vld [vmem:[#allocation2 + $0x448] sm:$0xff]
    %v1336 = vld [vmem:[#allocation2 + $0x450] sm:$0xff]
    %v1337 = vld [vmem:[#allocation2 + $0x458] sm:$0xff]
    %v1338 = vld [vmem:[#allocation2 + $0x460] sm:$0xff]
    %v1339 = vld [vmem:[#allocation2 + $0x468] sm:$0xff]
    %v1340 = vld [vmem:[#allocation2 + $0x470] sm:$0xff]
    %v1341 = vld [vmem:[#allocation2 + $0x478] sm:$0xff]
    %v1342 = vld [vmem:[#allocation2 + $0x480] sm:$0xff]
    %v1343 = vld [vmem:[#allocation2 + $0x488] sm:$0xff]
    %v1344 = vld [vmem:[#allocation2 + $0x490] sm:$0xff]
    %v1345 = vld [vmem:[#allocation2 + $0x498] sm:$0xff]
    %v1346 = vld [vmem:[#allocation2 + $0x4a0] sm:$0xff]
    %v1347 = vld [vmem:[#allocation2 + $0x4a8] sm:$0xff]
    %v1348 = vld [vmem:[#allocation2 + $0x4b0] sm:$0xff]
    %v1349 = vld [vmem:[#allocation2 + $0x4b8] sm:$0xff]
    %v1350 = vld [vmem:[#allocation2 + $0x4c0] sm:$0xff]
    %v1351 = vld [vmem:[#allocation2 + $0x4c8] sm:$0xff]
    %v1352 = vld [vmem:[#allocation2 + $0x4d0] sm:$0xff]
    %v1353 = vld [vmem:[#allocation2 + $0x4d8] sm:$0xff]
    %v1354 = vld [vmem:[#allocation2 + $0x4e0] sm:$0xff]
    %v1355 = vld [vmem:[#allocation2 + $0x4e8] sm:$0xff]
    %v1356 = vld [vmem:[#allocation2 + $0x4f0] sm:$0xff]
    %v1357 = vld [vmem:[#allocation2 + $0x4f8] sm:$0xff]
    %v1358 = vld [vmem:[#allocation2 + $0x500] sm:$0xff]
    %v1359 = vld [vmem:[#allocation2 + $0x508] sm:$0xff]
    %v1360 = vld [vmem:[#allocation2 + $0x510] sm:$0xff]
    %v1361 = vld [vmem:[#allocation2 + $0x518] sm:$0xff]
    %v1362 = vld [vmem:[#allocation2 + $0x520] sm:$0xff]
    %v1363 = vld [vmem:[#allocation2 + $0x528] sm:$0xff]
    %v1364 = vld [vmem:[#allocation2 + $0x530] sm:$0xff]
    %v1365 = vld [vmem:[#allocation2 + $0x538] sm:$0xff]
    %v1366 = vld [vmem:[#allocation2 + $0x540] sm:$0xff]
    %v1367 = vld [vmem:[#allocation2 + $0x548] sm:$0xff]
    %v1368 = vld [vmem:[#allocation2 + $0x550] sm:$0xff]
    %v1369 = vld [vmem:[#allocation2 + $0x558] sm:$0xff]
    %v1370 = vld [vmem:[#allocation2 + $0x560] sm:$0xff]
    %v1371 = vld [vmem:[#allocation2 + $0x568] sm:$0xff]
    %v1372 = vld [vmem:[#allocation2 + $0x570] sm:$0xff]
    %v1373 = vld [vmem:[#allocation2 + $0x578] sm:$0xff]
    %v1374 = vld [vmem:[#allocation2 + $0x580] sm:$0xff]
    %v1375 = vld [vmem:[#allocation2 + $0x588] sm:$0xff]
    %v1376 = vld [vmem:[#allocation2 + $0x590] sm:$0xff]
    %v1377 = vld [vmem:[#allocation2 + $0x598] sm:$0xff]
    %v1378 = vld [vmem:[#allocation2 + $0x5a0] sm:$0xff]
    %v1379 = vld [vmem:[#allocation2 + $0x5a8] sm:$0xff]
    %v1380 = vld [vmem:[#allocation2 + $0x5b0] sm:$0xff]
    %v1381 = vld [vmem:[#allocation2 + $0x5b8] sm:$0xff]
    %v1382 = vld [vmem:[#allocation2 + $0x5c0] sm:$0xff]
    %v1383 = vld [vmem:[#allocation2 + $0x5c8] sm:$0xff]
    %v1384 = vld [vmem:[#allocation2 + $0x5d0] sm:$0xff]
    %v1385 = vld [vmem:[#allocation2 + $0x5d8] sm:$0xff]
    %v1386 = vld [vmem:[#allocation2 + $0x5e0] sm:$0xff]
    %v1387 = vld [vmem:[#allocation2 + $0x5e8] sm:$0xff]
    %v1388 = vld [vmem:[#allocation2 + $0x5f0] sm:$0xff]
    %v1389 = vld [vmem:[#allocation2 + $0x5f8] sm:$0xff]
    %v1390 = vld [vmem:[#allocation2 + $0x600] sm:$0xff]
    %v1391 = vld [vmem:[#allocation2 + $0x608] sm:$0xff]
    %v1392 = vld [vmem:[#allocation2 + $0x610] sm:$0xff]
    %v1393 = vld [vmem:[#allocation2 + $0x618] sm:$0xff]
    %v1394 = vld [vmem:[#allocation2 + $0x620] sm:$0xff]
    %v1395 = vld [vmem:[#allocation2 + $0x628] sm:$0xff]
    %v1396 = vld [vmem:[#allocation2 + $0x630] sm:$0xff]
    %v1397 = vld [vmem:[#allocation2 + $0x638] sm:$0xff]
    %v1398 = vld [vmem:[#allocation2 + $0x640] sm:$0xff]
    %v1399 = vld [vmem:[#allocation2 + $0x648] sm:$0xff]
    %v1400 = vld [vmem:[#allocation2 + $0x650] sm:$0xff]
    %v1401 = vld [vmem:[#allocation2 + $0x658] sm:$0xff]
    %v1402 = vld [vmem:[#allocation2 + $0x660] sm:$0xff]
    %v1403 = vld [vmem:[#allocation2 + $0x668] sm:$0xff]
    %v1404 = vld [vmem:[#allocation2 + $0x670] sm:$0xff]
    %v1405 = vld [vmem:[#allocation2 + $0x678] sm:$0xff]
    %v1406 = vld [vmem:[#allocation2 + $0x680] sm:$0xff]
    %v1407 = vld [vmem:[#allocation2 + $0x688] sm:$0xff]
    %v1408 = vld [vmem:[#allocation2 + $0x690] sm:$0xff]
    %v1409 = vld [vmem:[#allocation2 + $0x698] sm:$0xff]
    %v1410 = vld [vmem:[#allocation2 + $0x6a0] sm:$0xff]
    %v1411 = vld [vmem:[#allocation2 + $0x6a8] sm:$0xff]
    %v1412 = vld [vmem:[#allocation2 + $0x6b0] sm:$0xff]
    %v1413 = vld [vmem:[#allocation2 + $0x6b8] sm:$0xff]
    %v1414 = vld [vmem:[#allocation2 + $0x6c0] sm:$0xff]
    %v1415 = vld [vmem:[#allocation2 + $0x6c8] sm:$0xff]
    %v1416 = vld [vmem:[#allocation2 + $0x6d0] sm:$0xff]
    %v1417 = vld [vmem:[#allocation2 + $0x6d8] sm:$0xff]
    %v1418 = vld [vmem:[#allocation2 + $0x6e0] sm:$0xff]
    %v1419 = vld [vmem:[#allocation2 + $0x6e8] sm:$0xff]
    %v1420 = vld [vmem:[#allocation2 + $0x6f0] sm:$0xff]
    %v1421 = vld [vmem:[#allocation2 + $0x6f8] sm:$0xff]
    %v1422 = vld [vmem:[#allocation2 + $0x700] sm:$0xff]
    %v1423 = vld [vmem:[#allocation2 + $0x708] sm:$0xff]
    %v1424 = vld [vmem:[#allocation2 + $0x710] sm:$0xff]
    %v1425 = vld [vmem:[#allocation2 + $0x718] sm:$0xff]
    %v1426 = vld [vmem:[#allocation2 + $0x720] sm:$0xff]
    %v1427 = vld [vmem:[#allocation2 + $0x728] sm:$0xff]
    %v1428 = vld [vmem:[#allocation2 + $0x730] sm:$0xff]
    %v1429 = vld [vmem:[#allocation2 + $0x738] sm:$0xff]
    %v1430 = vld [vmem:[#allocation2 + $0x740] sm:$0xff]
    %v1431 = vld [vmem:[#allocation2 + $0x748] sm:$0xff]
    %v1432 = vld [vmem:[#allocation2 + $0x750] sm:$0xff]
    %v1433 = vld [vmem:[#allocation2 + $0x758] sm:$0xff]
    %v1434 = vld [vmem:[#allocation2 + $0x760] sm:$0xff]
    %v1435 = vld [vmem:[#allocation2 + $0x768] sm:$0xff]
    %v1436 = vld [vmem:[#allocation2 + $0x770] sm:$0xff]
    %v1437 = vld [vmem:[#allocation2 + $0x778] sm:$0xff]
    %v1438 = vld [vmem:[#allocation2 + $0x780] sm:$0xff]
    %v1439 = vld [vmem:[#allocation2 + $0x788] sm:$0xff]
    %v1440 = vld [vmem:[#allocation2 + $0x790] sm:$0xff]
    %v1441 = vld [vmem:[#allocation2 + $0x798] sm:$0xff]
    %v1442 = vld [vmem:[#allocation2 + $0x7a0] sm:$0xff]
    %v1443 = vld [vmem:[#allocation2 + $0x7a8] sm:$0xff]
    %v1444 = vld [vmem:[#allocation2 + $0x7b0] sm:$0xff]
    %v1445 = vld [vmem:[#allocation2 + $0x7b8] sm:$0xff]
    %v1446 = vld [vmem:[#allocation2 + $0x7c0] sm:$0xff]
    %v1447 = vld [vmem:[#allocation2 + $0x7c8] sm:$0xff]
    %v1448 = vld [vmem:[#allocation2 + $0x7d0] sm:$0xff]
    %v1449 = vld [vmem:[#allocation2 + $0x7d8] sm:$0xff]
    %v1450 = vld [vmem:[#allocation2 + $0x7e0] sm:$0xff]
    %v1451 = vld [vmem:[#allocation2 + $0x7e8] sm:$0xff]
    %v1452 = vld [vmem:[#allocation2 + $0x7f0] sm:$0xff]
    %v1453 = vld [vmem:[#allocation2 + $0x7f8] sm:$0xff]
    %v1454 = vld [vmem:[#allocation2 + $0x800] sm:$0xff]
    %v1455 = vld [vmem:[#allocation2 + $0x808] sm:$0xff]
    %v1456 = vld [vmem:[#allocation2 + $0x810] sm:$0xff]
    %v1457 = vld [vmem:[#allocation2 + $0x818] sm:$0xff]
    %v1458 = vld [vmem:[#allocation2 + $0x820] sm:$0xff]
    %v1459 = vld [vmem:[#allocation2 + $0x828] sm:$0xff]
    %v1460 = vld [vmem:[#allocation2 + $0x830] sm:$0xff]
    %v1461 = vld [vmem:[#allocation2 + $0x838] sm:$0xff]
    %v1462 = vld [vmem:[#allocation2 + $0x840] sm:$0xff]
    %v1463 = vld [vmem:[#allocation2 + $0x848] sm:$0xff]
    %v1464 = vld [vmem:[#allocation2 + $0x850] sm:$0xff]
    %v1465 = vld [vmem:[#allocation2 + $0x858] sm:$0xff]
    %v1466 = vld [vmem:[#allocation2 + $0x860] sm:$0xff]
    %v1467 = vld [vmem:[#allocation2 + $0x868] sm:$0xff]
    %v1468 = vld [vmem:[#allocation2 + $0x870] sm:$0xff]
    %v1469 = vld [vmem:[#allocation2 + $0x878] sm:$0xff]
    %v1470 = vld [vmem:[#allocation2 + $0x880] sm:$0xff]
    %v1471 = vld [vmem:[#allocation2 + $0x888] sm:$0xff]
    %v1472 = vld [vmem:[#allocation2 + $0x890] sm:$0xff]
    %v1473 = vld [vmem:[#allocation2 + $0x898] sm:$0xff]
    %v1474 = vld [vmem:[#allocation2 + $0x8a0] sm:$0xff]
    %v1475 = vld [vmem:[#allocation2 + $0x8a8] sm:$0xff]
    %v1476 = vld [vmem:[#allocation2 + $0x8b0] sm:$0xff]
    %v1477 = vld [vmem:[#allocation2 + $0x8b8] sm:$0xff]
    %v1478 = vld [vmem:[#allocation2 + $0x8c0] sm:$0xff]
    %v1479 = vld [vmem:[#allocation2 + $0x8c8] sm:$0xff]
    %v1480 = vld [vmem:[#allocation2 + $0x8d0] sm:$0xff]
    %v1481 = vld [vmem:[#allocation2 + $0x8d8] sm:$0xff]
    %v1482 = vld [vmem:[#allocation2 + $0x8e0] sm:$0xff]
    %v1483 = vld [vmem:[#allocation2 + $0x8e8] sm:$0xff]
    %v1484 = vld [vmem:[#allocation2 + $0x8f0] sm:$0xff]
    %v1485 = vld [vmem:[#allocation2 + $0x8f8] sm:$0xff]
    %v1486 = vunpack.c.l.bf16 %v1198
    %v1487 = vunpack.c.h.bf16 %v1198
    %v1488 = vunpack.c.l.bf16 %v1199
    %v1489 = vunpack.c.h.bf16 %v1199
    %v1490 = vunpack.c.l.bf16 %v1200
    %v1491 = vunpack.c.h.bf16 %v1200
    %v1492 = vunpack.c.l.bf16 %v1201
    %v1493 = vunpack.c.h.bf16 %v1201
    %v1494 = vunpack.c.l.bf16 %v1202
    %v1495 = vunpack.c.h.bf16 %v1202
    %v1496 = vunpack.c.l.bf16 %v1203
    %v1497 = vunpack.c.h.bf16 %v1203
    %v1498 = vunpack.c.l.bf16 %v1204
    %v1499 = vunpack.c.h.bf16 %v1204
    %v1500 = vunpack.c.l.bf16 %v1205
    %v1501 = vunpack.c.h.bf16 %v1205
    %v1502 = vunpack.c.l.bf16 %v1206
    %v1503 = vunpack.c.h.bf16 %v1206
    %v1504 = vunpack.c.l.bf16 %v1207
    %v1505 = vunpack.c.h.bf16 %v1207
    %v1506 = vunpack.c.l.bf16 %v1208
    %v1507 = vunpack.c.h.bf16 %v1208
    %v1508 = vunpack.c.l.bf16 %v1209
    %v1509 = vunpack.c.h.bf16 %v1209
    %v1510 = vunpack.c.l.bf16 %v1210
    %v1511 = vunpack.c.h.bf16 %v1210
    %v1512 = vunpack.c.l.bf16 %v1211
    %v1513 = vunpack.c.h.bf16 %v1211
    %v1514 = vunpack.c.l.bf16 %v1212
    %v1515 = vunpack.c.h.bf16 %v1212
    %v1516 = vunpack.c.l.bf16 %v1213
    %v1517 = vunpack.c.h.bf16 %v1213
    %v1518 = vunpack.c.l.bf16 %v1214
    %v1519 = vunpack.c.h.bf16 %v1214
    %v1520 = vunpack.c.l.bf16 %v1215
    %v1521 = vunpack.c.h.bf16 %v1215
    %v1522 = vunpack.c.l.bf16 %v1216
    %v1523 = vunpack.c.h.bf16 %v1216
    %v1524 = vunpack.c.l.bf16 %v1217
    %v1525 = vunpack.c.h.bf16 %v1217
    %v1526 = vunpack.c.l.bf16 %v1218
    %v1527 = vunpack.c.h.bf16 %v1218
    %v1528 = vunpack.c.l.bf16 %v1219
    %v1529 = vunpack.c.h.bf16 %v1219
    %v1530 = vunpack.c.l.bf16 %v1220
    %v1531 = vunpack.c.h.bf16 %v1220
    %v1532 = vunpack.c.l.bf16 %v1221
    %v1533 = vunpack.c.h.bf16 %v1221
    %v1534 = vunpack.c.l.bf16 %v1222
    %v1535 = vunpack.c.h.bf16 %v1222
    %v1536 = vunpack.c.l.bf16 %v1223
    %v1537 = vunpack.c.h.bf16 %v1223
    %v1538 = vunpack.c.l.bf16 %v1224
    %v1539 = vunpack.c.h.bf16 %v1224
    %v1540 = vunpack.c.l.bf16 %v1225
    %v1541 = vunpack.c.h.bf16 %v1225
    %v1542 = vunpack.c.l.bf16 %v1226
    %v1543 = vunpack.c.h.bf16 %v1226
    %v1544 = vunpack.c.l.bf16 %v1227
    %v1545 = vunpack.c.h.bf16 %v1227
    %v1546 = vunpack.c.l.bf16 %v1228
    %v1547 = vunpack.c.h.bf16 %v1228
    %v1548 = vunpack.c.l.bf16 %v1229
    %v1549 = vunpack.c.h.bf16 %v1229
    %v1550 = vunpack.c.l.bf16 %v1230
    %v1551 = vunpack.c.h.bf16 %v1230
    %v1552 = vunpack.c.l.bf16 %v1231
    %v1553 = vunpack.c.h.bf16 %v1231
    %v1554 = vunpack.c.l.bf16 %v1232
    %v1555 = vunpack.c.h.bf16 %v1232
    %v1556 = vunpack.c.l.bf16 %v1233
    %v1557 = vunpack.c.h.bf16 %v1233
    %v1558 = vunpack.c.l.bf16 %v1234
    %v1559 = vunpack.c.h.bf16 %v1234
    %v1560 = vunpack.c.l.bf16 %v1235
    %v1561 = vunpack.c.h.bf16 %v1235
    %v1562 = vunpack.c.l.bf16 %v1236
    %v1563 = vunpack.c.h.bf16 %v1236
    %v1564 = vunpack.c.l.bf16 %v1237
    %v1565 = vunpack.c.h.bf16 %v1237
    %v1566 = vunpack.c.l.bf16 %v1238
    %v1567 = vunpack.c.h.bf16 %v1238
    %v1568 = vunpack.c.l.bf16 %v1239
    %v1569 = vunpack.c.h.bf16 %v1239
    %v1570 = vunpack.c.l.bf16 %v1240
    %v1571 = vunpack.c.h.bf16 %v1240
    %v1572 = vunpack.c.l.bf16 %v1241
    %v1573 = vunpack.c.h.bf16 %v1241
    %v1574 = vunpack.c.l.bf16 %v1242
    %v1575 = vunpack.c.h.bf16 %v1242
    %v1576 = vunpack.c.l.bf16 %v1243
    %v1577 = vunpack.c.h.bf16 %v1243
    %v1578 = vunpack.c.l.bf16 %v1244
    %v1579 = vunpack.c.h.bf16 %v1244
    %v1580 = vunpack.c.l.bf16 %v1245
    %v1581 = vunpack.c.h.bf16 %v1245
    %v1582 = vunpack.c.l.bf16 %v1246
    %v1583 = vunpack.c.h.bf16 %v1246
    %v1584 = vunpack.c.l.bf16 %v1247
    %v1585 = vunpack.c.h.bf16 %v1247
    %v1586 = vunpack.c.l.bf16 %v1248
    %v1587 = vunpack.c.h.bf16 %v1248
    %v1588 = vunpack.c.l.bf16 %v1249
    %v1589 = vunpack.c.h.bf16 %v1249
    %v1590 = vunpack.c.l.bf16 %v1250
    %v1591 = vunpack.c.h.bf16 %v1250
    %v1592 = vunpack.c.l.bf16 %v1251
    %v1593 = vunpack.c.h.bf16 %v1251
    %v1594 = vunpack.c.l.bf16 %v1252
    %v1595 = vunpack.c.h.bf16 %v1252
    %v1596 = vunpack.c.l.bf16 %v1253
    %v1597 = vunpack.c.h.bf16 %v1253
    %v1598 = vunpack.c.l.bf16 %v1254
    %v1599 = vunpack.c.h.bf16 %v1254
    %v1600 = vunpack.c.l.bf16 %v1255
    %v1601 = vunpack.c.h.bf16 %v1255
    %v1602 = vunpack.c.l.bf16 %v1256
    %v1603 = vunpack.c.h.bf16 %v1256
    %v1604 = vunpack.c.l.bf16 %v1257
    %v1605 = vunpack.c.h.bf16 %v1257
    %v1606 = vunpack.c.l.bf16 %v1258
    %v1607 = vunpack.c.h.bf16 %v1258
    %v1608 = vunpack.c.l.bf16 %v1259
    %v1609 = vunpack.c.h.bf16 %v1259
    %v1610 = vunpack.c.l.bf16 %v1260
    %v1611 = vunpack.c.h.bf16 %v1260
    %v1612 = vunpack.c.l.bf16 %v1261
    %v1613 = vunpack.c.h.bf16 %v1261
    %v1614 = vunpack.c.l.bf16 %v1262
    %v1615 = vunpack.c.h.bf16 %v1262
    %v1616 = vunpack.c.l.bf16 %v1263
    %v1617 = vunpack.c.h.bf16 %v1263
    %v1618 = vunpack.c.l.bf16 %v1264
    %v1619 = vunpack.c.h.bf16 %v1264
    %v1620 = vunpack.c.l.bf16 %v1265
    %v1621 = vunpack.c.h.bf16 %v1265
    %v1622 = vunpack.c.l.bf16 %v1266
    %v1623 = vunpack.c.h.bf16 %v1266
    %v1624 = vunpack.c.l.bf16 %v1267
    %v1625 = vunpack.c.h.bf16 %v1267
    %v1626 = vunpack.c.l.bf16 %v1268
    %v1627 = vunpack.c.h.bf16 %v1268
    %v1628 = vunpack.c.l.bf16 %v1269
    %v1629 = vunpack.c.h.bf16 %v1269
    %v1630 = vunpack.c.l.bf16 %v1270
    %v1631 = vunpack.c.h.bf16 %v1270
    %v1632 = vunpack.c.l.bf16 %v1271
    %v1633 = vunpack.c.h.bf16 %v1271
    %v1634 = vunpack.c.l.bf16 %v1272
    %v1635 = vunpack.c.h.bf16 %v1272
    %v1636 = vunpack.c.l.bf16 %v1273
    %v1637 = vunpack.c.h.bf16 %v1273
    %v1638 = vunpack.c.l.bf16 %v1274
    %v1639 = vunpack.c.h.bf16 %v1274
    %v1640 = vunpack.c.l.bf16 %v1275
    %v1641 = vunpack.c.h.bf16 %v1275
    %v1642 = vunpack.c.l.bf16 %v1276
    %v1643 = vunpack.c.h.bf16 %v1276
    %v1644 = vunpack.c.l.bf16 %v1277
    %v1645 = vunpack.c.h.bf16 %v1277
    %v1646 = vunpack.c.l.bf16 %v1278
    %v1647 = vunpack.c.h.bf16 %v1278
    %v1648 = vunpack.c.l.bf16 %v1279
    %v1649 = vunpack.c.h.bf16 %v1279
    %v1650 = vunpack.c.l.bf16 %v1280
    %v1651 = vunpack.c.h.bf16 %v1280
    %v1652 = vunpack.c.l.bf16 %v1281
    %v1653 = vunpack.c.h.bf16 %v1281
    %v1654 = vunpack.c.l.bf16 %v1282
    %v1655 = vunpack.c.h.bf16 %v1282
    %v1656 = vunpack.c.l.bf16 %v1283
    %v1657 = vunpack.c.h.bf16 %v1283
    %v1658 = vunpack.c.l.bf16 %v1284
    %v1659 = vunpack.c.h.bf16 %v1284
    %v1660 = vunpack.c.l.bf16 %v1285
    %v1661 = vunpack.c.h.bf16 %v1285
    %v1662 = vunpack.c.l.bf16 %v1286
    %v1663 = vunpack.c.h.bf16 %v1286
    %v1664 = vunpack.c.l.bf16 %v1287
    %v1665 = vunpack.c.h.bf16 %v1287
    %v1666 = vunpack.c.l.bf16 %v1288
    %v1667 = vunpack.c.h.bf16 %v1288
    %v1668 = vunpack.c.l.bf16 %v1289
    %v1669 = vunpack.c.h.bf16 %v1289
    %v1670 = vunpack.c.l.bf16 %v1290
    %v1671 = vunpack.c.h.bf16 %v1290
    %v1672 = vunpack.c.l.bf16 %v1291
    %v1673 = vunpack.c.h.bf16 %v1291
    %v1674 = vunpack.c.l.bf16 %v1292
    %v1675 = vunpack.c.h.bf16 %v1292
    %v1676 = vunpack.c.l.bf16 %v1293
    %v1677 = vunpack.c.h.bf16 %v1293
    %v1678 = vunpack.c.l.bf16 %v1294
    %v1679 = vunpack.c.h.bf16 %v1294
    %v1680 = vunpack.c.l.bf16 %v1295
    %v1681 = vunpack.c.h.bf16 %v1295
    %v1682 = vunpack.c.l.bf16 %v1296
    %v1683 = vunpack.c.h.bf16 %v1296
    %v1684 = vunpack.c.l.bf16 %v1297
    %v1685 = vunpack.c.h.bf16 %v1297
    %v1686 = vunpack.c.l.bf16 %v1298
    %v1687 = vunpack.c.h.bf16 %v1298
    %v1688 = vunpack.c.l.bf16 %v1299
    %v1689 = vunpack.c.h.bf16 %v1299
    %v1690 = vunpack.c.l.bf16 %v1300
    %v1691 = vunpack.c.h.bf16 %v1300
    %v1692 = vunpack.c.l.bf16 %v1301
    %v1693 = vunpack.c.h.bf16 %v1301
    %v1694 = vunpack.c.l.bf16 %v1302
    %v1695 = vunpack.c.h.bf16 %v1302
    %v1696 = vunpack.c.l.bf16 %v1303
    %v1697 = vunpack.c.h.bf16 %v1303
    %v1698 = vunpack.c.l.bf16 %v1304
    %v1699 = vunpack.c.h.bf16 %v1304
    %v1700 = vunpack.c.l.bf16 %v1305
    %v1701 = vunpack.c.h.bf16 %v1305
    %v1702 = vunpack.c.l.bf16 %v1306
    %v1703 = vunpack.c.h.bf16 %v1306
    %v1704 = vunpack.c.l.bf16 %v1307
    %v1705 = vunpack.c.h.bf16 %v1307
    %v1706 = vunpack.c.l.bf16 %v1308
    %v1707 = vunpack.c.h.bf16 %v1308
    %v1708 = vunpack.c.l.bf16 %v1309
    %v1709 = vunpack.c.h.bf16 %v1309
    %v1710 = vunpack.c.l.bf16 %v1310
    %v1711 = vunpack.c.h.bf16 %v1310
    %v1712 = vunpack.c.l.bf16 %v1311
    %v1713 = vunpack.c.h.bf16 %v1311
    %v1714 = vunpack.c.l.bf16 %v1312
    %v1715 = vunpack.c.h.bf16 %v1312
    %v1716 = vunpack.c.l.bf16 %v1313
    %v1717 = vunpack.c.h.bf16 %v1313
    %v1718 = vunpack.c.l.bf16 %v1314
    %v1719 = vunpack.c.h.bf16 %v1314
    %v1720 = vunpack.c.l.bf16 %v1315
    %v1721 = vunpack.c.h.bf16 %v1315
    %v1722 = vunpack.c.l.bf16 %v1316
    %v1723 = vunpack.c.h.bf16 %v1316
    %v1724 = vunpack.c.l.bf16 %v1317
    %v1725 = vunpack.c.h.bf16 %v1317
    %v1726 = vunpack.c.l.bf16 %v1318
    %v1727 = vunpack.c.h.bf16 %v1318
    %v1728 = vunpack.c.l.bf16 %v1319
    %v1729 = vunpack.c.h.bf16 %v1319
    %v1730 = vunpack.c.l.bf16 %v1320
    %v1731 = vunpack.c.h.bf16 %v1320
    %v1732 = vunpack.c.l.bf16 %v1321
    %v1733 = vunpack.c.h.bf16 %v1321
    %v1734 = vunpack.c.l.bf16 %v1322
    %v1735 = vunpack.c.h.bf16 %v1322
    %v1736 = vunpack.c.l.bf16 %v1323
    %v1737 = vunpack.c.h.bf16 %v1323
    %v1738 = vunpack.c.l.bf16 %v1324
    %v1739 = vunpack.c.h.bf16 %v1324
    %v1740 = vunpack.c.l.bf16 %v1325
    %v1741 = vunpack.c.h.bf16 %v1325
    %v1742 = vunpack.c.l.bf16 %v1326
    %v1743 = vunpack.c.h.bf16 %v1326
    %v1744 = vunpack.c.l.bf16 %v1327
    %v1745 = vunpack.c.h.bf16 %v1327
    %v1746 = vunpack.c.l.bf16 %v1328
    %v1747 = vunpack.c.h.bf16 %v1328
    %v1748 = vunpack.c.l.bf16 %v1329
    %v1749 = vunpack.c.h.bf16 %v1329
    %v1750 = vunpack.c.l.bf16 %v1330
    %v1751 = vunpack.c.h.bf16 %v1330
    %v1752 = vunpack.c.l.bf16 %v1331
    %v1753 = vunpack.c.h.bf16 %v1331
    %v1754 = vunpack.c.l.bf16 %v1332
    %v1755 = vunpack.c.h.bf16 %v1332
    %v1756 = vunpack.c.l.bf16 %v1333
    %v1757 = vunpack.c.h.bf16 %v1333
    %v1758 = vunpack.c.l.bf16 %v1334
    %v1759 = vunpack.c.h.bf16 %v1334
    %v1760 = vunpack.c.l.bf16 %v1335
    %v1761 = vunpack.c.h.bf16 %v1335
    %v1762 = vunpack.c.l.bf16 %v1336
    %v1763 = vunpack.c.h.bf16 %v1336
    %v1764 = vunpack.c.l.bf16 %v1337
    %v1765 = vunpack.c.h.bf16 %v1337
    %v1766 = vunpack.c.l.bf16 %v1338
    %v1767 = vunpack.c.h.bf16 %v1338
    %v1768 = vunpack.c.l.bf16 %v1339
    %v1769 = vunpack.c.h.bf16 %v1339
    %v1770 = vunpack.c.l.bf16 %v1340
    %v1771 = vunpack.c.h.bf16 %v1340
    %v1772 = vunpack.c.l.bf16 %v1341
    %v1773 = vunpack.c.h.bf16 %v1341
    %v1774 = vunpack.c.l.bf16 %v1342
    %v1775 = vunpack.c.h.bf16 %v1342
    %v1776 = vunpack.c.l.bf16 %v1343
    %v1777 = vunpack.c.h.bf16 %v1343
    %v1778 = vunpack.c.l.bf16 %v1344
    %v1779 = vunpack.c.h.bf16 %v1344
    %v1780 = vunpack.c.l.bf16 %v1345
    %v1781 = vunpack.c.h.bf16 %v1345
    %v1782 = vunpack.c.l.bf16 %v1346
    %v1783 = vunpack.c.h.bf16 %v1346
    %v1784 = vunpack.c.l.bf16 %v1347
    %v1785 = vunpack.c.h.bf16 %v1347
    %v1786 = vunpack.c.l.bf16 %v1348
    %v1787 = vunpack.c.h.bf16 %v1348
    %v1788 = vunpack.c.l.bf16 %v1349
    %v1789 = vunpack.c.h.bf16 %v1349
    %v1790 = vunpack.c.l.bf16 %v1350
    %v1791 = vunpack.c.h.bf16 %v1350
    %v1792 = vunpack.c.l.bf16 %v1351
    %v1793 = vunpack.c.h.bf16 %v1351
    %v1794 = vunpack.c.l.bf16 %v1352
    %v1795 = vunpack.c.h.bf16 %v1352
    %v1796 = vunpack.c.l.bf16 %v1353
    %v1797 = vunpack.c.h.bf16 %v1353
    %v1798 = vunpack.c.l.bf16 %v1354
    %v1799 = vunpack.c.h.bf16 %v1354
    %v1800 = vunpack.c.l.bf16 %v1355
    %v1801 = vunpack.c.h.bf16 %v1355
    %v1802 = vunpack.c.l.bf16 %v1356
    %v1803 = vunpack.c.h.bf16 %v1356
    %v1804 = vunpack.c.l.bf16 %v1357
    %v1805 = vunpack.c.h.bf16 %v1357
    %v1806 = vunpack.c.l.bf16 %v1358
    %v1807 = vunpack.c.h.bf16 %v1358
    %v1808 = vunpack.c.l.bf16 %v1359
    %v1809 = vunpack.c.h.bf16 %v1359
    %v1810 = vunpack.c.l.bf16 %v1360
    %v1811 = vunpack.c.h.bf16 %v1360
    %v1812 = vunpack.c.l.bf16 %v1361
    %v1813 = vunpack.c.h.bf16 %v1361
    %v1814 = vunpack.c.l.bf16 %v1362
    %v1815 = vunpack.c.h.bf16 %v1362
    %v1816 = vunpack.c.l.bf16 %v1363
    %v1817 = vunpack.c.h.bf16 %v1363
    %v1818 = vunpack.c.l.bf16 %v1364
    %v1819 = vunpack.c.h.bf16 %v1364
    %v1820 = vunpack.c.l.bf16 %v1365
    %v1821 = vunpack.c.h.bf16 %v1365
    %v1822 = vunpack.c.l.bf16 %v1366
    %v1823 = vunpack.c.h.bf16 %v1366
    %v1824 = vunpack.c.l.bf16 %v1367
    %v1825 = vunpack.c.h.bf16 %v1367
    %v1826 = vunpack.c.l.bf16 %v1368
    %v1827 = vunpack.c.h.bf16 %v1368
    %v1828 = vunpack.c.l.bf16 %v1369
    %v1829 = vunpack.c.h.bf16 %v1369
    %v1830 = vunpack.c.l.bf16 %v1370
    %v1831 = vunpack.c.h.bf16 %v1370
    %v1832 = vunpack.c.l.bf16 %v1371
    %v1833 = vunpack.c.h.bf16 %v1371
    %v1834 = vunpack.c.l.bf16 %v1372
    %v1835 = vunpack.c.h.bf16 %v1372
    %v1836 = vunpack.c.l.bf16 %v1373
    %v1837 = vunpack.c.h.bf16 %v1373
    %v1838 = vunpack.c.l.bf16 %v1374
    %v1839 = vunpack.c.h.bf16 %v1374
    %v1840 = vunpack.c.l.bf16 %v1375
    %v1841 = vunpack.c.h.bf16 %v1375
    %v1842 = vunpack.c.l.bf16 %v1376
    %v1843 = vunpack.c.h.bf16 %v1376
    %v1844 = vunpack.c.l.bf16 %v1377
    %v1845 = vunpack.c.h.bf16 %v1377
    %v1846 = vunpack.c.l.bf16 %v1378
    %v1847 = vunpack.c.h.bf16 %v1378
    %v1848 = vunpack.c.l.bf16 %v1379
    %v1849 = vunpack.c.h.bf16 %v1379
    %v1850 = vunpack.c.l.bf16 %v1380
    %v1851 = vunpack.c.h.bf16 %v1380
    %v1852 = vunpack.c.l.bf16 %v1381
    %v1853 = vunpack.c.h.bf16 %v1381
    %v1854 = vunpack.c.l.bf16 %v1382
    %v1855 = vunpack.c.h.bf16 %v1382
    %v1856 = vunpack.c.l.bf16 %v1383
    %v1857 = vunpack.c.h.bf16 %v1383
    %v1858 = vunpack.c.l.bf16 %v1384
    %v1859 = vunpack.c.h.bf16 %v1384
    %v1860 = vunpack.c.l.bf16 %v1385
    %v1861 = vunpack.c.h.bf16 %v1385
    %v1862 = vunpack.c.l.bf16 %v1386
    %v1863 = vunpack.c.h.bf16 %v1386
    %v1864 = vunpack.c.l.bf16 %v1387
    %v1865 = vunpack.c.h.bf16 %v1387
    %v1866 = vunpack.c.l.bf16 %v1388
    %v1867 = vunpack.c.h.bf16 %v1388
    %v1868 = vunpack.c.l.bf16 %v1389
    %v1869 = vunpack.c.h.bf16 %v1389
    %v1870 = vunpack.c.l.bf16 %v1390
    %v1871 = vunpack.c.h.bf16 %v1390
    %v1872 = vunpack.c.l.bf16 %v1391
    %v1873 = vunpack.c.h.bf16 %v1391
    %v1874 = vunpack.c.l.bf16 %v1392
    %v1875 = vunpack.c.h.bf16 %v1392
    %v1876 = vunpack.c.l.bf16 %v1393
    %v1877 = vunpack.c.h.bf16 %v1393
    %v1878 = vunpack.c.l.bf16 %v1394
    %v1879 = vunpack.c.h.bf16 %v1394
    %v1880 = vunpack.c.l.bf16 %v1395
    %v1881 = vunpack.c.h.bf16 %v1395
    %v1882 = vunpack.c.l.bf16 %v1396
    %v1883 = vunpack.c.h.bf16 %v1396
    %v1884 = vunpack.c.l.bf16 %v1397
    %v1885 = vunpack.c.h.bf16 %v1397
    %v1886 = vunpack.c.l.bf16 %v1398
    %v1887 = vunpack.c.h.bf16 %v1398
    %v1888 = vunpack.c.l.bf16 %v1399
    %v1889 = vunpack.c.h.bf16 %v1399
    %v1890 = vunpack.c.l.bf16 %v1400
    %v1891 = vunpack.c.h.bf16 %v1400
    %v1892 = vunpack.c.l.bf16 %v1401
    %v1893 = vunpack.c.h.bf16 %v1401
    %v1894 = vunpack.c.l.bf16 %v1402
    %v1895 = vunpack.c.h.bf16 %v1402
    %v1896 = vunpack.c.l.bf16 %v1403
    %v1897 = vunpack.c.h.bf16 %v1403
    %v1898 = vunpack.c.l.bf16 %v1404
    %v1899 = vunpack.c.h.bf16 %v1404
    %v1900 = vunpack.c.l.bf16 %v1405
    %v1901 = vunpack.c.h.bf16 %v1405
    %v1902 = vunpack.c.l.bf16 %v1406
    %v1903 = vunpack.c.h.bf16 %v1406
    %v1904 = vunpack.c.l.bf16 %v1407
    %v1905 = vunpack.c.h.bf16 %v1407
    %v1906 = vunpack.c.l.bf16 %v1408
    %v1907 = vunpack.c.h.bf16 %v1408
    %v1908 = vunpack.c.l.bf16 %v1409
    %v1909 = vunpack.c.h.bf16 %v1409
    %v1910 = vunpack.c.l.bf16 %v1410
    %v1911 = vunpack.c.h.bf16 %v1410
    %v1912 = vunpack.c.l.bf16 %v1411
    %v1913 = vunpack.c.h.bf16 %v1411
    %v1914 = vunpack.c.l.bf16 %v1412
    %v1915 = vunpack.c.h.bf16 %v1412
    %v1916 = vunpack.c.l.bf16 %v1413
    %v1917 = vunpack.c.h.bf16 %v1413
    %v1918 = vunpack.c.l.bf16 %v1414
    %v1919 = vunpack.c.h.bf16 %v1414
    %v1920 = vunpack.c.l.bf16 %v1415
    %v1921 = vunpack.c.h.bf16 %v1415
    %v1922 = vunpack.c.l.bf16 %v1416
    %v1923 = vunpack.c.h.bf16 %v1416
    %v1924 = vunpack.c.l.bf16 %v1417
    %v1925 = vunpack.c.h.bf16 %v1417
    %v1926 = vunpack.c.l.bf16 %v1418
    %v1927 = vunpack.c.h.bf16 %v1418
    %v1928 = vunpack.c.l.bf16 %v1419
    %v1929 = vunpack.c.h.bf16 %v1419
    %v1930 = vunpack.c.l.bf16 %v1420
    %v1931 = vunpack.c.h.bf16 %v1420
    %v1932 = vunpack.c.l.bf16 %v1421
    %v1933 = vunpack.c.h.bf16 %v1421
    %v1934 = vunpack.c.l.bf16 %v1422
    %v1935 = vunpack.c.h.bf16 %v1422
    %v1936 = vunpack.c.l.bf16 %v1423
    %v1937 = vunpack.c.h.bf16 %v1423
    %v1938 = vunpack.c.l.bf16 %v1424
    %v1939 = vunpack.c.h.bf16 %v1424
    %v1940 = vunpack.c.l.bf16 %v1425
    %v1941 = vunpack.c.h.bf16 %v1425
    %v1942 = vunpack.c.l.bf16 %v1426
    %v1943 = vunpack.c.h.bf16 %v1426
    %v1944 = vunpack.c.l.bf16 %v1427
    %v1945 = vunpack.c.h.bf16 %v1427
    %v1946 = vunpack.c.l.bf16 %v1428
    %v1947 = vunpack.c.h.bf16 %v1428
    %v1948 = vunpack.c.l.bf16 %v1429
    %v1949 = vunpack.c.h.bf16 %v1429
    %v1950 = vunpack.c.l.bf16 %v1430
    %v1951 = vunpack.c.h.bf16 %v1430
    %v1952 = vunpack.c.l.bf16 %v1431
    %v1953 = vunpack.c.h.bf16 %v1431
    %v1954 = vunpack.c.l.bf16 %v1432
    %v1955 = vunpack.c.h.bf16 %v1432
    %v1956 = vunpack.c.l.bf16 %v1433
    %v1957 = vunpack.c.h.bf16 %v1433
    %v1958 = vunpack.c.l.bf16 %v1434
    %v1959 = vunpack.c.h.bf16 %v1434
    %v1960 = vunpack.c.l.bf16 %v1435
    %v1961 = vunpack.c.h.bf16 %v1435
    %v1962 = vunpack.c.l.bf16 %v1436
    %v1963 = vunpack.c.h.bf16 %v1436
    %v1964 = vunpack.c.l.bf16 %v1437
    %v1965 = vunpack.c.h.bf16 %v1437
    %v1966 = vunpack.c.l.bf16 %v1438
    %v1967 = vunpack.c.h.bf16 %v1438
    %v1968 = vunpack.c.l.bf16 %v1439
    %v1969 = vunpack.c.h.bf16 %v1439
    %v1970 = vunpack.c.l.bf16 %v1440
    %v1971 = vunpack.c.h.bf16 %v1440
    %v1972 = vunpack.c.l.bf16 %v1441
    %v1973 = vunpack.c.h.bf16 %v1441
    %v1974 = vunpack.c.l.bf16 %v1442
    %v1975 = vunpack.c.h.bf16 %v1442
    %v1976 = vunpack.c.l.bf16 %v1443
    %v1977 = vunpack.c.h.bf16 %v1443
    %v1978 = vunpack.c.l.bf16 %v1444
    %v1979 = vunpack.c.h.bf16 %v1444
    %v1980 = vunpack.c.l.bf16 %v1445
    %v1981 = vunpack.c.h.bf16 %v1445
    %v1982 = vunpack.c.l.bf16 %v1446
    %v1983 = vunpack.c.h.bf16 %v1446
    %v1984 = vunpack.c.l.bf16 %v1447
    %v1985 = vunpack.c.h.bf16 %v1447
    %v1986 = vunpack.c.l.bf16 %v1448
    %v1987 = vunpack.c.h.bf16 %v1448
    %v1988 = vunpack.c.l.bf16 %v1449
    %v1989 = vunpack.c.h.bf16 %v1449
    %v1990 = vunpack.c.l.bf16 %v1450
    %v1991 = vunpack.c.h.bf16 %v1450
    %v1992 = vunpack.c.l.bf16 %v1451
    %v1993 = vunpack.c.h.bf16 %v1451
    %v1994 = vunpack.c.l.bf16 %v1452
    %v1995 = vunpack.c.h.bf16 %v1452
    %v1996 = vunpack.c.l.bf16 %v1453
    %v1997 = vunpack.c.h.bf16 %v1453
    %v1998 = vunpack.c.l.bf16 %v1454
    %v1999 = vunpack.c.h.bf16 %v1454
    %v2000 = vunpack.c.l.bf16 %v1455
    %v2001 = vunpack.c.h.bf16 %v1455
    %v2002 = vunpack.c.l.bf16 %v1456
    %v2003 = vunpack.c.h.bf16 %v1456
    %v2004 = vunpack.c.l.bf16 %v1457
    %v2005 = vunpack.c.h.bf16 %v1457
    %v2006 = vunpack.c.l.bf16 %v1458
    %v2007 = vunpack.c.h.bf16 %v1458
    %v2008 = vunpack.c.l.bf16 %v1459
    %v2009 = vunpack.c.h.bf16 %v1459
    %v2010 = vunpack.c.l.bf16 %v1460
    %v2011 = vunpack.c.h.bf16 %v1460
    %v2012 = vunpack.c.l.bf16 %v1461
    %v2013 = vunpack.c.h.bf16 %v1461
    %v2014 = vunpack.c.l.bf16 %v1462
    %v2015 = vunpack.c.h.bf16 %v1462
    %v2016 = vunpack.c.l.bf16 %v1463
    %v2017 = vunpack.c.h.bf16 %v1463
    %v2018 = vunpack.c.l.bf16 %v1464
    %v2019 = vunpack.c.h.bf16 %v1464
    %v2020 = vunpack.c.l.bf16 %v1465
    %v2021 = vunpack.c.h.bf16 %v1465
    %v2022 = vunpack.c.l.bf16 %v1466
    %v2023 = vunpack.c.h.bf16 %v1466
    %v2024 = vunpack.c.l.bf16 %v1467
    %v2025 = vunpack.c.h.bf16 %v1467
    %v2026 = vunpack.c.l.bf16 %v1468
    %v2027 = vunpack.c.h.bf16 %v1468
    %v2028 = vunpack.c.l.bf16 %v1469
    %v2029 = vunpack.c.h.bf16 %v1469
    %v2030 = vunpack.c.l.bf16 %v1470
    %v2031 = vunpack.c.h.bf16 %v1470
    %v2032 = vunpack.c.l.bf16 %v1471
    %v2033 = vunpack.c.h.bf16 %v1471
    %v2034 = vunpack.c.l.bf16 %v1472
    %v2035 = vunpack.c.h.bf16 %v1472
    %v2036 = vunpack.c.l.bf16 %v1473
    %v2037 = vunpack.c.h.bf16 %v1473
    %v2038 = vunpack.c.l.bf16 %v1474
    %v2039 = vunpack.c.h.bf16 %v1474
    %v2040 = vunpack.c.l.bf16 %v1475
    %v2041 = vunpack.c.h.bf16 %v1475
    %v2042 = vunpack.c.l.bf16 %v1476
    %v2043 = vunpack.c.h.bf16 %v1476
    %v2044 = vunpack.c.l.bf16 %v1477
    %v2045 = vunpack.c.h.bf16 %v1477
    %v2046 = vunpack.c.l.bf16 %v1478
    %v2047 = vunpack.c.h.bf16 %v1478
    %v2048 = vunpack.c.l.bf16 %v1479
    %v2049 = vunpack.c.h.bf16 %v1479
    %v2050 = vunpack.c.l.bf16 %v1480
    %v2051 = vunpack.c.h.bf16 %v1480
    %v2052 = vunpack.c.l.bf16 %v1481
    %v2053 = vunpack.c.h.bf16 %v1481
    %v2054 = vunpack.c.l.bf16 %v1482
    %v2055 = vunpack.c.h.bf16 %v1482
    %v2056 = vunpack.c.l.bf16 %v1483
    %v2057 = vunpack.c.h.bf16 %v1483
    %v2058 = vunpack.c.l.bf16 %v1484
    %v2059 = vunpack.c.h.bf16 %v1484
    %v2060 = vunpack.c.l.bf16 %v1485
    %v2061 = vunpack.c.h.bf16 %v1485
    %2062 = vmatpush.msra.mxu0 %v1576
    %2063 = vmatpush.msra.mxu0 %v1570
    %2064 = vmatpush.msra.mxu0 %v1564
    %2065 = vmatpush.msra.mxu0 %v1558
    %2066 = vmatpush.msra.mxu0 %v1552
    %2067 = vmatpush.msra.mxu0 %v1546
    %2068 = vmatpush.msra.mxu0 %v1540
    %2069 = vmatpush.msra.mxu0 %v1534
    %2070 = vmatpush.msra.mxu0 %v1528
    %2071 = vmatpush.msra.mxu0 %v1522
    %2072 = vmatpush.msra.mxu0 %v1516
    %2073 = vmatpush.msra.mxu0 %v1510
    %2074 = vmatpush.msra.mxu0 %v1504
    %2075 = vmatpush.msra.mxu0 %v1498
    %2076 = vmatpush.msra.mxu0 %v1492
    %2077 = vmatpush.msra.mxu0 %v1486
    %2078 = vmatmul.f32.gmra.mxu0 %v1188
    %v2079 = vpop.f32.mrf.mxu0
    %v2080 = vadd.f32 0.0, %v2079
    %2081 = vdwg.mxu0
    %2082 = vmatpush.msra.mxu0 %v1672
    %2083 = vmatpush.msra.mxu0 %v1666
    %2084 = vmatpush.msra.mxu0 %v1660
    %2085 = vmatpush.msra.mxu0 %v1654
    %2086 = vmatpush.msra.mxu0 %v1648
    %2087 = vmatpush.msra.mxu0 %v1642
    %2088 = vmatpush.msra.mxu0 %v1636
    %2089 = vmatpush.msra.mxu0 %v1630
    %2090 = vmatpush.msra.mxu0 %v1624
    %2091 = vmatpush.msra.mxu0 %v1618
    %2092 = vmatpush.msra.mxu0 %v1612
    %2093 = vmatpush.msra.mxu0 %v1606
    %2094 = vmatpush.msra.mxu0 %v1600
    %2095 = vmatpush.msra.mxu0 %v1594
    %2096 = vmatpush.msra.mxu0 %v1588
    %2097 = vmatpush.msra.mxu0 %v1582
    %2098 = vmatmul.f32.gmra.mxu0 %v1189
    %v2099 = vpop.f32.mrf.mxu0
    %v2100 = vadd.f32 %v2080, %v2099
    %2101 = vdwg.mxu0
    %2102 = vmatpush.msra.mxu0 %v1768
    %2103 = vmatpush.msra.mxu0 %v1762
    %2104 = vmatpush.msra.mxu0 %v1756
    %2105 = vmatpush.msra.mxu0 %v1750
    %2106 = vmatpush.msra.mxu0 %v1744
    %2107 = vmatpush.msra.mxu0 %v1738
    %2108 = vmatpush.msra.mxu0 %v1732
    %2109 = vmatpush.msra.mxu0 %v1726
    %2110 = vmatpush.msra.mxu0 %v1720
    %2111 = vmatpush.msra.mxu0 %v1714
    %2112 = vmatpush.msra.mxu0 %v1708
    %2113 = vmatpush.msra.mxu0 %v1702
    %2114 = vmatpush.msra.mxu0 %v1696
    %2115 = vmatpush.msra.mxu0 %v1690
    %2116 = vmatpush.msra.mxu0 %v1684
    %2117 = vmatpush.msra.mxu0 %v1678
    %2118 = vmatmul.f32.gmra.mxu0 %v1190
    %v2119 = vpop.f32.mrf.mxu0
    %v2120 = vadd.f32 %v2100, %v2119
    %2121 = vdwg.mxu0
    %2122 = vmatpush.msra.mxu0 %v1864
    %2123 = vmatpush.msra.mxu0 %v1858
    %2124 = vmatpush.msra.mxu0 %v1852
    %2125 = vmatpush.msra.mxu0 %v1846
    %2126 = vmatpush.msra.mxu0 %v1840
    %2127 = vmatpush.msra.mxu0 %v1834
    %2128 = vmatpush.msra.mxu0 %v1828
    %2129 = vmatpush.msra.mxu0 %v1822
    %2130 = vmatpush.msra.mxu0 %v1816
    %2131 = vmatpush.msra.mxu0 %v1810
    %2132 = vmatpush.msra.mxu0 %v1804
    %2133 = vmatpush.msra.mxu0 %v1798
    %2134 = vmatpush.msra.mxu0 %v1792
    %2135 = vmatpush.msra.mxu0 %v1786
    %2136 = vmatpush.msra.mxu0 %v1780
    %2137 = vmatpush.msra.mxu0 %v1774
    %2138 = vmatmul.f32.gmra.mxu0 %v1191
    %v2139 = vpop.f32.mrf.mxu0
    %v2140 = vadd.f32 %v2120, %v2139
    %2141 = vdwg.mxu0
    %2142 = vmatpush.msra.mxu0 %v1960
    %2143 = vmatpush.msra.mxu0 %v1954
    %2144 = vmatpush.msra.mxu0 %v1948
    %2145 = vmatpush.msra.mxu0 %v1942
    %2146 = vmatpush.msra.mxu0 %v1936
    %2147 = vmatpush.msra.mxu0 %v1930
    %2148 = vmatpush.msra.mxu0 %v1924
    %2149 = vmatpush.msra.mxu0 %v1918
    %2150 = vmatpush.msra.mxu0 %v1912
    %2151 = vmatpush.msra.mxu0 %v1906
    %2152 = vmatpush.msra.mxu0 %v1900
    %2153 = vmatpush.msra.mxu0 %v1894
    %2154 = vmatpush.msra.mxu0 %v1888
    %2155 = vmatpush.msra.mxu0 %v1882
    %2156 = vmatpush.msra.mxu0 %v1876
    %2157 = vmatpush.msra.mxu0 %v1870
    %2158 = vmatmul.f32.gmra.mxu0 %v1192
    %v2159 = vpop.f32.mrf.mxu0
    %v2160 = vadd.f32 %v2140, %v2159
    %2161 = vdwg.mxu0
    %2162 = vmatpush.msra.mxu0 %v2056
    %2163 = vmatpush.msra.mxu0 %v2050
    %2164 = vmatpush.msra.mxu0 %v2044
    %2165 = vmatpush.msra.mxu0 %v2038
    %2166 = vmatpush.msra.mxu0 %v2032
    %2167 = vmatpush.msra.mxu0 %v2026
    %2168 = vmatpush.msra.mxu0 %v2020
    %2169 = vmatpush.msra.mxu0 %v2014
    %2170 = vmatpush.msra.mxu0 %v2008
    %2171 = vmatpush.msra.mxu0 %v2002
    %2172 = vmatpush.msra.mxu0 %v1996
    %2173 = vmatpush.msra.mxu0 %v1990
    %2174 = vmatpush.msra.mxu0 %v1984
    %2175 = vmatpush.msra.mxu0 %v1978
    %2176 = vmatpush.msra.mxu0 %v1972
    %2177 = vmatpush.msra.mxu0 %v1966
    %2178 = vmatmul.f32.gmra.mxu0 %v1193
    %v2179 = vpop.f32.mrf.mxu0
    %v2180 = vadd.f32 %v2160, %v2179
    %2181 = vdwg.mxu0
    %2182 = vmatpush.msra.mxu0 %v1577
    %2183 = vmatpush.msra.mxu0 %v1571
    %2184 = vmatpush.msra.mxu0 %v1565
    %2185 = vmatpush.msra.mxu0 %v1559
    %2186 = vmatpush.msra.mxu0 %v1553
    %2187 = vmatpush.msra.mxu0 %v1547
    %2188 = vmatpush.msra.mxu0 %v1541
    %2189 = vmatpush.msra.mxu0 %v1535
    %2190 = vmatpush.msra.mxu0 %v1529
    %2191 = vmatpush.msra.mxu0 %v1523
    %2192 = vmatpush.msra.mxu0 %v1517
    %2193 = vmatpush.msra.mxu0 %v1511
    %2194 = vmatpush.msra.mxu0 %v1505
    %2195 = vmatpush.msra.mxu0 %v1499
    %2196 = vmatpush.msra.mxu0 %v1493
    %2197 = vmatpush.msra.mxu0 %v1487
    %2198 = vmatmul.f32.gmra.mxu0 %v1188
    %v2199 = vpop.f32.mrf.mxu0
    %v2200 = vadd.f32 0.0, %v2199
    %2201 = vdwg.mxu0
    %2202 = vmatpush.msra.mxu0 %v1673
    %2203 = vmatpush.msra.mxu0 %v1667
    %2204 = vmatpush.msra.mxu0 %v1661
    %2205 = vmatpush.msra.mxu0 %v1655
    %2206 = vmatpush.msra.mxu0 %v1649
    %2207 = vmatpush.msra.mxu0 %v1643
    %2208 = vmatpush.msra.mxu0 %v1637
    %2209 = vmatpush.msra.mxu0 %v1631
    %2210 = vmatpush.msra.mxu0 %v1625
    %2211 = vmatpush.msra.mxu0 %v1619
    %2212 = vmatpush.msra.mxu0 %v1613
    %2213 = vmatpush.msra.mxu0 %v1607
    %2214 = vmatpush.msra.mxu0 %v1601
    %2215 = vmatpush.msra.mxu0 %v1595
    %2216 = vmatpush.msra.mxu0 %v1589
    %2217 = vmatpush.msra.mxu0 %v1583
    %2218 = vmatmul.f32.gmra.mxu0 %v1189
    %v2219 = vpop.f32.mrf.mxu0
    %v2220 = vadd.f32 %v2200, %v2219
    %2221 = vdwg.mxu0
    %2222 = vmatpush.msra.mxu0 %v1769
    %2223 = vmatpush.msra.mxu0 %v1763
    %2224 = vmatpush.msra.mxu0 %v1757
    %2225 = vmatpush.msra.mxu0 %v1751
    %2226 = vmatpush.msra.mxu0 %v1745
    %2227 = vmatpush.msra.mxu0 %v1739
    %2228 = vmatpush.msra.mxu0 %v1733
    %2229 = vmatpush.msra.mxu0 %v1727
    %2230 = vmatpush.msra.mxu0 %v1721
    %2231 = vmatpush.msra.mxu0 %v1715
    %2232 = vmatpush.msra.mxu0 %v1709
    %2233 = vmatpush.msra.mxu0 %v1703
    %2234 = vmatpush.msra.mxu0 %v1697
    %2235 = vmatpush.msra.mxu0 %v1691
    %2236 = vmatpush.msra.mxu0 %v1685
    %2237 = vmatpush.msra.mxu0 %v1679
    %2238 = vmatmul.f32.gmra.mxu0 %v1190
    %v2239 = vpop.f32.mrf.mxu0
    %v2240 = vadd.f32 %v2220, %v2239
    %2241 = vdwg.mxu0
    %2242 = vmatpush.msra.mxu0 %v1865
    %2243 = vmatpush.msra.mxu0 %v1859
    %2244 = vmatpush.msra.mxu0 %v1853
    %2245 = vmatpush.msra.mxu0 %v1847
    %2246 = vmatpush.msra.mxu0 %v1841
    %2247 = vmatpush.msra.mxu0 %v1835
    %2248 = vmatpush.msra.mxu0 %v1829
    %2249 = vmatpush.msra.mxu0 %v1823
    %2250 = vmatpush.msra.mxu0 %v1817
    %2251 = vmatpush.msra.mxu0 %v1811
    %2252 = vmatpush.msra.mxu0 %v1805
    %2253 = vmatpush.msra.mxu0 %v1799
    %2254 = vmatpush.msra.mxu0 %v1793
    %2255 = vmatpush.msra.mxu0 %v1787
    %2256 = vmatpush.msra.mxu0 %v1781
    %2257 = vmatpush.msra.mxu0 %v1775
    %2258 = vmatmul.f32.gmra.mxu0 %v1191
    %v2259 = vpop.f32.mrf.mxu0
    %v2260 = vadd.f32 %v2240, %v2259
    %2261 = vdwg.mxu0
    %2262 = vmatpush.msra.mxu0 %v1961
    %2263 = vmatpush.msra.mxu0 %v1955
    %2264 = vmatpush.msra.mxu0 %v1949
    %2265 = vmatpush.msra.mxu0 %v1943
    %2266 = vmatpush.msra.mxu0 %v1937
    %2267 = vmatpush.msra.mxu0 %v1931
    %2268 = vmatpush.msra.mxu0 %v1925
    %2269 = vmatpush.msra.mxu0 %v1919
    %2270 = vmatpush.msra.mxu0 %v1913
    %2271 = vmatpush.msra.mxu0 %v1907
    %2272 = vmatpush.msra.mxu0 %v1901
    %2273 = vmatpush.msra.mxu0 %v1895
    %2274 = vmatpush.msra.mxu0 %v1889
    %2275 = vmatpush.msra.mxu0 %v1883
    %2276 = vmatpush.msra.mxu0 %v1877
    %2277 = vmatpush.msra.mxu0 %v1871
    %2278 = vmatmul.f32.gmra.mxu0 %v1192
    %v2279 = vpop.f32.mrf.mxu0
    %v2280 = vadd.f32 %v2260, %v2279
    %2281 = vdwg.mxu0
    %2282 = vmatpush.msra.mxu0 %v2057
    %2283 = vmatpush.msra.mxu0 %v2051
    %2284 = vmatpush.msra.mxu0 %v2045
    %2285 = vmatpush.msra.mxu0 %v2039
    %2286 = vmatpush.msra.mxu0 %v2033
    %2287 = vmatpush.msra.mxu0 %v2027
    %2288 = vmatpush.msra.mxu0 %v2021
    %2289 = vmatpush.msra.mxu0 %v2015
    %2290 = vmatpush.msra.mxu0 %v2009
    %2291 = vmatpush.msra.mxu0 %v2003
    %2292 = vmatpush.msra.mxu0 %v1997
    %2293 = vmatpush.msra.mxu0 %v1991
    %2294 = vmatpush.msra.mxu0 %v1985
    %2295 = vmatpush.msra.mxu0 %v1979
    %2296 = vmatpush.msra.mxu0 %v1973
    %2297 = vmatpush.msra.mxu0 %v1967
    %2298 = vmatmul.f32.gmra.mxu0 %v1193
    %v2299 = vpop.f32.mrf.mxu0
    %v2300 = vadd.f32 %v2280, %v2299
    %2301 = vdwg.mxu0
    %2302 = vmatpush.msra.mxu0 %v1578
    %2303 = vmatpush.msra.mxu0 %v1572
    %2304 = vmatpush.msra.mxu0 %v1566
    %2305 = vmatpush.msra.mxu0 %v1560
    %2306 = vmatpush.msra.mxu0 %v1554
    %2307 = vmatpush.msra.mxu0 %v1548
    %2308 = vmatpush.msra.mxu0 %v1542
    %2309 = vmatpush.msra.mxu0 %v1536
    %2310 = vmatpush.msra.mxu0 %v1530
    %2311 = vmatpush.msra.mxu0 %v1524
    %2312 = vmatpush.msra.mxu0 %v1518
    %2313 = vmatpush.msra.mxu0 %v1512
    %2314 = vmatpush.msra.mxu0 %v1506
    %2315 = vmatpush.msra.mxu0 %v1500
    %2316 = vmatpush.msra.mxu0 %v1494
    %2317 = vmatpush.msra.mxu0 %v1488
    %2318 = vmatmul.f32.gmra.mxu0 %v1188
    %v2319 = vpop.f32.mrf.mxu0
    %v2320 = vadd.f32 0.0, %v2319
    %2321 = vdwg.mxu0
    %2322 = vmatpush.msra.mxu0 %v1674
    %2323 = vmatpush.msra.mxu0 %v1668
    %2324 = vmatpush.msra.mxu0 %v1662
    %2325 = vmatpush.msra.mxu0 %v1656
    %2326 = vmatpush.msra.mxu0 %v1650
    %2327 = vmatpush.msra.mxu0 %v1644
    %2328 = vmatpush.msra.mxu0 %v1638
    %2329 = vmatpush.msra.mxu0 %v1632
    %2330 = vmatpush.msra.mxu0 %v1626
    %2331 = vmatpush.msra.mxu0 %v1620
    %2332 = vmatpush.msra.mxu0 %v1614
    %2333 = vmatpush.msra.mxu0 %v1608
    %2334 = vmatpush.msra.mxu0 %v1602
    %2335 = vmatpush.msra.mxu0 %v1596
    %2336 = vmatpush.msra.mxu0 %v1590
    %2337 = vmatpush.msra.mxu0 %v1584
    %2338 = vmatmul.f32.gmra.mxu0 %v1189
    %v2339 = vpop.f32.mrf.mxu0
    %v2340 = vadd.f32 %v2320, %v2339
    %2341 = vdwg.mxu0
    %2342 = vmatpush.msra.mxu0 %v1770
    %2343 = vmatpush.msra.mxu0 %v1764
    %2344 = vmatpush.msra.mxu0 %v1758
    %2345 = vmatpush.msra.mxu0 %v1752
    %2346 = vmatpush.msra.mxu0 %v1746
    %2347 = vmatpush.msra.mxu0 %v1740
    %2348 = vmatpush.msra.mxu0 %v1734
    %2349 = vmatpush.msra.mxu0 %v1728
    %2350 = vmatpush.msra.mxu0 %v1722
    %2351 = vmatpush.msra.mxu0 %v1716
    %2352 = vmatpush.msra.mxu0 %v1710
    %2353 = vmatpush.msra.mxu0 %v1704
    %2354 = vmatpush.msra.mxu0 %v1698
    %2355 = vmatpush.msra.mxu0 %v1692
    %2356 = vmatpush.msra.mxu0 %v1686
    %2357 = vmatpush.msra.mxu0 %v1680
    %2358 = vmatmul.f32.gmra.mxu0 %v1190
    %v2359 = vpop.f32.mrf.mxu0
    %v2360 = vadd.f32 %v2340, %v2359
    %2361 = vdwg.mxu0
    %2362 = vmatpush.msra.mxu0 %v1866
    %2363 = vmatpush.msra.mxu0 %v1860
    %2364 = vmatpush.msra.mxu0 %v1854
    %2365 = vmatpush.msra.mxu0 %v1848
    %2366 = vmatpush.msra.mxu0 %v1842
    %2367 = vmatpush.msra.mxu0 %v1836
    %2368 = vmatpush.msra.mxu0 %v1830
    %2369 = vmatpush.msra.mxu0 %v1824
    %2370 = vmatpush.msra.mxu0 %v1818
    %2371 = vmatpush.msra.mxu0 %v1812
    %2372 = vmatpush.msra.mxu0 %v1806
    %2373 = vmatpush.msra.mxu0 %v1800
    %2374 = vmatpush.msra.mxu0 %v1794
    %2375 = vmatpush.msra.mxu0 %v1788
    %2376 = vmatpush.msra.mxu0 %v1782
    %2377 = vmatpush.msra.mxu0 %v1776
    %2378 = vmatmul.f32.gmra.mxu0 %v1191
    %v2379 = vpop.f32.mrf.mxu0
    %v2380 = vadd.f32 %v2360, %v2379
    %2381 = vdwg.mxu0
    %2382 = vmatpush.msra.mxu0 %v1962
    %2383 = vmatpush.msra.mxu0 %v1956
    %2384 = vmatpush.msra.mxu0 %v1950
    %2385 = vmatpush.msra.mxu0 %v1944
    %2386 = vmatpush.msra.mxu0 %v1938
    %2387 = vmatpush.msra.mxu0 %v1932
    %2388 = vmatpush.msra.mxu0 %v1926
    %2389 = vmatpush.msra.mxu0 %v1920
    %2390 = vmatpush.msra.mxu0 %v1914
    %2391 = vmatpush.msra.mxu0 %v1908
    %2392 = vmatpush.msra.mxu0 %v1902
    %2393 = vmatpush.msra.mxu0 %v1896
    %2394 = vmatpush.msra.mxu0 %v1890
    %2395 = vmatpush.msra.mxu0 %v1884
    %2396 = vmatpush.msra.mxu0 %v1878
    %2397 = vmatpush.msra.mxu0 %v1872
    %2398 = vmatmul.f32.gmra.mxu0 %v1192
    %v2399 = vpop.f32.mrf.mxu0
    %v2400 = vadd.f32 %v2380, %v2399
    %2401 = vdwg.mxu0
    %2402 = vmatpush.msra.mxu0 %v2058
    %2403 = vmatpush.msra.mxu0 %v2052
    %2404 = vmatpush.msra.mxu0 %v2046
    %2405 = vmatpush.msra.mxu0 %v2040
    %2406 = vmatpush.msra.mxu0 %v2034
    %2407 = vmatpush.msra.mxu0 %v2028
    %2408 = vmatpush.msra.mxu0 %v2022
    %2409 = vmatpush.msra.mxu0 %v2016
    %2410 = vmatpush.msra.mxu0 %v2010
    %2411 = vmatpush.msra.mxu0 %v2004
    %2412 = vmatpush.msra.mxu0 %v1998
    %2413 = vmatpush.msra.mxu0 %v1992
    %2414 = vmatpush.msra.mxu0 %v1986
    %2415 = vmatpush.msra.mxu0 %v1980
    %2416 = vmatpush.msra.mxu0 %v1974
    %2417 = vmatpush.msra.mxu0 %v1968
    %2418 = vmatmul.f32.gmra.mxu0 %v1193
    %v2419 = vpop.f32.mrf.mxu0
    %v2420 = vadd.f32 %v2400, %v2419
    %2421 = vdwg.mxu0
    %2422 = vmatpush.msra.mxu0 %v1579
    %2423 = vmatpush.msra.mxu0 %v1573
    %2424 = vmatpush.msra.mxu0 %v1567
    %2425 = vmatpush.msra.mxu0 %v1561
    %2426 = vmatpush.msra.mxu0 %v1555
    %2427 = vmatpush.msra.mxu0 %v1549
    %2428 = vmatpush.msra.mxu0 %v1543
    %2429 = vmatpush.msra.mxu0 %v1537
    %2430 = vmatpush.msra.mxu0 %v1531
    %2431 = vmatpush.msra.mxu0 %v1525
    %2432 = vmatpush.msra.mxu0 %v1519
    %2433 = vmatpush.msra.mxu0 %v1513
    %2434 = vmatpush.msra.mxu0 %v1507
    %2435 = vmatpush.msra.mxu0 %v1501
    %2436 = vmatpush.msra.mxu0 %v1495
    %2437 = vmatpush.msra.mxu0 %v1489
    %2438 = vmatmul.f32.gmra.mxu0 %v1188
    %v2439 = vpop.f32.mrf.mxu0
    %v2440 = vadd.f32 0.0, %v2439
    %2441 = vdwg.mxu0
    %2442 = vmatpush.msra.mxu0 %v1675
    %2443 = vmatpush.msra.mxu0 %v1669
    %2444 = vmatpush.msra.mxu0 %v1663
    %2445 = vmatpush.msra.mxu0 %v1657
    %2446 = vmatpush.msra.mxu0 %v1651
    %2447 = vmatpush.msra.mxu0 %v1645
    %2448 = vmatpush.msra.mxu0 %v1639
    %2449 = vmatpush.msra.mxu0 %v1633
    %2450 = vmatpush.msra.mxu0 %v1627
    %2451 = vmatpush.msra.mxu0 %v1621
    %2452 = vmatpush.msra.mxu0 %v1615
    %2453 = vmatpush.msra.mxu0 %v1609
    %2454 = vmatpush.msra.mxu0 %v1603
    %2455 = vmatpush.msra.mxu0 %v1597
    %2456 = vmatpush.msra.mxu0 %v1591
    %2457 = vmatpush.msra.mxu0 %v1585
    %2458 = vmatmul.f32.gmra.mxu0 %v1189
    %v2459 = vpop.f32.mrf.mxu0
    %v2460 = vadd.f32 %v2440, %v2459
    %2461 = vdwg.mxu0
    %2462 = vmatpush.msra.mxu0 %v1771
    %2463 = vmatpush.msra.mxu0 %v1765
    %2464 = vmatpush.msra.mxu0 %v1759
    %2465 = vmatpush.msra.mxu0 %v1753
    %2466 = vmatpush.msra.mxu0 %v1747
    %2467 = vmatpush.msra.mxu0 %v1741
    %2468 = vmatpush.msra.mxu0 %v1735
    %2469 = vmatpush.msra.mxu0 %v1729
    %2470 = vmatpush.msra.mxu0 %v1723
    %2471 = vmatpush.msra.mxu0 %v1717
    %2472 = vmatpush.msra.mxu0 %v1711
    %2473 = vmatpush.msra.mxu0 %v1705
    %2474 = vmatpush.msra.mxu0 %v1699
    %2475 = vmatpush.msra.mxu0 %v1693
    %2476 = vmatpush.msra.mxu0 %v1687
    %2477 = vmatpush.msra.mxu0 %v1681
    %2478 = vmatmul.f32.gmra.mxu0 %v1190
    %v2479 = vpop.f32.mrf.mxu0
    %v2480 = vadd.f32 %v2460, %v2479
    %2481 = vdwg.mxu0
    %2482 = vmatpush.msra.mxu0 %v1867
    %2483 = vmatpush.msra.mxu0 %v1861
    %2484 = vmatpush.msra.mxu0 %v1855
    %2485 = vmatpush.msra.mxu0 %v1849
    %2486 = vmatpush.msra.mxu0 %v1843
    %2487 = vmatpush.msra.mxu0 %v1837
    %2488 = vmatpush.msra.mxu0 %v1831
    %2489 = vmatpush.msra.mxu0 %v1825
    %2490 = vmatpush.msra.mxu0 %v1819
    %2491 = vmatpush.msra.mxu0 %v1813
    %2492 = vmatpush.msra.mxu0 %v1807
    %2493 = vmatpush.msra.mxu0 %v1801
    %2494 = vmatpush.msra.mxu0 %v1795
    %2495 = vmatpush.msra.mxu0 %v1789
    %2496 = vmatpush.msra.mxu0 %v1783
    %2497 = vmatpush.msra.mxu0 %v1777
    %2498 = vmatmul.f32.gmra.mxu0 %v1191
    %v2499 = vpop.f32.mrf.mxu0
    %v2500 = vadd.f32 %v2480, %v2499
    %2501 = vdwg.mxu0
    %2502 = vmatpush.msra.mxu0 %v1963
    %2503 = vmatpush.msra.mxu0 %v1957
    %2504 = vmatpush.msra.mxu0 %v1951
    %2505 = vmatpush.msra.mxu0 %v1945
    %2506 = vmatpush.msra.mxu0 %v1939
    %2507 = vmatpush.msra.mxu0 %v1933
    %2508 = vmatpush.msra.mxu0 %v1927
    %2509 = vmatpush.msra.mxu0 %v1921
    %2510 = vmatpush.msra.mxu0 %v1915
    %2511 = vmatpush.msra.mxu0 %v1909
    %2512 = vmatpush.msra.mxu0 %v1903
    %2513 = vmatpush.msra.mxu0 %v1897
    %2514 = vmatpush.msra.mxu0 %v1891
    %2515 = vmatpush.msra.mxu0 %v1885
    %2516 = vmatpush.msra.mxu0 %v1879
    %2517 = vmatpush.msra.mxu0 %v1873
    %2518 = vmatmul.f32.gmra.mxu0 %v1192
    %v2519 = vpop.f32.mrf.mxu0
    %v2520 = vadd.f32 %v2500, %v2519
    %2521 = vdwg.mxu0
    %2522 = vmatpush.msra.mxu0 %v2059
    %2523 = vmatpush.msra.mxu0 %v2053
    %2524 = vmatpush.msra.mxu0 %v2047
    %2525 = vmatpush.msra.mxu0 %v2041
    %2526 = vmatpush.msra.mxu0 %v2035
    %2527 = vmatpush.msra.mxu0 %v2029
    %2528 = vmatpush.msra.mxu0 %v2023
    %2529 = vmatpush.msra.mxu0 %v2017
    %2530 = vmatpush.msra.mxu0 %v2011
    %2531 = vmatpush.msra.mxu0 %v2005
    %2532 = vmatpush.msra.mxu0 %v1999
    %2533 = vmatpush.msra.mxu0 %v1993
    %2534 = vmatpush.msra.mxu0 %v1987
    %2535 = vmatpush.msra.mxu0 %v1981
    %2536 = vmatpush.msra.mxu0 %v1975
    %2537 = vmatpush.msra.mxu0 %v1969
    %2538 = vmatmul.f32.gmra.mxu0 %v1193
    %v2539 = vpop.f32.mrf.mxu0
    %v2540 = vadd.f32 %v2520, %v2539
    %2541 = vdwg.mxu0
    %2542 = vmatpush.msra.mxu0 %v1580
    %2543 = vmatpush.msra.mxu0 %v1574
    %2544 = vmatpush.msra.mxu0 %v1568
    %2545 = vmatpush.msra.mxu0 %v1562
    %2546 = vmatpush.msra.mxu0 %v1556
    %2547 = vmatpush.msra.mxu0 %v1550
    %2548 = vmatpush.msra.mxu0 %v1544
    %2549 = vmatpush.msra.mxu0 %v1538
    %2550 = vmatpush.msra.mxu0 %v1532
    %2551 = vmatpush.msra.mxu0 %v1526
    %2552 = vmatpush.msra.mxu0 %v1520
    %2553 = vmatpush.msra.mxu0 %v1514
    %2554 = vmatpush.msra.mxu0 %v1508
    %2555 = vmatpush.msra.mxu0 %v1502
    %2556 = vmatpush.msra.mxu0 %v1496
    %2557 = vmatpush.msra.mxu0 %v1490
    %2558 = vmatmul.f32.gmra.mxu0 %v1188
    %v2559 = vpop.f32.mrf.mxu0
    %v2560 = vadd.f32 0.0, %v2559
    %2561 = vdwg.mxu0
    %2562 = vmatpush.msra.mxu0 %v1676
    %2563 = vmatpush.msra.mxu0 %v1670
    %2564 = vmatpush.msra.mxu0 %v1664
    %2565 = vmatpush.msra.mxu0 %v1658
    %2566 = vmatpush.msra.mxu0 %v1652
    %2567 = vmatpush.msra.mxu0 %v1646
    %2568 = vmatpush.msra.mxu0 %v1640
    %2569 = vmatpush.msra.mxu0 %v1634
    %2570 = vmatpush.msra.mxu0 %v1628
    %2571 = vmatpush.msra.mxu0 %v1622
    %2572 = vmatpush.msra.mxu0 %v1616
    %2573 = vmatpush.msra.mxu0 %v1610
    %2574 = vmatpush.msra.mxu0 %v1604
    %2575 = vmatpush.msra.mxu0 %v1598
    %2576 = vmatpush.msra.mxu0 %v1592
    %2577 = vmatpush.msra.mxu0 %v1586
    %2578 = vmatmul.f32.gmra.mxu0 %v1189
    %v2579 = vpop.f32.mrf.mxu0
    %v2580 = vadd.f32 %v2560, %v2579
    %2581 = vdwg.mxu0
    %2582 = vmatpush.msra.mxu0 %v1772
    %2583 = vmatpush.msra.mxu0 %v1766
    %2584 = vmatpush.msra.mxu0 %v1760
    %2585 = vmatpush.msra.mxu0 %v1754
    %2586 = vmatpush.msra.mxu0 %v1748
    %2587 = vmatpush.msra.mxu0 %v1742
    %2588 = vmatpush.msra.mxu0 %v1736
    %2589 = vmatpush.msra.mxu0 %v1730
    %2590 = vmatpush.msra.mxu0 %v1724
    %2591 = vmatpush.msra.mxu0 %v1718
    %2592 = vmatpush.msra.mxu0 %v1712
    %2593 = vmatpush.msra.mxu0 %v1706
    %2594 = vmatpush.msra.mxu0 %v1700
    %2595 = vmatpush.msra.mxu0 %v1694
    %2596 = vmatpush.msra.mxu0 %v1688
    %2597 = vmatpush.msra.mxu0 %v1682
    %2598 = vmatmul.f32.gmra.mxu0 %v1190
    %v2599 = vpop.f32.mrf.mxu0
    %v2600 = vadd.f32 %v2580, %v2599
    %2601 = vdwg.mxu0
    %2602 = vmatpush.msra.mxu0 %v1868
    %2603 = vmatpush.msra.mxu0 %v1862
    %2604 = vmatpush.msra.mxu0 %v1856
    %2605 = vmatpush.msra.mxu0 %v1850
    %2606 = vmatpush.msra.mxu0 %v1844
    %2607 = vmatpush.msra.mxu0 %v1838
    %2608 = vmatpush.msra.mxu0 %v1832
    %2609 = vmatpush.msra.mxu0 %v1826
    %2610 = vmatpush.msra.mxu0 %v1820
    %2611 = vmatpush.msra.mxu0 %v1814
    %2612 = vmatpush.msra.mxu0 %v1808
    %2613 = vmatpush.msra.mxu0 %v1802
    %2614 = vmatpush.msra.mxu0 %v1796
    %2615 = vmatpush.msra.mxu0 %v1790
    %2616 = vmatpush.msra.mxu0 %v1784
    %2617 = vmatpush.msra.mxu0 %v1778
    %2618 = vmatmul.f32.gmra.mxu0 %v1191
    %v2619 = vpop.f32.mrf.mxu0
    %v2620 = vadd.f32 %v2600, %v2619
    %2621 = vdwg.mxu0
    %2622 = vmatpush.msra.mxu0 %v1964
    %2623 = vmatpush.msra.mxu0 %v1958
    %2624 = vmatpush.msra.mxu0 %v1952
    %2625 = vmatpush.msra.mxu0 %v1946
    %2626 = vmatpush.msra.mxu0 %v1940
    %2627 = vmatpush.msra.mxu0 %v1934
    %2628 = vmatpush.msra.mxu0 %v1928
    %2629 = vmatpush.msra.mxu0 %v1922
    %2630 = vmatpush.msra.mxu0 %v1916
    %2631 = vmatpush.msra.mxu0 %v1910
    %2632 = vmatpush.msra.mxu0 %v1904
    %2633 = vmatpush.msra.mxu0 %v1898
    %2634 = vmatpush.msra.mxu0 %v1892
    %2635 = vmatpush.msra.mxu0 %v1886
    %2636 = vmatpush.msra.mxu0 %v1880
    %2637 = vmatpush.msra.mxu0 %v1874
    %2638 = vmatmul.f32.gmra.mxu0 %v1192
    %v2639 = vpop.f32.mrf.mxu0
    %v2640 = vadd.f32 %v2620, %v2639
    %2641 = vdwg.mxu0
    %2642 = vmatpush.msra.mxu0 %v2060
    %2643 = vmatpush.msra.mxu0 %v2054
    %2644 = vmatpush.msra.mxu0 %v2048
    %2645 = vmatpush.msra.mxu0 %v2042
    %2646 = vmatpush.msra.mxu0 %v2036
    %2647 = vmatpush.msra.mxu0 %v2030
    %2648 = vmatpush.msra.mxu0 %v2024
    %2649 = vmatpush.msra.mxu0 %v2018
    %2650 = vmatpush.msra.mxu0 %v2012
    %2651 = vmatpush.msra.mxu0 %v2006
    %2652 = vmatpush.msra.mxu0 %v2000
    %2653 = vmatpush.msra.mxu0 %v1994
    %2654 = vmatpush.msra.mxu0 %v1988
    %2655 = vmatpush.msra.mxu0 %v1982
    %2656 = vmatpush.msra.mxu0 %v1976
    %2657 = vmatpush.msra.mxu0 %v1970
    %2658 = vmatmul.f32.gmra.mxu0 %v1193
    %v2659 = vpop.f32.mrf.mxu0
    %v2660 = vadd.f32 %v2640, %v2659
    %2661 = vdwg.mxu0
    %2662 = vmatpush.msra.mxu0 %v1581
    %2663 = vmatpush.msra.mxu0 %v1575
    %2664 = vmatpush.msra.mxu0 %v1569
    %2665 = vmatpush.msra.mxu0 %v1563
    %2666 = vmatpush.msra.mxu0 %v1557
    %2667 = vmatpush.msra.mxu0 %v1551
    %2668 = vmatpush.msra.mxu0 %v1545
    %2669 = vmatpush.msra.mxu0 %v1539
    %2670 = vmatpush.msra.mxu0 %v1533
    %2671 = vmatpush.msra.mxu0 %v1527
    %2672 = vmatpush.msra.mxu0 %v1521
    %2673 = vmatpush.msra.mxu0 %v1515
    %2674 = vmatpush.msra.mxu0 %v1509
    %2675 = vmatpush.msra.mxu0 %v1503
    %2676 = vmatpush.msra.mxu0 %v1497
    %2677 = vmatpush.msra.mxu0 %v1491
    %2678 = vmatmul.f32.gmra.mxu0 %v1188
    %v2679 = vpop.f32.mrf.mxu0
    %v2680 = vadd.f32 0.0, %v2679
    %2681 = vdwg.mxu0
    %2682 = vmatpush.msra.mxu0 %v1677
    %2683 = vmatpush.msra.mxu0 %v1671
    %2684 = vmatpush.msra.mxu0 %v1665
    %2685 = vmatpush.msra.mxu0 %v1659
    %2686 = vmatpush.msra.mxu0 %v1653
    %2687 = vmatpush.msra.mxu0 %v1647
    %2688 = vmatpush.msra.mxu0 %v1641
    %2689 = vmatpush.msra.mxu0 %v1635
    %2690 = vmatpush.msra.mxu0 %v1629
    %2691 = vmatpush.msra.mxu0 %v1623
    %2692 = vmatpush.msra.mxu0 %v1617
    %2693 = vmatpush.msra.mxu0 %v1611
    %2694 = vmatpush.msra.mxu0 %v1605
    %2695 = vmatpush.msra.mxu0 %v1599
    %2696 = vmatpush.msra.mxu0 %v1593
    %2697 = vmatpush.msra.mxu0 %v1587
    %2698 = vmatmul.f32.gmra.mxu0 %v1189
    %v2699 = vpop.f32.mrf.mxu0
    %v2700 = vadd.f32 %v2680, %v2699
    %2701 = vdwg.mxu0
    %2702 = vmatpush.msra.mxu0 %v1773
    %2703 = vmatpush.msra.mxu0 %v1767
    %2704 = vmatpush.msra.mxu0 %v1761
    %2705 = vmatpush.msra.mxu0 %v1755
    %2706 = vmatpush.msra.mxu0 %v1749
    %2707 = vmatpush.msra.mxu0 %v1743
    %2708 = vmatpush.msra.mxu0 %v1737
    %2709 = vmatpush.msra.mxu0 %v1731
    %2710 = vmatpush.msra.mxu0 %v1725
    %2711 = vmatpush.msra.mxu0 %v1719
    %2712 = vmatpush.msra.mxu0 %v1713
    %2713 = vmatpush.msra.mxu0 %v1707
    %2714 = vmatpush.msra.mxu0 %v1701
    %2715 = vmatpush.msra.mxu0 %v1695
    %2716 = vmatpush.msra.mxu0 %v1689
    %2717 = vmatpush.msra.mxu0 %v1683
    %2718 = vmatmul.f32.gmra.mxu0 %v1190
    %v2719 = vpop.f32.mrf.mxu0
    %v2720 = vadd.f32 %v2700, %v2719
    %2721 = vdwg.mxu0
    %2722 = vmatpush.msra.mxu0 %v1869
    %2723 = vmatpush.msra.mxu0 %v1863
    %2724 = vmatpush.msra.mxu0 %v1857
    %2725 = vmatpush.msra.mxu0 %v1851
    %2726 = vmatpush.msra.mxu0 %v1845
    %2727 = vmatpush.msra.mxu0 %v1839
    %2728 = vmatpush.msra.mxu0 %v1833
    %2729 = vmatpush.msra.mxu0 %v1827
    %2730 = vmatpush.msra.mxu0 %v1821
    %2731 = vmatpush.msra.mxu0 %v1815
    %2732 = vmatpush.msra.mxu0 %v1809
    %2733 = vmatpush.msra.mxu0 %v1803
    %2734 = vmatpush.msra.mxu0 %v1797
    %2735 = vmatpush.msra.mxu0 %v1791
    %2736 = vmatpush.msra.mxu0 %v1785
    %2737 = vmatpush.msra.mxu0 %v1779
    %2738 = vmatmul.f32.gmra.mxu0 %v1191
    %v2739 = vpop.f32.mrf.mxu0
    %v2740 = vadd.f32 %v2720, %v2739
    %2741 = vdwg.mxu0
    %2742 = vmatpush.msra.mxu0 %v1965
    %2743 = vmatpush.msra.mxu0 %v1959
    %2744 = vmatpush.msra.mxu0 %v1953
    %2745 = vmatpush.msra.mxu0 %v1947
    %2746 = vmatpush.msra.mxu0 %v1941
    %2747 = vmatpush.msra.mxu0 %v1935
    %2748 = vmatpush.msra.mxu0 %v1929
    %2749 = vmatpush.msra.mxu0 %v1923
    %2750 = vmatpush.msra.mxu0 %v1917
    %2751 = vmatpush.msra.mxu0 %v1911
    %2752 = vmatpush.msra.mxu0 %v1905
    %2753 = vmatpush.msra.mxu0 %v1899
    %2754 = vmatpush.msra.mxu0 %v1893
    %2755 = vmatpush.msra.mxu0 %v1887
    %2756 = vmatpush.msra.mxu0 %v1881
    %2757 = vmatpush.msra.mxu0 %v1875
    %2758 = vmatmul.f32.gmra.mxu0 %v1192
    %v2759 = vpop.f32.mrf.mxu0
    %v2760 = vadd.f32 %v2740, %v2759
    %2761 = vdwg.mxu0
    %2762 = vmatpush.msra.mxu0 %v2061
    %2763 = vmatpush.msra.mxu0 %v2055
    %2764 = vmatpush.msra.mxu0 %v2049
    %2765 = vmatpush.msra.mxu0 %v2043
    %2766 = vmatpush.msra.mxu0 %v2037
    %2767 = vmatpush.msra.mxu0 %v2031
    %2768 = vmatpush.msra.mxu0 %v2025
    %2769 = vmatpush.msra.mxu0 %v2019
    %2770 = vmatpush.msra.mxu0 %v2013
    %2771 = vmatpush.msra.mxu0 %v2007
    %2772 = vmatpush.msra.mxu0 %v2001
    %2773 = vmatpush.msra.mxu0 %v1995
    %2774 = vmatpush.msra.mxu0 %v1989
    %2775 = vmatpush.msra.mxu0 %v1983
    %2776 = vmatpush.msra.mxu0 %v1977
    %2777 = vmatpush.msra.mxu0 %v1971
    %2778 = vmatmul.f32.gmra.mxu0 %v1193
    %v2779 = vpop.f32.mrf.mxu0
    %v2780 = vadd.f32 %v2760, %v2779
    %2781 = vdwg.mxu0
    %v2782 = vrot.slane %v2180, 4
    %v2783 = vadd.f32 %v2180, %v2782
    %v2784 = vrot.slane %v2783, 2
    %v2785 = vadd.f32 %v2783, %v2784
    %v2786 = vrot.slane %v2785, 1
    %v2787 = vadd.f32 %v2785, %v2786
    %v2788 = vrot.slane %v2300, 4
    %v2789 = vadd.f32 %v2300, %v2788
    %v2790 = vrot.slane %v2789, 2
    %v2791 = vadd.f32 %v2789, %v2790
    %v2792 = vrot.slane %v2791, 1
    %v2793 = vadd.f32 %v2791, %v2792
    %v2794 = vrot.slane %v2420, 4
    %v2795 = vadd.f32 %v2420, %v2794
    %v2796 = vrot.slane %v2795, 2
    %v2797 = vadd.f32 %v2795, %v2796
    %v2798 = vrot.slane %v2797, 1
    %v2799 = vadd.f32 %v2797, %v2798
    %v2800 = vrot.slane %v2540, 4
    %v2801 = vadd.f32 %v2540, %v2800
    %v2802 = vrot.slane %v2801, 2
    %v2803 = vadd.f32 %v2801, %v2802
    %v2804 = vrot.slane %v2803, 1
    %v2805 = vadd.f32 %v2803, %v2804
    %v2806 = vrot.slane %v2660, 4
    %v2807 = vadd.f32 %v2660, %v2806
    %v2808 = vrot.slane %v2807, 2
    %v2809 = vadd.f32 %v2807, %v2808
    %v2810 = vrot.slane %v2809, 1
    %v2811 = vadd.f32 %v2809, %v2810
    %v2812 = vrot.slane %v2780, 4
    %v2813 = vadd.f32 %v2780, %v2812
    %v2814 = vrot.slane %v2813, 2
    %v2815 = vadd.f32 %v2813, %v2814
    %v2816 = vrot.slane %v2815, 1
    %v2817 = vadd.f32 %v2815, %v2816
    %v2818 = vmul.f32 %v2787, %v976
    %v2819 = vmul.f32 %v2793, %v976
    %v2820 = vmul.f32 %v2799, %v976
    %v2821 = vmul.f32 %v2805, %v976
    %v2822 = vmul.f32 %v2811, %v976
    %v2823 = vmul.f32 %v2817, %v976
    %v2824 = vsub.f32 %v2180, %v2818
    %v2825 = vsub.f32 %v2300, %v2819
    %v2826 = vsub.f32 %v2420, %v2820
    %v2827 = vsub.f32 %v2540, %v2821
    %v2828 = vsub.f32 %v2660, %v2822
    %v2829 = vsub.f32 %v2780, %v2823
    %v2830 = vmul.f32 %v2824, %v2824
    %v2831 = vmul.f32 %v2825, %v2825
    %v2832 = vmul.f32 %v2826, %v2826
    %v2833 = vmul.f32 %v2827, %v2827
    %v2834 = vmul.f32 %v2828, %v2828
    %v2835 = vmul.f32 %v2829, %v2829
    %v2836 = vrot.slane %v2830, 4
    %v2837 = vadd.f32 %v2830, %v2836
    %v2838 = vrot.slane %v2837, 2
    %v2839 = vadd.f32 %v2837, %v2838
    %v2840 = vrot.slane %v2839, 1
    %v2841 = vadd.f32 %v2839, %v2840
    %v2842 = vrot.slane %v2831, 4
    %v2843 = vadd.f32 %v2831, %v2842
    %v2844 = vrot.slane %v2843, 2
    %v2845 = vadd.f32 %v2843, %v2844
    %v2846 = vrot.slane %v2845, 1
    %v2847 = vadd.f32 %v2845, %v2846
    %v2848 = vrot.slane %v2832, 4
    %v2849 = vadd.f32 %v2832, %v2848
    %v2850 = vrot.slane %v2849, 2
    %v2851 = vadd.f32 %v2849, %v2850
    %v2852 = vrot.slane %v2851, 1
    %v2853 = vadd.f32 %v2851, %v2852
    %v2854 = vrot.slane %v2833, 4
    %v2855 = vadd.f32 %v2833, %v2854
    %v2856 = vrot.slane %v2855, 2
    %v2857 = vadd.f32 %v2855, %v2856
    %v2858 = vrot.slane %v2857, 1
    %v2859 = vadd.f32 %v2857, %v2858
    %v2860 = vrot.slane %v2834, 4
    %v2861 = vadd.f32 %v2834, %v2860
    %v2862 = vrot.slane %v2861, 2
    %v2863 = vadd.f32 %v2861, %v2862
    %v2864 = vrot.slane %v2863, 1
    %v2865 = vadd.f32 %v2863, %v2864
    %v2866 = vrot.slane %v2835, 4
    %v2867 = vadd.f32 %v2835, %v2866
    %v2868 = vrot.slane %v2867, 2
    %v2869 = vadd.f32 %v2867, %v2868
    %v2870 = vrot.slane %v2869, 1
    %v2871 = vadd.f32 %v2869, %v2870
    %v2872 = vmul.f32 %v2841, %v976
    %v2873 = vmul.f32 %v2847, %v976
    %v2874 = vmul.f32 %v2853, %v976
    %v2875 = vmul.f32 %v2859, %v976
    %v2876 = vmul.f32 %v2865, %v976
    %v2877 = vmul.f32 %v2871, %v976
    %v2878 = vadd.f32 %v2872, 1e-05
    %v2879 = vadd.f32 %v2873, 1e-05
    %v2880 = vadd.f32 %v2874, 1e-05
    %v2881 = vadd.f32 %v2875, 1e-05
    %v2882 = vadd.f32 %v2876, 1e-05
    %v2883 = vadd.f32 %v2877, 1e-05
    %v2884 = vrsqrt.pop %v2878
    %v2885 = vmul.f32 %v2884, %v2878
    %v2886 = vmul.f32 %v2885, %v2884
    %v2887 = vmul.f32 0.5, %v2886
    %v2888 = vsub.f32 1.5, %v2887
    %v2889 = vmul.f32 %v2884, %v2888
    %vm2890 = vweird.f32 %v2878
    %vm2891 = vweird.f32 %v2884
    %vm2892 = vmor %vm2890, %vm2891
    %v2893 = vsel %vm2892, %v2884, %v2889
    %v2894 = vrsqrt.pop %v2879
    %v2895 = vmul.f32 %v2894, %v2879
    %v2896 = vmul.f32 %v2895, %v2894
    %v2897 = vmul.f32 0.5, %v2896
    %v2898 = vsub.f32 1.5, %v2897
    %v2899 = vmul.f32 %v2894, %v2898
    %vm2900 = vweird.f32 %v2879
    %vm2901 = vweird.f32 %v2894
    %vm2902 = vmor %vm2900, %vm2901
    %v2903 = vsel %vm2902, %v2894, %v2899
    %v2904 = vrsqrt.pop %v2880
    %v2905 = vmul.f32 %v2904, %v2880
    %v2906 = vmul.f32 %v2905, %v2904
    %v2907 = vmul.f32 0.5, %v2906
    %v2908 = vsub.f32 1.5, %v2907
    %v2909 = vmul.f32 %v2904, %v2908
    %vm2910 = vweird.f32 %v2880
    %vm2911 = vweird.f32 %v2904
    %vm2912 = vmor %vm2910, %vm2911
    %v2913 = vsel %vm2912, %v2904, %v2909
    %v2914 = vrsqrt.pop %v2881
    %v2915 = vmul.f32 %v2914, %v2881
    %v2916 = vmul.f32 %v2915, %v2914
    %v2917 = vmul.f32 0.5, %v2916
    %v2918 = vsub.f32 1.5, %v2917
    %v2919 = vmul.f32 %v2914, %v2918
    %vm2920 = vweird.f32 %v2881
    %vm2921 = vweird.f32 %v2914
    %vm2922 = vmor %vm2920, %vm2921
    %v2923 = vsel %vm2922, %v2914, %v2919
    %v2924 = vrsqrt.pop %v2882
    %v2925 = vmul.f32 %v2924, %v2882
    %v2926 = vmul.f32 %v2925, %v2924
    %v2927 = vmul.f32 0.5, %v2926
    %v2928 = vsub.f32 1.5, %v2927
    %v2929 = vmul.f32 %v2924, %v2928
    %vm2930 = vweird.f32 %v2882
    %vm2931 = vweird.f32 %v2924
    %vm2932 = vmor %vm2930, %vm2931
    %v2933 = vsel %vm2932, %v2924, %v2929
    %v2934 = vrsqrt.pop %v2883
    %v2935 = vmul.f32 %v2934, %v2883
    %v2936 = vmul.f32 %v2935, %v2934
    %v2937 = vmul.f32 0.5, %v2936
    %v2938 = vsub.f32 1.5, %v2937
    %v2939 = vmul.f32 %v2934, %v2938
    %vm2940 = vweird.f32 %v2883
    %vm2941 = vweird.f32 %v2934
    %vm2942 = vmor %vm2940, %vm2941
    %v2943 = vsel %vm2942, %v2934, %v2939
    %v2950 = vrot.slane %v2903, 7
    %v2951 = vrot.slane %v2913, 6
    %v2952 = vrot.slane %v2923, 5
    %v2953 = vrot.slane %v2933, 4
    %v2954 = vrot.slane %v2943, 3
    %v2955 = vsel %vm1114, %v2893, %v2950
    %v2956 = vsel %vm1116, %v2955, %v2951
    %v2957 = vsel %vm1118, %v2952, %v2953
    %v2958 = vsel %vm1120, %v2957, %v2954
    %v2959 = vsel %vm1122, %v2956, %v2958
    %v2961 = vmul.f32 %v140, %v2959
    %v2963 = vperm.slane %v2961, 0
    %v2964 = vperm.slane %v2961, 1
    %v2965 = vperm.slane %v2961, 2
    %v2966 = vperm.slane %v2961, 3
    %v2967 = vperm.slane %v2961, 4
    %v2968 = vperm.slane %v2961, 5
    %v2975 = vmul.f32 %v2818, %v2963
    %v2976 = vmul.f32 %v2819, %v2964
    %v2977 = vmul.f32 %v2820, %v2965
    %v2978 = vmul.f32 %v2821, %v2966
    %v2979 = vmul.f32 %v2822, %v2967
    %v2980 = vmul.f32 %v2823, %v2968
    %v2987 = vrot.slane %v2976, 7
    %v2988 = vrot.slane %v2977, 6
    %v2989 = vrot.slane %v2978, 5
    %v2990 = vrot.slane %v2979, 4
    %v2991 = vrot.slane %v2980, 3
    %v2992 = vsel %vm1114, %v2975, %v2987
    %v2993 = vsel %vm1116, %v2992, %v2988
    %v2994 = vsel %vm1118, %v2989, %v2990
    %v2995 = vsel %vm1120, %v2994, %v2991
    %v2996 = vsel %vm1122, %v2993, %v2995
    %v2998 = vsub.f32 %v141, %v2996
    %v2999 = vmul.f32 %v2180, %v2963
    %v3000 = vmul.f32 %v2300, %v2964
    %v3001 = vmul.f32 %v2420, %v2965
    %v3002 = vmul.f32 %v2540, %v2966
    %v3003 = vmul.f32 %v2660, %v2967
    %v3004 = vmul.f32 %v2780, %v2968
    %v3006 = vperm.slane %v2998, 0
    %v3007 = vperm.slane %v2998, 1
    %v3008 = vperm.slane %v2998, 2
    %v3009 = vperm.slane %v2998, 3
    %v3010 = vperm.slane %v2998, 4
    %v3011 = vperm.slane %v2998, 5
    %v3018 = vadd.f32 %v2999, %v3006
    %v3019 = vadd.f32 %v3000, %v3007
    %v3020 = vadd.f32 %v3001, %v3008
    %v3021 = vadd.f32 %v3002, %v3009
    %v3022 = vadd.f32 %v3003, %v3010
    %v3023 = vadd.f32 %v3004, %v3011
    %v3024 = vmax.f32 %v3018, 0.0
    %v3025 = vmax.f32 %v3019, 0.0
    %v3026 = vmax.f32 %v3020, 0.0
    %v3027 = vmax.f32 %v3021, 0.0
    %v3028 = vmax.f32 %v3022, 0.0
    %v3029 = vmax.f32 %v3023, 0.0
    %3030 = vmatpush.msra.mxu0 %v1576
    %3031 = vmatpush.msra.mxu0 %v1570
    %3032 = vmatpush.msra.mxu0 %v1564
    %3033 = vmatpush.msra.mxu0 %v1558
    %3034 = vmatpush.msra.mxu0 %v1552
    %3035 = vmatpush.msra.mxu0 %v1546
    %3036 = vmatpush.msra.mxu0 %v1540
    %3037 = vmatpush.msra.mxu0 %v1534
    %3038 = vmatpush.msra.mxu0 %v1528
    %3039 = vmatpush.msra.mxu0 %v1522
    %3040 = vmatpush.msra.mxu0 %v1516
    %3041 = vmatpush.msra.mxu0 %v1510
    %3042 = vmatpush.msra.mxu0 %v1504
    %3043 = vmatpush.msra.mxu0 %v1498
    %3044 = vmatpush.msra.mxu0 %v1492
    %3045 = vmatpush.msra.mxu0 %v1486
    %3046 = vmatmul.f32.gmra.mxu0 %v3024
    %v3047 = vpop.f32.mrf.mxu0
    %v3048 = vadd.f32 0.0, %v3047
    %3049 = vdwg.mxu0
    %3050 = vmatpush.msra.mxu0 %v1672
    %3051 = vmatpush.msra.mxu0 %v1666
    %3052 = vmatpush.msra.mxu0 %v1660
    %3053 = vmatpush.msra.mxu0 %v1654
    %3054 = vmatpush.msra.mxu0 %v1648
    %3055 = vmatpush.msra.mxu0 %v1642
    %3056 = vmatpush.msra.mxu0 %v1636
    %3057 = vmatpush.msra.mxu0 %v1630
    %3058 = vmatpush.msra.mxu0 %v1624
    %3059 = vmatpush.msra.mxu0 %v1618
    %3060 = vmatpush.msra.mxu0 %v1612
    %3061 = vmatpush.msra.mxu0 %v1606
    %3062 = vmatpush.msra.mxu0 %v1600
    %3063 = vmatpush.msra.mxu0 %v1594
    %3064 = vmatpush.msra.mxu0 %v1588
    %3065 = vmatpush.msra.mxu0 %v1582
    %3066 = vmatmul.f32.gmra.mxu0 %v3025
    %v3067 = vpop.f32.mrf.mxu0
    %v3068 = vadd.f32 %v3048, %v3067
    %3069 = vdwg.mxu0
    %3070 = vmatpush.msra.mxu0 %v1768
    %3071 = vmatpush.msra.mxu0 %v1762
    %3072 = vmatpush.msra.mxu0 %v1756
    %3073 = vmatpush.msra.mxu0 %v1750
    %3074 = vmatpush.msra.mxu0 %v1744
    %3075 = vmatpush.msra.mxu0 %v1738
    %3076 = vmatpush.msra.mxu0 %v1732
    %3077 = vmatpush.msra.mxu0 %v1726
    %3078 = vmatpush.msra.mxu0 %v1720
    %3079 = vmatpush.msra.mxu0 %v1714
    %3080 = vmatpush.msra.mxu0 %v1708
    %3081 = vmatpush.msra.mxu0 %v1702
    %3082 = vmatpush.msra.mxu0 %v1696
    %3083 = vmatpush.msra.mxu0 %v1690
    %3084 = vmatpush.msra.mxu0 %v1684
    %3085 = vmatpush.msra.mxu0 %v1678
    %3086 = vmatmul.f32.gmra.mxu0 %v3026
    %v3087 = vpop.f32.mrf.mxu0
    %v3088 = vadd.f32 %v3068, %v3087
    %3089 = vdwg.mxu0
    %3090 = vmatpush.msra.mxu0 %v1864
    %3091 = vmatpush.msra.mxu0 %v1858
    %3092 = vmatpush.msra.mxu0 %v1852
    %3093 = vmatpush.msra.mxu0 %v1846
    %3094 = vmatpush.msra.mxu0 %v1840
    %3095 = vmatpush.msra.mxu0 %v1834
    %3096 = vmatpush.msra.mxu0 %v1828
    %3097 = vmatpush.msra.mxu0 %v1822
    %3098 = vmatpush.msra.mxu0 %v1816
    %3099 = vmatpush.msra.mxu0 %v1810
    %3100 = vmatpush.msra.mxu0 %v1804
    %3101 = vmatpush.msra.mxu0 %v1798
    %3102 = vmatpush.msra.mxu0 %v1792
    %3103 = vmatpush.msra.mxu0 %v1786
    %3104 = vmatpush.msra.mxu0 %v1780
    %3105 = vmatpush.msra.mxu0 %v1774
    %3106 = vmatmul.f32.gmra.mxu0 %v3027
    %v3107 = vpop.f32.mrf.mxu0
    %v3108 = vadd.f32 %v3088, %v3107
    %3109 = vdwg.mxu0
    %3110 = vmatpush.msra.mxu0 %v1960
    %3111 = vmatpush.msra.mxu0 %v1954
    %3112 = vmatpush.msra.mxu0 %v1948
    %3113 = vmatpush.msra.mxu0 %v1942
    %3114 = vmatpush.msra.mxu0 %v1936
    %3115 = vmatpush.msra.mxu0 %v1930
    %3116 = vmatpush.msra.mxu0 %v1924
    %3117 = vmatpush.msra.mxu0 %v1918
    %3118 = vmatpush.msra.mxu0 %v1912
    %3119 = vmatpush.msra.mxu0 %v1906
    %3120 = vmatpush.msra.mxu0 %v1900
    %3121 = vmatpush.msra.mxu0 %v1894
    %3122 = vmatpush.msra.mxu0 %v1888
    %3123 = vmatpush.msra.mxu0 %v1882
    %3124 = vmatpush.msra.mxu0 %v1876
    %3125 = vmatpush.msra.mxu0 %v1870
    %3126 = vmatmul.f32.gmra.mxu0 %v3028
    %v3127 = vpop.f32.mrf.mxu0
    %v3128 = vadd.f32 %v3108, %v3127
    %3129 = vdwg.mxu0
    %3130 = vmatpush.msra.mxu0 %v2056
    %3131 = vmatpush.msra.mxu0 %v2050
    %3132 = vmatpush.msra.mxu0 %v2044
    %3133 = vmatpush.msra.mxu0 %v2038
    %3134 = vmatpush.msra.mxu0 %v2032
    %3135 = vmatpush.msra.mxu0 %v2026
    %3136 = vmatpush.msra.mxu0 %v2020
    %3137 = vmatpush.msra.mxu0 %v2014
    %3138 = vmatpush.msra.mxu0 %v2008
    %3139 = vmatpush.msra.mxu0 %v2002
    %3140 = vmatpush.msra.mxu0 %v1996
    %3141 = vmatpush.msra.mxu0 %v1990
    %3142 = vmatpush.msra.mxu0 %v1984
    %3143 = vmatpush.msra.mxu0 %v1978
    %3144 = vmatpush.msra.mxu0 %v1972
    %3145 = vmatpush.msra.mxu0 %v1966
    %3146 = vmatmul.f32.gmra.mxu0 %v3029
    %v3147 = vpop.f32.mrf.mxu0
    %v3148 = vadd.f32 %v3128, %v3147
    %3149 = vdwg.mxu0
    %3150 = vmatpush.msra.mxu0 %v1577
    %3151 = vmatpush.msra.mxu0 %v1571
    %3152 = vmatpush.msra.mxu0 %v1565
    %3153 = vmatpush.msra.mxu0 %v1559
    %3154 = vmatpush.msra.mxu0 %v1553
    %3155 = vmatpush.msra.mxu0 %v1547
    %3156 = vmatpush.msra.mxu0 %v1541
    %3157 = vmatpush.msra.mxu0 %v1535
    %3158 = vmatpush.msra.mxu0 %v1529
    %3159 = vmatpush.msra.mxu0 %v1523
    %3160 = vmatpush.msra.mxu0 %v1517
    %3161 = vmatpush.msra.mxu0 %v1511
    %3162 = vmatpush.msra.mxu0 %v1505
    %3163 = vmatpush.msra.mxu0 %v1499
    %3164 = vmatpush.msra.mxu0 %v1493
    %3165 = vmatpush.msra.mxu0 %v1487
    %3166 = vmatmul.f32.gmra.mxu0 %v3024
    %v3167 = vpop.f32.mrf.mxu0
    %v3168 = vadd.f32 0.0, %v3167
    %3169 = vdwg.mxu0
    %3170 = vmatpush.msra.mxu0 %v1673
    %3171 = vmatpush.msra.mxu0 %v1667
    %3172 = vmatpush.msra.mxu0 %v1661
    %3173 = vmatpush.msra.mxu0 %v1655
    %3174 = vmatpush.msra.mxu0 %v1649
    %3175 = vmatpush.msra.mxu0 %v1643
    %3176 = vmatpush.msra.mxu0 %v1637
    %3177 = vmatpush.msra.mxu0 %v1631
    %3178 = vmatpush.msra.mxu0 %v1625
    %3179 = vmatpush.msra.mxu0 %v1619
    %3180 = vmatpush.msra.mxu0 %v1613
    %3181 = vmatpush.msra.mxu0 %v1607
    %3182 = vmatpush.msra.mxu0 %v1601
    %3183 = vmatpush.msra.mxu0 %v1595
    %3184 = vmatpush.msra.mxu0 %v1589
    %3185 = vmatpush.msra.mxu0 %v1583
    %3186 = vmatmul.f32.gmra.mxu0 %v3025
    %v3187 = vpop.f32.mrf.mxu0
    %v3188 = vadd.f32 %v3168, %v3187
    %3189 = vdwg.mxu0
    %3190 = vmatpush.msra.mxu0 %v1769
    %3191 = vmatpush.msra.mxu0 %v1763
    %3192 = vmatpush.msra.mxu0 %v1757
    %3193 = vmatpush.msra.mxu0 %v1751
    %3194 = vmatpush.msra.mxu0 %v1745
    %3195 = vmatpush.msra.mxu0 %v1739
    %3196 = vmatpush.msra.mxu0 %v1733
    %3197 = vmatpush.msra.mxu0 %v1727
    %3198 = vmatpush.msra.mxu0 %v1721
    %3199 = vmatpush.msra.mxu0 %v1715
    %3200 = vmatpush.msra.mxu0 %v1709
    %3201 = vmatpush.msra.mxu0 %v1703
    %3202 = vmatpush.msra.mxu0 %v1697
    %3203 = vmatpush.msra.mxu0 %v1691
    %3204 = vmatpush.msra.mxu0 %v1685
    %3205 = vmatpush.msra.mxu0 %v1679
    %3206 = vmatmul.f32.gmra.mxu0 %v3026
    %v3207 = vpop.f32.mrf.mxu0
    %v3208 = vadd.f32 %v3188, %v3207
    %3209 = vdwg.mxu0
    %3210 = vmatpush.msra.mxu0 %v1865
    %3211 = vmatpush.msra.mxu0 %v1859
    %3212 = vmatpush.msra.mxu0 %v1853
    %3213 = vmatpush.msra.mxu0 %v1847
    %3214 = vmatpush.msra.mxu0 %v1841
    %3215 = vmatpush.msra.mxu0 %v1835
    %3216 = vmatpush.msra.mxu0 %v1829
    %3217 = vmatpush.msra.mxu0 %v1823
    %3218 = vmatpush.msra.mxu0 %v1817
    %3219 = vmatpush.msra.mxu0 %v1811
    %3220 = vmatpush.msra.mxu0 %v1805
    %3221 = vmatpush.msra.mxu0 %v1799
    %3222 = vmatpush.msra.mxu0 %v1793
    %3223 = vmatpush.msra.mxu0 %v1787
    %3224 = vmatpush.msra.mxu0 %v1781
    %3225 = vmatpush.msra.mxu0 %v1775
    %3226 = vmatmul.f32.gmra.mxu0 %v3027
    %v3227 = vpop.f32.mrf.mxu0
    %v3228 = vadd.f32 %v3208, %v3227
    %3229 = vdwg.mxu0
    %3230 = vmatpush.msra.mxu0 %v1961
    %3231 = vmatpush.msra.mxu0 %v1955
    %3232 = vmatpush.msra.mxu0 %v1949
    %3233 = vmatpush.msra.mxu0 %v1943
    %3234 = vmatpush.msra.mxu0 %v1937
    %3235 = vmatpush.msra.mxu0 %v1931
    %3236 = vmatpush.msra.mxu0 %v1925
    %3237 = vmatpush.msra.mxu0 %v1919
    %3238 = vmatpush.msra.mxu0 %v1913
    %3239 = vmatpush.msra.mxu0 %v1907
    %3240 = vmatpush.msra.mxu0 %v1901
    %3241 = vmatpush.msra.mxu0 %v1895
    %3242 = vmatpush.msra.mxu0 %v1889
    %3243 = vmatpush.msra.mxu0 %v1883
    %3244 = vmatpush.msra.mxu0 %v1877
    %3245 = vmatpush.msra.mxu0 %v1871
    %3246 = vmatmul.f32.gmra.mxu0 %v3028
    %v3247 = vpop.f32.mrf.mxu0
    %v3248 = vadd.f32 %v3228, %v3247
    %3249 = vdwg.mxu0
    %3250 = vmatpush.msra.mxu0 %v2057
    %3251 = vmatpush.msra.mxu0 %v2051
    %3252 = vmatpush.msra.mxu0 %v2045
    %3253 = vmatpush.msra.mxu0 %v2039
    %3254 = vmatpush.msra.mxu0 %v2033
    %3255 = vmatpush.msra.mxu0 %v2027
    %3256 = vmatpush.msra.mxu0 %v2021
    %3257 = vmatpush.msra.mxu0 %v2015
    %3258 = vmatpush.msra.mxu0 %v2009
    %3259 = vmatpush.msra.mxu0 %v2003
    %3260 = vmatpush.msra.mxu0 %v1997
    %3261 = vmatpush.msra.mxu0 %v1991
    %3262 = vmatpush.msra.mxu0 %v1985
    %3263 = vmatpush.msra.mxu0 %v1979
    %3264 = vmatpush.msra.mxu0 %v1973
    %3265 = vmatpush.msra.mxu0 %v1967
    %3266 = vmatmul.f32.gmra.mxu0 %v3029
    %v3267 = vpop.f32.mrf.mxu0
    %v3268 = vadd.f32 %v3248, %v3267
    %3269 = vdwg.mxu0
    %3270 = vmatpush.msra.mxu0 %v1578
    %3271 = vmatpush.msra.mxu0 %v1572
    %3272 = vmatpush.msra.mxu0 %v1566
    %3273 = vmatpush.msra.mxu0 %v1560
    %3274 = vmatpush.msra.mxu0 %v1554
    %3275 = vmatpush.msra.mxu0 %v1548
    %3276 = vmatpush.msra.mxu0 %v1542
    %3277 = vmatpush.msra.mxu0 %v1536
    %3278 = vmatpush.msra.mxu0 %v1530
    %3279 = vmatpush.msra.mxu0 %v1524
    %3280 = vmatpush.msra.mxu0 %v1518
    %3281 = vmatpush.msra.mxu0 %v1512
    %3282 = vmatpush.msra.mxu0 %v1506
    %3283 = vmatpush.msra.mxu0 %v1500
    %3284 = vmatpush.msra.mxu0 %v1494
    %3285 = vmatpush.msra.mxu0 %v1488
    %3286 = vmatmul.f32.gmra.mxu0 %v3024
    %v3287 = vpop.f32.mrf.mxu0
    %v3288 = vadd.f32 0.0, %v3287
    %3289 = vdwg.mxu0
    %3290 = vmatpush.msra.mxu0 %v1674
    %3291 = vmatpush.msra.mxu0 %v1668
    %3292 = vmatpush.msra.mxu0 %v1662
    %3293 = vmatpush.msra.mxu0 %v1656
    %3294 = vmatpush.msra.mxu0 %v1650
    %3295 = vmatpush.msra.mxu0 %v1644
    %3296 = vmatpush.msra.mxu0 %v1638
    %3297 = vmatpush.msra.mxu0 %v1632
    %3298 = vmatpush.msra.mxu0 %v1626
    %3299 = vmatpush.msra.mxu0 %v1620
    %3300 = vmatpush.msra.mxu0 %v1614
    %3301 = vmatpush.msra.mxu0 %v1608
    %3302 = vmatpush.msra.mxu0 %v1602
    %3303 = vmatpush.msra.mxu0 %v1596
    %3304 = vmatpush.msra.mxu0 %v1590
    %3305 = vmatpush.msra.mxu0 %v1584
    %3306 = vmatmul.f32.gmra.mxu0 %v3025
    %v3307 = vpop.f32.mrf.mxu0
    %v3308 = vadd.f32 %v3288, %v3307
    %3309 = vdwg.mxu0
    %3310 = vmatpush.msra.mxu0 %v1770
    %3311 = vmatpush.msra.mxu0 %v1764
    %3312 = vmatpush.msra.mxu0 %v1758
    %3313 = vmatpush.msra.mxu0 %v1752
    %3314 = vmatpush.msra.mxu0 %v1746
    %3315 = vmatpush.msra.mxu0 %v1740
    %3316 = vmatpush.msra.mxu0 %v1734
    %3317 = vmatpush.msra.mxu0 %v1728
    %3318 = vmatpush.msra.mxu0 %v1722
    %3319 = vmatpush.msra.mxu0 %v1716
    %3320 = vmatpush.msra.mxu0 %v1710
    %3321 = vmatpush.msra.mxu0 %v1704
    %3322 = vmatpush.msra.mxu0 %v1698
    %3323 = vmatpush.msra.mxu0 %v1692
    %3324 = vmatpush.msra.mxu0 %v1686
    %3325 = vmatpush.msra.mxu0 %v1680
    %3326 = vmatmul.f32.gmra.mxu0 %v3026
    %v3327 = vpop.f32.mrf.mxu0
    %v3328 = vadd.f32 %v3308, %v3327
    %3329 = vdwg.mxu0
    %3330 = vmatpush.msra.mxu0 %v1866
    %3331 = vmatpush.msra.mxu0 %v1860
    %3332 = vmatpush.msra.mxu0 %v1854
    %3333 = vmatpush.msra.mxu0 %v1848
    %3334 = vmatpush.msra.mxu0 %v1842
    %3335 = vmatpush.msra.mxu0 %v1836
    %3336 = vmatpush.msra.mxu0 %v1830
    %3337 = vmatpush.msra.mxu0 %v1824
    %3338 = vmatpush.msra.mxu0 %v1818
    %3339 = vmatpush.msra.mxu0 %v1812
    %3340 = vmatpush.msra.mxu0 %v1806
    %3341 = vmatpush.msra.mxu0 %v1800
    %3342 = vmatpush.msra.mxu0 %v1794
    %3343 = vmatpush.msra.mxu0 %v1788
    %3344 = vmatpush.msra.mxu0 %v1782
    %3345 = vmatpush.msra.mxu0 %v1776
    %3346 = vmatmul.f32.gmra.mxu0 %v3027
    %v3347 = vpop.f32.mrf.mxu0
    %v3348 = vadd.f32 %v3328, %v3347
    %3349 = vdwg.mxu0
    %3350 = vmatpush.msra.mxu0 %v1962
    %3351 = vmatpush.msra.mxu0 %v1956
    %3352 = vmatpush.msra.mxu0 %v1950
    %3353 = vmatpush.msra.mxu0 %v1944
    %3354 = vmatpush.msra.mxu0 %v1938
    %3355 = vmatpush.msra.mxu0 %v1932
    %3356 = vmatpush.msra.mxu0 %v1926
    %3357 = vmatpush.msra.mxu0 %v1920
    %3358 = vmatpush.msra.mxu0 %v1914
    %3359 = vmatpush.msra.mxu0 %v1908
    %3360 = vmatpush.msra.mxu0 %v1902
    %3361 = vmatpush.msra.mxu0 %v1896
    %3362 = vmatpush.msra.mxu0 %v1890
    %3363 = vmatpush.msra.mxu0 %v1884
    %3364 = vmatpush.msra.mxu0 %v1878
    %3365 = vmatpush.msra.mxu0 %v1872
    %3366 = vmatmul.f32.gmra.mxu0 %v3028
    %v3367 = vpop.f32.mrf.mxu0
    %v3368 = vadd.f32 %v3348, %v3367
    %3369 = vdwg.mxu0
    %3370 = vmatpush.msra.mxu0 %v2058
    %3371 = vmatpush.msra.mxu0 %v2052
    %3372 = vmatpush.msra.mxu0 %v2046
    %3373 = vmatpush.msra.mxu0 %v2040
    %3374 = vmatpush.msra.mxu0 %v2034
    %3375 = vmatpush.msra.mxu0 %v2028
    %3376 = vmatpush.msra.mxu0 %v2022
    %3377 = vmatpush.msra.mxu0 %v2016
    %3378 = vmatpush.msra.mxu0 %v2010
    %3379 = vmatpush.msra.mxu0 %v2004
    %3380 = vmatpush.msra.mxu0 %v1998
    %3381 = vmatpush.msra.mxu0 %v1992
    %3382 = vmatpush.msra.mxu0 %v1986
    %3383 = vmatpush.msra.mxu0 %v1980
    %3384 = vmatpush.msra.mxu0 %v1974
    %3385 = vmatpush.msra.mxu0 %v1968
    %3386 = vmatmul.f32.gmra.mxu0 %v3029
    %v3387 = vpop.f32.mrf.mxu0
    %v3388 = vadd.f32 %v3368, %v3387
    %3389 = vdwg.mxu0
    %3390 = vmatpush.msra.mxu0 %v1579
    %3391 = vmatpush.msra.mxu0 %v1573
    %3392 = vmatpush.msra.mxu0 %v1567
    %3393 = vmatpush.msra.mxu0 %v1561
    %3394 = vmatpush.msra.mxu0 %v1555
    %3395 = vmatpush.msra.mxu0 %v1549
    %3396 = vmatpush.msra.mxu0 %v1543
    %3397 = vmatpush.msra.mxu0 %v1537
    %3398 = vmatpush.msra.mxu0 %v1531
    %3399 = vmatpush.msra.mxu0 %v1525
    %3400 = vmatpush.msra.mxu0 %v1519
    %3401 = vmatpush.msra.mxu0 %v1513
    %3402 = vmatpush.msra.mxu0 %v1507
    %3403 = vmatpush.msra.mxu0 %v1501
    %3404 = vmatpush.msra.mxu0 %v1495
    %3405 = vmatpush.msra.mxu0 %v1489
    %3406 = vmatmul.f32.gmra.mxu0 %v3024
    %v3407 = vpop.f32.mrf.mxu0
    %v3408 = vadd.f32 0.0, %v3407
    %3409 = vdwg.mxu0
    %3410 = vmatpush.msra.mxu0 %v1675
    %3411 = vmatpush.msra.mxu0 %v1669
    %3412 = vmatpush.msra.mxu0 %v1663
    %3413 = vmatpush.msra.mxu0 %v1657
    %3414 = vmatpush.msra.mxu0 %v1651
    %3415 = vmatpush.msra.mxu0 %v1645
    %3416 = vmatpush.msra.mxu0 %v1639
    %3417 = vmatpush.msra.mxu0 %v1633
    %3418 = vmatpush.msra.mxu0 %v1627
    %3419 = vmatpush.msra.mxu0 %v1621
    %3420 = vmatpush.msra.mxu0 %v1615
    %3421 = vmatpush.msra.mxu0 %v1609
    %3422 = vmatpush.msra.mxu0 %v1603
    %3423 = vmatpush.msra.mxu0 %v1597
    %3424 = vmatpush.msra.mxu0 %v1591
    %3425 = vmatpush.msra.mxu0 %v1585
    %3426 = vmatmul.f32.gmra.mxu0 %v3025
    %v3427 = vpop.f32.mrf.mxu0
    %v3428 = vadd.f32 %v3408, %v3427
    %3429 = vdwg.mxu0
    %3430 = vmatpush.msra.mxu0 %v1771
    %3431 = vmatpush.msra.mxu0 %v1765
    %3432 = vmatpush.msra.mxu0 %v1759
    %3433 = vmatpush.msra.mxu0 %v1753
    %3434 = vmatpush.msra.mxu0 %v1747
    %3435 = vmatpush.msra.mxu0 %v1741
    %3436 = vmatpush.msra.mxu0 %v1735
    %3437 = vmatpush.msra.mxu0 %v1729
    %3438 = vmatpush.msra.mxu0 %v1723
    %3439 = vmatpush.msra.mxu0 %v1717
    %3440 = vmatpush.msra.mxu0 %v1711
    %3441 = vmatpush.msra.mxu0 %v1705
    %3442 = vmatpush.msra.mxu0 %v1699
    %3443 = vmatpush.msra.mxu0 %v1693
    %3444 = vmatpush.msra.mxu0 %v1687
    %3445 = vmatpush.msra.mxu0 %v1681
    %3446 = vmatmul.f32.gmra.mxu0 %v3026
    %v3447 = vpop.f32.mrf.mxu0
    %v3448 = vadd.f32 %v3428, %v3447
    %3449 = vdwg.mxu0
    %3450 = vmatpush.msra.mxu0 %v1867
    %3451 = vmatpush.msra.mxu0 %v1861
    %3452 = vmatpush.msra.mxu0 %v1855
    %3453 = vmatpush.msra.mxu0 %v1849
    %3454 = vmatpush.msra.mxu0 %v1843
    %3455 = vmatpush.msra.mxu0 %v1837
    %3456 = vmatpush.msra.mxu0 %v1831
    %3457 = vmatpush.msra.mxu0 %v1825
    %3458 = vmatpush.msra.mxu0 %v1819
    %3459 = vmatpush.msra.mxu0 %v1813
    %3460 = vmatpush.msra.mxu0 %v1807
    %3461 = vmatpush.msra.mxu0 %v1801
    %3462 = vmatpush.msra.mxu0 %v1795
    %3463 = vmatpush.msra.mxu0 %v1789
    %3464 = vmatpush.msra.mxu0 %v1783
    %3465 = vmatpush.msra.mxu0 %v1777
    %3466 = vmatmul.f32.gmra.mxu0 %v3027
    %v3467 = vpop.f32.mrf.mxu0
    %v3468 = vadd.f32 %v3448, %v3467
    %3469 = vdwg.mxu0
    %3470 = vmatpush.msra.mxu0 %v1963
    %3471 = vmatpush.msra.mxu0 %v1957
    %3472 = vmatpush.msra.mxu0 %v1951
    %3473 = vmatpush.msra.mxu0 %v1945
    %3474 = vmatpush.msra.mxu0 %v1939
    %3475 = vmatpush.msra.mxu0 %v1933
    %3476 = vmatpush.msra.mxu0 %v1927
    %3477 = vmatpush.msra.mxu0 %v1921
    %3478 = vmatpush.msra.mxu0 %v1915
    %3479 = vmatpush.msra.mxu0 %v1909
    %3480 = vmatpush.msra.mxu0 %v1903
    %3481 = vmatpush.msra.mxu0 %v1897
    %3482 = vmatpush.msra.mxu0 %v1891
    %3483 = vmatpush.msra.mxu0 %v1885
    %3484 = vmatpush.msra.mxu0 %v1879
    %3485 = vmatpush.msra.mxu0 %v1873
    %3486 = vmatmul.f32.gmra.mxu0 %v3028
    %v3487 = vpop.f32.mrf.mxu0
    %v3488 = vadd.f32 %v3468, %v3487
    %3489 = vdwg.mxu0
    %3490 = vmatpush.msra.mxu0 %v2059
    %3491 = vmatpush.msra.mxu0 %v2053
    %3492 = vmatpush.msra.mxu0 %v2047
    %3493 = vmatpush.msra.mxu0 %v2041
    %3494 = vmatpush.msra.mxu0 %v2035
    %3495 = vmatpush.msra.mxu0 %v2029
    %3496 = vmatpush.msra.mxu0 %v2023
    %3497 = vmatpush.msra.mxu0 %v2017
    %3498 = vmatpush.msra.mxu0 %v2011
    %3499 = vmatpush.msra.mxu0 %v2005
    %3500 = vmatpush.msra.mxu0 %v1999
    %3501 = vmatpush.msra.mxu0 %v1993
    %3502 = vmatpush.msra.mxu0 %v1987
    %3503 = vmatpush.msra.mxu0 %v1981
    %3504 = vmatpush.msra.mxu0 %v1975
    %3505 = vmatpush.msra.mxu0 %v1969
    %3506 = vmatmul.f32.gmra.mxu0 %v3029
    %v3507 = vpop.f32.mrf.mxu0
    %v3508 = vadd.f32 %v3488, %v3507
    %3509 = vdwg.mxu0
    %3510 = vmatpush.msra.mxu0 %v1580
    %3511 = vmatpush.msra.mxu0 %v1574
    %3512 = vmatpush.msra.mxu0 %v1568
    %3513 = vmatpush.msra.mxu0 %v1562
    %3514 = vmatpush.msra.mxu0 %v1556
    %3515 = vmatpush.msra.mxu0 %v1550
    %3516 = vmatpush.msra.mxu0 %v1544
    %3517 = vmatpush.msra.mxu0 %v1538
    %3518 = vmatpush.msra.mxu0 %v1532
    %3519 = vmatpush.msra.mxu0 %v1526
    %3520 = vmatpush.msra.mxu0 %v1520
    %3521 = vmatpush.msra.mxu0 %v1514
    %3522 = vmatpush.msra.mxu0 %v1508
    %3523 = vmatpush.msra.mxu0 %v1502
    %3524 = vmatpush.msra.mxu0 %v1496
    %3525 = vmatpush.msra.mxu0 %v1490
    %3526 = vmatmul.f32.gmra.mxu0 %v3024
    %v3527 = vpop.f32.mrf.mxu0
    %v3528 = vadd.f32 0.0, %v3527
    %3529 = vdwg.mxu0
    %3530 = vmatpush.msra.mxu0 %v1676
    %3531 = vmatpush.msra.mxu0 %v1670
    %3532 = vmatpush.msra.mxu0 %v1664
    %3533 = vmatpush.msra.mxu0 %v1658
    %3534 = vmatpush.msra.mxu0 %v1652
    %3535 = vmatpush.msra.mxu0 %v1646
    %3536 = vmatpush.msra.mxu0 %v1640
    %3537 = vmatpush.msra.mxu0 %v1634
    %3538 = vmatpush.msra.mxu0 %v1628
    %3539 = vmatpush.msra.mxu0 %v1622
    %3540 = vmatpush.msra.mxu0 %v1616
    %3541 = vmatpush.msra.mxu0 %v1610
    %3542 = vmatpush.msra.mxu0 %v1604
    %3543 = vmatpush.msra.mxu0 %v1598
    %3544 = vmatpush.msra.mxu0 %v1592
    %3545 = vmatpush.msra.mxu0 %v1586
    %3546 = vmatmul.f32.gmra.mxu0 %v3025
    %v3547 = vpop.f32.mrf.mxu0
    %v3548 = vadd.f32 %v3528, %v3547
    %3549 = vdwg.mxu0
    %3550 = vmatpush.msra.mxu0 %v1772
    %3551 = vmatpush.msra.mxu0 %v1766
    %3552 = vmatpush.msra.mxu0 %v1760
    %3553 = vmatpush.msra.mxu0 %v1754
    %3554 = vmatpush.msra.mxu0 %v1748
    %3555 = vmatpush.msra.mxu0 %v1742
    %3556 = vmatpush.msra.mxu0 %v1736
    %3557 = vmatpush.msra.mxu0 %v1730
    %3558 = vmatpush.msra.mxu0 %v1724
    %3559 = vmatpush.msra.mxu0 %v1718
    %3560 = vmatpush.msra.mxu0 %v1712
    %3561 = vmatpush.msra.mxu0 %v1706
    %3562 = vmatpush.msra.mxu0 %v1700
    %3563 = vmatpush.msra.mxu0 %v1694
    %3564 = vmatpush.msra.mxu0 %v1688
    %3565 = vmatpush.msra.mxu0 %v1682
    %3566 = vmatmul.f32.gmra.mxu0 %v3026
    %v3567 = vpop.f32.mrf.mxu0
    %v3568 = vadd.f32 %v3548, %v3567
    %3569 = vdwg.mxu0
    %3570 = vmatpush.msra.mxu0 %v1868
    %3571 = vmatpush.msra.mxu0 %v1862
    %3572 = vmatpush.msra.mxu0 %v1856
    %3573 = vmatpush.msra.mxu0 %v1850
    %3574 = vmatpush.msra.mxu0 %v1844
    %3575 = vmatpush.msra.mxu0 %v1838
    %3576 = vmatpush.msra.mxu0 %v1832
    %3577 = vmatpush.msra.mxu0 %v1826
    %3578 = vmatpush.msra.mxu0 %v1820
    %3579 = vmatpush.msra.mxu0 %v1814
    %3580 = vmatpush.msra.mxu0 %v1808
    %3581 = vmatpush.msra.mxu0 %v1802
    %3582 = vmatpush.msra.mxu0 %v1796
    %3583 = vmatpush.msra.mxu0 %v1790
    %3584 = vmatpush.msra.mxu0 %v1784
    %3585 = vmatpush.msra.mxu0 %v1778
    %3586 = vmatmul.f32.gmra.mxu0 %v3027
    %v3587 = vpop.f32.mrf.mxu0
    %v3588 = vadd.f32 %v3568, %v3587
    %3589 = vdwg.mxu0
    %3590 = vmatpush.msra.mxu0 %v1964
    %3591 = vmatpush.msra.mxu0 %v1958
    %3592 = vmatpush.msra.mxu0 %v1952
    %3593 = vmatpush.msra.mxu0 %v1946
    %3594 = vmatpush.msra.mxu0 %v1940
    %3595 = vmatpush.msra.mxu0 %v1934
    %3596 = vmatpush.msra.mxu0 %v1928
    %3597 = vmatpush.msra.mxu0 %v1922
    %3598 = vmatpush.msra.mxu0 %v1916
    %3599 = vmatpush.msra.mxu0 %v1910
    %3600 = vmatpush.msra.mxu0 %v1904
    %3601 = vmatpush.msra.mxu0 %v1898
    %3602 = vmatpush.msra.mxu0 %v1892
    %3603 = vmatpush.msra.mxu0 %v1886
    %3604 = vmatpush.msra.mxu0 %v1880
    %3605 = vmatpush.msra.mxu0 %v1874
    %3606 = vmatmul.f32.gmra.mxu0 %v3028
    %v3607 = vpop.f32.mrf.mxu0
    %v3608 = vadd.f32 %v3588, %v3607
    %3609 = vdwg.mxu0
    %3610 = vmatpush.msra.mxu0 %v2060
    %3611 = vmatpush.msra.mxu0 %v2054
    %3612 = vmatpush.msra.mxu0 %v2048
    %3613 = vmatpush.msra.mxu0 %v2042
    %3614 = vmatpush.msra.mxu0 %v2036
    %3615 = vmatpush.msra.mxu0 %v2030
    %3616 = vmatpush.msra.mxu0 %v2024
    %3617 = vmatpush.msra.mxu0 %v2018
    %3618 = vmatpush.msra.mxu0 %v2012
    %3619 = vmatpush.msra.mxu0 %v2006
    %3620 = vmatpush.msra.mxu0 %v2000
    %3621 = vmatpush.msra.mxu0 %v1994
    %3622 = vmatpush.msra.mxu0 %v1988
    %3623 = vmatpush.msra.mxu0 %v1982
    %3624 = vmatpush.msra.mxu0 %v1976
    %3625 = vmatpush.msra.mxu0 %v1970
    %3626 = vmatmul.f32.gmra.mxu0 %v3029
    %v3627 = vpop.f32.mrf.mxu0
    %v3628 = vadd.f32 %v3608, %v3627
    %3629 = vdwg.mxu0
    %3630 = vmatpush.msra.mxu0 %v1581
    %3631 = vmatpush.msra.mxu0 %v1575
    %3632 = vmatpush.msra.mxu0 %v1569
    %3633 = vmatpush.msra.mxu0 %v1563
    %3634 = vmatpush.msra.mxu0 %v1557
    %3635 = vmatpush.msra.mxu0 %v1551
    %3636 = vmatpush.msra.mxu0 %v1545
    %3637 = vmatpush.msra.mxu0 %v1539
    %3638 = vmatpush.msra.mxu0 %v1533
    %3639 = vmatpush.msra.mxu0 %v1527
    %3640 = vmatpush.msra.mxu0 %v1521
    %3641 = vmatpush.msra.mxu0 %v1515
    %3642 = vmatpush.msra.mxu0 %v1509
    %3643 = vmatpush.msra.mxu0 %v1503
    %3644 = vmatpush.msra.mxu0 %v1497
    %3645 = vmatpush.msra.mxu0 %v1491
    %3646 = vmatmul.f32.gmra.mxu0 %v3024
    %v3647 = vpop.f32.mrf.mxu0
    %v3648 = vadd.f32 0.0, %v3647
    %3649 = vdwg.mxu0
    %3650 = vmatpush.msra.mxu0 %v1677
    %3651 = vmatpush.msra.mxu0 %v1671
    %3652 = vmatpush.msra.mxu0 %v1665
    %3653 = vmatpush.msra.mxu0 %v1659
    %3654 = vmatpush.msra.mxu0 %v1653
    %3655 = vmatpush.msra.mxu0 %v1647
    %3656 = vmatpush.msra.mxu0 %v1641
    %3657 = vmatpush.msra.mxu0 %v1635
    %3658 = vmatpush.msra.mxu0 %v1629
    %3659 = vmatpush.msra.mxu0 %v1623
    %3660 = vmatpush.msra.mxu0 %v1617
    %3661 = vmatpush.msra.mxu0 %v1611
    %3662 = vmatpush.msra.mxu0 %v1605
    %3663 = vmatpush.msra.mxu0 %v1599
    %3664 = vmatpush.msra.mxu0 %v1593
    %3665 = vmatpush.msra.mxu0 %v1587
    %3666 = vmatmul.f32.gmra.mxu0 %v3025
    %v3667 = vpop.f32.mrf.mxu0
    %v3668 = vadd.f32 %v3648, %v3667
    %3669 = vdwg.mxu0
    %3670 = vmatpush.msra.mxu0 %v1773
    %3671 = vmatpush.msra.mxu0 %v1767
    %3672 = vmatpush.msra.mxu0 %v1761
    %3673 = vmatpush.msra.mxu0 %v1755
    %3674 = vmatpush.msra.mxu0 %v1749
    %3675 = vmatpush.msra.mxu0 %v1743
    %3676 = vmatpush.msra.mxu0 %v1737
    %3677 = vmatpush.msra.mxu0 %v1731
    %3678 = vmatpush.msra.mxu0 %v1725
    %3679 = vmatpush.msra.mxu0 %v1719
    %3680 = vmatpush.msra.mxu0 %v1713
    %3681 = vmatpush.msra.mxu0 %v1707
    %3682 = vmatpush.msra.mxu0 %v1701
    %3683 = vmatpush.msra.mxu0 %v1695
    %3684 = vmatpush.msra.mxu0 %v1689
    %3685 = vmatpush.msra.mxu0 %v1683
    %3686 = vmatmul.f32.gmra.mxu0 %v3026
    %v3687 = vpop.f32.mrf.mxu0
    %v3688 = vadd.f32 %v3668, %v3687
    %3689 = vdwg.mxu0
    %3690 = vmatpush.msra.mxu0 %v1869
    %3691 = vmatpush.msra.mxu0 %v1863
    %3692 = vmatpush.msra.mxu0 %v1857
    %3693 = vmatpush.msra.mxu0 %v1851
    %3694 = vmatpush.msra.mxu0 %v1845
    %3695 = vmatpush.msra.mxu0 %v1839
    %3696 = vmatpush.msra.mxu0 %v1833
    %3697 = vmatpush.msra.mxu0 %v1827
    %3698 = vmatpush.msra.mxu0 %v1821
    %3699 = vmatpush.msra.mxu0 %v1815
    %3700 = vmatpush.msra.mxu0 %v1809
    %3701 = vmatpush.msra.mxu0 %v1803
    %3702 = vmatpush.msra.mxu0 %v1797
    %3703 = vmatpush.msra.mxu0 %v1791
    %3704 = vmatpush.msra.mxu0 %v1785
    %3705 = vmatpush.msra.mxu0 %v1779
    %3706 = vmatmul.f32.gmra.mxu0 %v3027
    %v3707 = vpop.f32.mrf.mxu0
    %v3708 = vadd.f32 %v3688, %v3707
    %3709 = vdwg.mxu0
    %3710 = vmatpush.msra.mxu0 %v1965
    %3711 = vmatpush.msra.mxu0 %v1959
    %3712 = vmatpush.msra.mxu0 %v1953
    %3713 = vmatpush.msra.mxu0 %v1947
    %3714 = vmatpush.msra.mxu0 %v1941
    %3715 = vmatpush.msra.mxu0 %v1935
    %3716 = vmatpush.msra.mxu0 %v1929
    %3717 = vmatpush.msra.mxu0 %v1923
    %3718 = vmatpush.msra.mxu0 %v1917
    %3719 = vmatpush.msra.mxu0 %v1911
    %3720 = vmatpush.msra.mxu0 %v1905
    %3721 = vmatpush.msra.mxu0 %v1899
    %3722 = vmatpush.msra.mxu0 %v1893
    %3723 = vmatpush.msra.mxu0 %v1887
    %3724 = vmatpush.msra.mxu0 %v1881
    %3725 = vmatpush.msra.mxu0 %v1875
    %3726 = vmatmul.f32.gmra.mxu0 %v3028
    %v3727 = vpop.f32.mrf.mxu0
    %v3728 = vadd.f32 %v3708, %v3727
    %3729 = vdwg.mxu0
    %3730 = vmatpush.msra.mxu0 %v2061
    %3731 = vmatpush.msra.mxu0 %v2055
    %3732 = vmatpush.msra.mxu0 %v2049
    %3733 = vmatpush.msra.mxu0 %v2043
    %3734 = vmatpush.msra.mxu0 %v2037
    %3735 = vmatpush.msra.mxu0 %v2031
    %3736 = vmatpush.msra.mxu0 %v2025
    %3737 = vmatpush.msra.mxu0 %v2019
    %3738 = vmatpush.msra.mxu0 %v2013
    %3739 = vmatpush.msra.mxu0 %v2007
    %3740 = vmatpush.msra.mxu0 %v2001
    %3741 = vmatpush.msra.mxu0 %v1995
    %3742 = vmatpush.msra.mxu0 %v1989
    %3743 = vmatpush.msra.mxu0 %v1983
    %3744 = vmatpush.msra.mxu0 %v1977
    %3745 = vmatpush.msra.mxu0 %v1971
    %3746 = vmatmul.f32.gmra.mxu0 %v3029
    %v3747 = vpop.f32.mrf.mxu0
    %v3748 = vadd.f32 %v3728, %v3747
    %3749 = vdwg.mxu0
    %v3750 = vrot.slane %v3148, 4
    %v3751 = vadd.f32 %v3148, %v3750
    %v3752 = vrot.slane %v3751, 2
    %v3753 = vadd.f32 %v3751, %v3752
    %v3754 = vrot.slane %v3753, 1
    %v3755 = vadd.f32 %v3753, %v3754
    %v3756 = vrot.slane %v3268, 4
    %v3757 = vadd.f32 %v3268, %v3756
    %v3758 = vrot.slane %v3757, 2
    %v3759 = vadd.f32 %v3757, %v3758
    %v3760 = vrot.slane %v3759, 1
    %v3761 = vadd.f32 %v3759, %v3760
    %v3762 = vrot.slane %v3388, 4
    %v3763 = vadd.f32 %v3388, %v3762
    %v3764 = vrot.slane %v3763, 2
    %v3765 = vadd.f32 %v3763, %v3764
    %v3766 = vrot.slane %v3765, 1
    %v3767 = vadd.f32 %v3765, %v3766
    %v3768 = vrot.slane %v3508, 4
    %v3769 = vadd.f32 %v3508, %v3768
    %v3770 = vrot.slane %v3769, 2
    %v3771 = vadd.f32 %v3769, %v3770
    %v3772 = vrot.slane %v3771, 1
    %v3773 = vadd.f32 %v3771, %v3772
    %v3774 = vrot.slane %v3628, 4
    %v3775 = vadd.f32 %v3628, %v3774
    %v3776 = vrot.slane %v3775, 2
    %v3777 = vadd.f32 %v3775, %v3776
    %v3778 = vrot.slane %v3777, 1
    %v3779 = vadd.f32 %v3777, %v3778
    %v3780 = vrot.slane %v3748, 4
    %v3781 = vadd.f32 %v3748, %v3780
    %v3782 = vrot.slane %v3781, 2
    %v3783 = vadd.f32 %v3781, %v3782
    %v3784 = vrot.slane %v3783, 1
    %v3785 = vadd.f32 %v3783, %v3784
    %v3786 = vmul.f32 %v3755, %v976
    %v3787 = vmul.f32 %v3761, %v976
    %v3788 = vmul.f32 %v3767, %v976
    %v3789 = vmul.f32 %v3773, %v976
    %v3790 = vmul.f32 %v3779, %v976
    %v3791 = vmul.f32 %v3785, %v976
    %v3792 = vsub.f32 %v3148, %v3786
    %v3793 = vsub.f32 %v3268, %v3787
    %v3794 = vsub.f32 %v3388, %v3788
    %v3795 = vsub.f32 %v3508, %v3789
    %v3796 = vsub.f32 %v3628, %v3790
    %v3797 = vsub.f32 %v3748, %v3791
    %v3798 = vmul.f32 %v3792, %v3792
    %v3799 = vmul.f32 %v3793, %v3793
    %v3800 = vmul.f32 %v3794, %v3794
    %v3801 = vmul.f32 %v3795, %v3795
    %v3802 = vmul.f32 %v3796, %v3796
    %v3803 = vmul.f32 %v3797, %v3797
    %v3804 = vrot.slane %v3798, 4
    %v3805 = vadd.f32 %v3798, %v3804
    %v3806 = vrot.slane %v3805, 2
    %v3807 = vadd.f32 %v3805, %v3806
    %v3808 = vrot.slane %v3807, 1
    %v3809 = vadd.f32 %v3807, %v3808
    %v3810 = vrot.slane %v3799, 4
    %v3811 = vadd.f32 %v3799, %v3810
    %v3812 = vrot.slane %v3811, 2
    %v3813 = vadd.f32 %v3811, %v3812
    %v3814 = vrot.slane %v3813, 1
    %v3815 = vadd.f32 %v3813, %v3814
    %v3816 = vrot.slane %v3800, 4
    %v3817 = vadd.f32 %v3800, %v3816
    %v3818 = vrot.slane %v3817, 2
    %v3819 = vadd.f32 %v3817, %v3818
    %v3820 = vrot.slane %v3819, 1
    %v3821 = vadd.f32 %v3819, %v3820
    %v3822 = vrot.slane %v3801, 4
    %v3823 = vadd.f32 %v3801, %v3822
    %v3824 = vrot.slane %v3823, 2
    %v3825 = vadd.f32 %v3823, %v3824
    %v3826 = vrot.slane %v3825, 1
    %v3827 = vadd.f32 %v3825, %v3826
    %v3828 = vrot.slane %v3802, 4
    %v3829 = vadd.f32 %v3802, %v3828
    %v3830 = vrot.slane %v3829, 2
    %v3831 = vadd.f32 %v3829, %v3830
    %v3832 = vrot.slane %v3831, 1
    %v3833 = vadd.f32 %v3831, %v3832
    %v3834 = vrot.slane %v3803, 4
    %v3835 = vadd.f32 %v3803, %v3834
    %v3836 = vrot.slane %v3835, 2
    %v3837 = vadd.f32 %v3835, %v3836
    %v3838 = vrot.slane %v3837, 1
    %v3839 = vadd.f32 %v3837, %v3838
    %v3840 = vmul.f32 %v3809, %v976
    %v3841 = vmul.f32 %v3815, %v976
    %v3842 = vmul.f32 %v3821, %v976
    %v3843 = vmul.f32 %v3827, %v976
    %v3844 = vmul.f32 %v3833, %v976
    %v3845 = vmul.f32 %v3839, %v976
    %v3846 = vadd.f32 %v3840, 1e-05
    %v3847 = vadd.f32 %v3841, 1e-05
    %v3848 = vadd.f32 %v3842, 1e-05
    %v3849 = vadd.f32 %v3843, 1e-05
    %v3850 = vadd.f32 %v3844, 1e-05
    %v3851 = vadd.f32 %v3845, 1e-05
    %v3852 = vrsqrt.pop %v3846
    %v3853 = vmul.f32 %v3852, %v3846
    %v3854 = vmul.f32 %v3853, %v3852
    %v3855 = vmul.f32 0.5, %v3854
    %v3856 = vsub.f32 1.5, %v3855
    %v3857 = vmul.f32 %v3852, %v3856
    %vm3858 = vweird.f32 %v3846
    %vm3859 = vweird.f32 %v3852
    %vm3860 = vmor %vm3858, %vm3859
    %v3861 = vsel %vm3860, %v3852, %v3857
    %v3862 = vrsqrt.pop %v3847
    %v3863 = vmul.f32 %v3862, %v3847
    %v3864 = vmul.f32 %v3863, %v3862
    %v3865 = vmul.f32 0.5, %v3864
    %v3866 = vsub.f32 1.5, %v3865
    %v3867 = vmul.f32 %v3862, %v3866
    %vm3868 = vweird.f32 %v3847
    %vm3869 = vweird.f32 %v3862
    %vm3870 = vmor %vm3868, %vm3869
    %v3871 = vsel %vm3870, %v3862, %v3867
    %v3872 = vrsqrt.pop %v3848
    %v3873 = vmul.f32 %v3872, %v3848
    %v3874 = vmul.f32 %v3873, %v3872
    %v3875 = vmul.f32 0.5, %v3874
    %v3876 = vsub.f32 1.5, %v3875
    %v3877 = vmul.f32 %v3872, %v3876
    %vm3878 = vweird.f32 %v3848
    %vm3879 = vweird.f32 %v3872
    %vm3880 = vmor %vm3878, %vm3879
    %v3881 = vsel %vm3880, %v3872, %v3877
    %v3882 = vrsqrt.pop %v3849
    %v3883 = vmul.f32 %v3882, %v3849
    %v3884 = vmul.f32 %v3883, %v3882
    %v3885 = vmul.f32 0.5, %v3884
    %v3886 = vsub.f32 1.5, %v3885
    %v3887 = vmul.f32 %v3882, %v3886
    %vm3888 = vweird.f32 %v3849
    %vm3889 = vweird.f32 %v3882
    %vm3890 = vmor %vm3888, %vm3889
    %v3891 = vsel %vm3890, %v3882, %v3887
    %v3892 = vrsqrt.pop %v3850
    %v3893 = vmul.f32 %v3892, %v3850
    %v3894 = vmul.f32 %v3893, %v3892
    %v3895 = vmul.f32 0.5, %v3894
    %v3896 = vsub.f32 1.5, %v3895
    %v3897 = vmul.f32 %v3892, %v3896
    %vm3898 = vweird.f32 %v3850
    %vm3899 = vweird.f32 %v3892
    %vm3900 = vmor %vm3898, %vm3899
    %v3901 = vsel %vm3900, %v3892, %v3897
    %v3902 = vrsqrt.pop %v3851
    %v3903 = vmul.f32 %v3902, %v3851
    %v3904 = vmul.f32 %v3903, %v3902
    %v3905 = vmul.f32 0.5, %v3904
    %v3906 = vsub.f32 1.5, %v3905
    %v3907 = vmul.f32 %v3902, %v3906
    %vm3908 = vweird.f32 %v3851
    %vm3909 = vweird.f32 %v3902
    %vm3910 = vmor %vm3908, %vm3909
    %v3911 = vsel %vm3910, %v3902, %v3907
    %v3918 = vrot.slane %v3871, 7
    %v3919 = vrot.slane %v3881, 6
    %v3920 = vrot.slane %v3891, 5
    %v3921 = vrot.slane %v3901, 4
    %v3922 = vrot.slane %v3911, 3
    %v3923 = vsel %vm1114, %v3861, %v3918
    %v3924 = vsel %vm1116, %v3923, %v3919
    %v3925 = vsel %vm1118, %v3920, %v3921
    %v3926 = vsel %vm1120, %v3925, %v3922
    %v3927 = vsel %vm1122, %v3924, %v3926
    %v3929 = vmul.f32 %v140, %v3927
    %v3931 = vperm.slane %v3929, 0
    %v3932 = vperm.slane %v3929, 1
    %v3933 = vperm.slane %v3929, 2
    %v3934 = vperm.slane %v3929, 3
    %v3935 = vperm.slane %v3929, 4
    %v3936 = vperm.slane %v3929, 5
    %v3943 = vmul.f32 %v3786, %v3931
    %v3944 = vmul.f32 %v3787, %v3932
    %v3945 = vmul.f32 %v3788, %v3933
    %v3946 = vmul.f32 %v3789, %v3934
    %v3947 = vmul.f32 %v3790, %v3935
    %v3948 = vmul.f32 %v3791, %v3936
    %v3955 = vrot.slane %v3944, 7
    %v3956 = vrot.slane %v3945, 6
    %v3957 = vrot.slane %v3946, 5
    %v3958 = vrot.slane %v3947, 4
    %v3959 = vrot.slane %v3948, 3
    %v3960 = vsel %vm1114, %v3943, %v3955
    %v3961 = vsel %vm1116, %v3960, %v3956
    %v3962 = vsel %vm1118, %v3957, %v3958
    %v3963 = vsel %vm1120, %v3962, %v3959
    %v3964 = vsel %vm1122, %v3961, %v3963
    %v3966 = vsub.f32 %v141, %v3964
    %v3967 = vmul.f32 %v3148, %v3931
    %v3968 = vmul.f32 %v3268, %v3932
    %v3969 = vmul.f32 %v3388, %v3933
    %v3970 = vmul.f32 %v3508, %v3934
    %v3971 = vmul.f32 %v3628, %v3935
    %v3972 = vmul.f32 %v3748, %v3936
    %v3974 = vperm.slane %v3966, 0
    %v3975 = vperm.slane %v3966, 1
    %v3976 = vperm.slane %v3966, 2
    %v3977 = vperm.slane %v3966, 3
    %v3978 = vperm.slane %v3966, 4
    %v3979 = vperm.slane %v3966, 5
    %v3986 = vadd.f32 %v3967, %v3974
    %v3987 = vadd.f32 %v3968, %v3975
    %v3988 = vadd.f32 %v3969, %v3976
    %v3989 = vadd.f32 %v3970, %v3977
    %v3990 = vadd.f32 %v3971, %v3978
    %v3991 = vadd.f32 %v3972, %v3979
    %v3992 = vmax.f32 %v3986, 0.0
    %v3993 = vmax.f32 %v3987, 0.0
    %v3994 = vmax.f32 %v3988, 0.0
    %v3995 = vmax.f32 %v3989, 0.0
    %v3996 = vmax.f32 %v3990, 0.0
    %v3997 = vmax.f32 %v3991, 0.0
    %s3998 = smul.u32 %s1194, 1
    %s3999 = sshll.u32 %s3998, 4
    %4000 = dma.done %s123, %s3999
    %v4001 = vld [vmem:[#allocation3] sm:$0xf]
    %v4002 = vld [vmem:[#allocation3 + $0x4] sm:$0xf]
    %v4003 = vld [vmem:[#allocation3 + $0x8] sm:$0xf]
    %v4004 = vld [vmem:[#allocation3 + $0xc] sm:$0xf]
    %v4005 = vld [vmem:[#allocation3 + $0x10] sm:$0xf]
    %v4006 = vld [vmem:[#allocation3 + $0x14] sm:$0xf]
    %v4007 = vld [vmem:[#allocation3 + $0x18] sm:$0xf]
    %v4008 = vld [vmem:[#allocation3 + $0x1c] sm:$0xf]
    %v4009 = vld [vmem:[#allocation3 + $0x20] sm:$0xf]
    %v4010 = vld [vmem:[#allocation3 + $0x24] sm:$0xf]
    %v4011 = vld [vmem:[#allocation3 + $0x28] sm:$0xf]
    %v4012 = vld [vmem:[#allocation3 + $0x2c] sm:$0xf]
    %v4013 = vld [vmem:[#allocation3 + $0x30] sm:$0xf]
    %v4014 = vld [vmem:[#allocation3 + $0x34] sm:$0xf]
    %v4015 = vld [vmem:[#allocation3 + $0x38] sm:$0xf]
    %v4016 = vld [vmem:[#allocation3 + $0x3c] sm:$0xf]
    %v4017 = vld [vmem:[#allocation3 + $0x40] sm:$0xf]
    %v4018 = vld [vmem:[#allocation3 + $0x44] sm:$0xf]
    %v4019 = vld [vmem:[#allocation3 + $0x48] sm:$0xf]
    %v4020 = vld [vmem:[#allocation3 + $0x4c] sm:$0xf]
    %v4021 = vld [vmem:[#allocation3 + $0x50] sm:$0xf]
    %v4022 = vld [vmem:[#allocation3 + $0x54] sm:$0xf]
    %v4023 = vld [vmem:[#allocation3 + $0x58] sm:$0xf]
    %v4024 = vld [vmem:[#allocation3 + $0x5c] sm:$0xf]
    %v4025 = vld [vmem:[#allocation3 + $0x60] sm:$0xf]
    %v4026 = vld [vmem:[#allocation3 + $0x64] sm:$0xf]
    %v4027 = vld [vmem:[#allocation3 + $0x68] sm:$0xf]
    %v4028 = vld [vmem:[#allocation3 + $0x6c] sm:$0xf]
    %v4029 = vld [vmem:[#allocation3 + $0x70] sm:$0xf]
    %v4030 = vld [vmem:[#allocation3 + $0x74] sm:$0xf]
    %v4031 = vld [vmem:[#allocation3 + $0x78] sm:$0xf]
    %v4032 = vld [vmem:[#allocation3 + $0x7c] sm:$0xf]
    %v4033 = vld [vmem:[#allocation3 + $0x80] sm:$0xf]
    %v4034 = vld [vmem:[#allocation3 + $0x84] sm:$0xf]
    %v4035 = vld [vmem:[#allocation3 + $0x88] sm:$0xf]
    %v4036 = vld [vmem:[#allocation3 + $0x8c] sm:$0xf]
    %v4037 = vld [vmem:[#allocation3 + $0x90] sm:$0xf]
    %v4038 = vld [vmem:[#allocation3 + $0x94] sm:$0xf]
    %v4039 = vld [vmem:[#allocation3 + $0x98] sm:$0xf]
    %v4040 = vld [vmem:[#allocation3 + $0x9c] sm:$0xf]
    %v4041 = vld [vmem:[#allocation3 + $0xa0] sm:$0xf]
    %v4042 = vld [vmem:[#allocation3 + $0xa4] sm:$0xf]
    %v4043 = vld [vmem:[#allocation3 + $0xa8] sm:$0xf]
    %v4044 = vld [vmem:[#allocation3 + $0xac] sm:$0xf]
    %v4045 = vld [vmem:[#allocation3 + $0xb0] sm:$0xf]
    %v4046 = vld [vmem:[#allocation3 + $0xb4] sm:$0xf]
    %v4047 = vld [vmem:[#allocation3 + $0xb8] sm:$0xf]
    %v4048 = vld [vmem:[#allocation3 + $0xbc] sm:$0xf]
    %v4049 = vld [vmem:[#allocation3 + $0xc0] sm:$0xf]
    %v4050 = vld [vmem:[#allocation3 + $0xc4] sm:$0xf]
    %v4051 = vld [vmem:[#allocation3 + $0xc8] sm:$0xf]
    %v4052 = vld [vmem:[#allocation3 + $0xcc] sm:$0xf]
    %v4053 = vld [vmem:[#allocation3 + $0xd0] sm:$0xf]
    %v4054 = vld [vmem:[#allocation3 + $0xd4] sm:$0xf]
    %v4055 = vld [vmem:[#allocation3 + $0xd8] sm:$0xf]
    %v4056 = vld [vmem:[#allocation3 + $0xdc] sm:$0xf]
    %v4057 = vld [vmem:[#allocation3 + $0xe0] sm:$0xf]
    %v4058 = vld [vmem:[#allocation3 + $0xe4] sm:$0xf]
    %v4059 = vld [vmem:[#allocation3 + $0xe8] sm:$0xf]
    %v4060 = vld [vmem:[#allocation3 + $0xec] sm:$0xf]
    %v4061 = vld [vmem:[#allocation3 + $0xf0] sm:$0xf]
    %v4062 = vld [vmem:[#allocation3 + $0xf4] sm:$0xf]
    %v4063 = vld [vmem:[#allocation3 + $0xf8] sm:$0xf]
    %v4064 = vld [vmem:[#allocation3 + $0xfc] sm:$0xf]
    %v4065 = vld [vmem:[#allocation3 + $0x100] sm:$0xf]
    %v4066 = vld [vmem:[#allocation3 + $0x104] sm:$0xf]
    %v4067 = vld [vmem:[#allocation3 + $0x108] sm:$0xf]
    %v4068 = vld [vmem:[#allocation3 + $0x10c] sm:$0xf]
    %v4069 = vld [vmem:[#allocation3 + $0x110] sm:$0xf]
    %v4070 = vld [vmem:[#allocation3 + $0x114] sm:$0xf]
    %v4071 = vld [vmem:[#allocation3 + $0x118] sm:$0xf]
    %v4072 = vld [vmem:[#allocation3 + $0x11c] sm:$0xf]
    %v4073 = vld [vmem:[#allocation3 + $0x120] sm:$0xf]
    %v4074 = vld [vmem:[#allocation3 + $0x124] sm:$0xf]
    %v4075 = vld [vmem:[#allocation3 + $0x128] sm:$0xf]
    %v4076 = vld [vmem:[#allocation3 + $0x12c] sm:$0xf]
    %v4077 = vld [vmem:[#allocation3 + $0x130] sm:$0xf]
    %v4078 = vld [vmem:[#allocation3 + $0x134] sm:$0xf]
    %v4079 = vld [vmem:[#allocation3 + $0x138] sm:$0xf]
    %v4080 = vld [vmem:[#allocation3 + $0x13c] sm:$0xf]
    %v4081 = vld [vmem:[#allocation3 + $0x140] sm:$0xf]
    %v4082 = vld [vmem:[#allocation3 + $0x144] sm:$0xf]
    %v4083 = vld [vmem:[#allocation3 + $0x148] sm:$0xf]
    %v4084 = vld [vmem:[#allocation3 + $0x14c] sm:$0xf]
    %v4085 = vld [vmem:[#allocation3 + $0x150] sm:$0xf]
    %v4086 = vld [vmem:[#allocation3 + $0x154] sm:$0xf]
    %v4087 = vld [vmem:[#allocation3 + $0x158] sm:$0xf]
    %v4088 = vld [vmem:[#allocation3 + $0x15c] sm:$0xf]
    %v4089 = vld [vmem:[#allocation3 + $0x160] sm:$0xf]
    %v4090 = vld [vmem:[#allocation3 + $0x164] sm:$0xf]
    %v4091 = vld [vmem:[#allocation3 + $0x168] sm:$0xf]
    %v4092 = vld [vmem:[#allocation3 + $0x16c] sm:$0xf]
    %v4093 = vld [vmem:[#allocation3 + $0x170] sm:$0xf]
    %v4094 = vld [vmem:[#allocation3 + $0x174] sm:$0xf]
    %v4095 = vld [vmem:[#allocation3 + $0x178] sm:$0xf]
    %v4096 = vld [vmem:[#allocation3 + $0x17c] sm:$0xf]
    %v4097 = vunpack.c.l.bf16 %v4001
    %v4098 = vunpack.c.l.bf16 %v4002
    %v4099 = vunpack.c.l.bf16 %v4003
    %v4100 = vunpack.c.l.bf16 %v4004
    %v4101 = vunpack.c.l.bf16 %v4005
    %v4102 = vunpack.c.l.bf16 %v4006
    %v4103 = vunpack.c.l.bf16 %v4007
    %v4104 = vunpack.c.l.bf16 %v4008
    %v4105 = vunpack.c.l.bf16 %v4009
    %v4106 = vunpack.c.l.bf16 %v4010
    %v4107 = vunpack.c.l.bf16 %v4011
    %v4108 = vunpack.c.l.bf16 %v4012
    %v4109 = vunpack.c.l.bf16 %v4013
    %v4110 = vunpack.c.l.bf16 %v4014
    %v4111 = vunpack.c.l.bf16 %v4015
    %v4112 = vunpack.c.l.bf16 %v4016
    %v4113 = vunpack.c.l.bf16 %v4017
    %v4114 = vunpack.c.l.bf16 %v4018
    %v4115 = vunpack.c.l.bf16 %v4019
    %v4116 = vunpack.c.l.bf16 %v4020
    %v4117 = vunpack.c.l.bf16 %v4021
    %v4118 = vunpack.c.l.bf16 %v4022
    %v4119 = vunpack.c.l.bf16 %v4023
    %v4120 = vunpack.c.l.bf16 %v4024
    %v4121 = vunpack.c.l.bf16 %v4025
    %v4122 = vunpack.c.l.bf16 %v4026
    %v4123 = vunpack.c.l.bf16 %v4027
    %v4124 = vunpack.c.l.bf16 %v4028
    %v4125 = vunpack.c.l.bf16 %v4029
    %v4126 = vunpack.c.l.bf16 %v4030
    %v4127 = vunpack.c.l.bf16 %v4031
    %v4128 = vunpack.c.l.bf16 %v4032
    %v4129 = vunpack.c.l.bf16 %v4033
    %v4130 = vunpack.c.l.bf16 %v4034
    %v4131 = vunpack.c.l.bf16 %v4035
    %v4132 = vunpack.c.l.bf16 %v4036
    %v4133 = vunpack.c.l.bf16 %v4037
    %v4134 = vunpack.c.l.bf16 %v4038
    %v4135 = vunpack.c.l.bf16 %v4039
    %v4136 = vunpack.c.l.bf16 %v4040
    %v4137 = vunpack.c.l.bf16 %v4041
    %v4138 = vunpack.c.l.bf16 %v4042
    %v4139 = vunpack.c.l.bf16 %v4043
    %v4140 = vunpack.c.l.bf16 %v4044
    %v4141 = vunpack.c.l.bf16 %v4045
    %v4142 = vunpack.c.l.bf16 %v4046
    %v4143 = vunpack.c.l.bf16 %v4047
    %v4144 = vunpack.c.l.bf16 %v4048
    %v4145 = vunpack.c.l.bf16 %v4049
    %v4146 = vunpack.c.l.bf16 %v4050
    %v4147 = vunpack.c.l.bf16 %v4051
    %v4148 = vunpack.c.l.bf16 %v4052
    %v4149 = vunpack.c.l.bf16 %v4053
    %v4150 = vunpack.c.l.bf16 %v4054
    %v4151 = vunpack.c.l.bf16 %v4055
    %v4152 = vunpack.c.l.bf16 %v4056
    %v4153 = vunpack.c.l.bf16 %v4057
    %v4154 = vunpack.c.l.bf16 %v4058
    %v4155 = vunpack.c.l.bf16 %v4059
    %v4156 = vunpack.c.l.bf16 %v4060
    %v4157 = vunpack.c.l.bf16 %v4061
    %v4158 = vunpack.c.l.bf16 %v4062
    %v4159 = vunpack.c.l.bf16 %v4063
    %v4160 = vunpack.c.l.bf16 %v4064
    %v4161 = vunpack.c.l.bf16 %v4065
    %v4162 = vunpack.c.l.bf16 %v4066
    %v4163 = vunpack.c.l.bf16 %v4067
    %v4164 = vunpack.c.l.bf16 %v4068
    %v4165 = vunpack.c.l.bf16 %v4069
    %v4166 = vunpack.c.l.bf16 %v4070
    %v4167 = vunpack.c.l.bf16 %v4071
    %v4168 = vunpack.c.l.bf16 %v4072
    %v4169 = vunpack.c.l.bf16 %v4073
    %v4170 = vunpack.c.l.bf16 %v4074
    %v4171 = vunpack.c.l.bf16 %v4075
    %v4172 = vunpack.c.l.bf16 %v4076
    %v4173 = vunpack.c.l.bf16 %v4077
    %v4174 = vunpack.c.l.bf16 %v4078
    %v4175 = vunpack.c.l.bf16 %v4079
    %v4176 = vunpack.c.l.bf16 %v4080
    %v4177 = vunpack.c.l.bf16 %v4081
    %v4178 = vunpack.c.l.bf16 %v4082
    %v4179 = vunpack.c.l.bf16 %v4083
    %v4180 = vunpack.c.l.bf16 %v4084
    %v4181 = vunpack.c.l.bf16 %v4085
    %v4182 = vunpack.c.l.bf16 %v4086
    %v4183 = vunpack.c.l.bf16 %v4087
    %v4184 = vunpack.c.l.bf16 %v4088
    %v4185 = vunpack.c.l.bf16 %v4089
    %v4186 = vunpack.c.l.bf16 %v4090
    %v4187 = vunpack.c.l.bf16 %v4091
    %v4188 = vunpack.c.l.bf16 %v4092
    %v4189 = vunpack.c.l.bf16 %v4093
    %v4190 = vunpack.c.l.bf16 %v4094
    %v4191 = vunpack.c.l.bf16 %v4095
    %v4192 = vunpack.c.l.bf16 %v4096
    %4193 = vmatpush.msra.mxu0 %v4112
    %4194 = vmatpush.msra.mxu0 %v4111
    %4195 = vmatpush.msra.mxu0 %v4110
    %4196 = vmatpush.msra.mxu0 %v4109
    %4197 = vmatpush.msra.mxu0 %v4108
    %4198 = vmatpush.msra.mxu0 %v4107
    %4199 = vmatpush.msra.mxu0 %v4106
    %4200 = vmatpush.msra.mxu0 %v4105
    %4201 = vmatpush.msra.mxu0 %v4104
    %4202 = vmatpush.msra.mxu0 %v4103
    %4203 = vmatpush.msra.mxu0 %v4102
    %4204 = vmatpush.msra.mxu0 %v4101
    %4205 = vmatpush.msra.mxu0 %v4100
    %4206 = vmatpush.msra.mxu0 %v4099
    %4207 = vmatpush.msra.mxu0 %v4098
    %4208 = vmatpush.msra.mxu0 %v4097
    %4209 = vmatmul.f32.gmra.mxu0 %v3992
    %v4210 = vpop.f32.mrf.mxu0
    %v4211 = vadd.f32 0.0, %v4210
    %4212 = vdwg.mxu0
    %4213 = vmatpush.msra.mxu0 %v4128
    %4214 = vmatpush.msra.mxu0 %v4127
    %4215 = vmatpush.msra.mxu0 %v4126
    %4216 = vmatpush.msra.mxu0 %v4125
    %4217 = vmatpush.msra.mxu0 %v4124
    %4218 = vmatpush.msra.mxu0 %v4123
    %4219 = vmatpush.msra.mxu0 %v4122
    %4220 = vmatpush.msra.mxu0 %v4121
    %4221 = vmatpush.msra.mxu0 %v4120
    %4222 = vmatpush.msra.mxu0 %v4119
    %4223 = vmatpush.msra.mxu0 %v4118
    %4224 = vmatpush.msra.mxu0 %v4117
    %4225 = vmatpush.msra.mxu0 %v4116
    %4226 = vmatpush.msra.mxu0 %v4115
    %4227 = vmatpush.msra.mxu0 %v4114
    %4228 = vmatpush.msra.mxu0 %v4113
    %4229 = vmatmul.f32.gmra.mxu0 %v3993
    %v4230 = vpop.f32.mrf.mxu0
    %v4231 = vadd.f32 %v4211, %v4230
    %4232 = vdwg.mxu0
    %4233 = vmatpush.msra.mxu0 %v4144
    %4234 = vmatpush.msra.mxu0 %v4143
    %4235 = vmatpush.msra.mxu0 %v4142
    %4236 = vmatpush.msra.mxu0 %v4141
    %4237 = vmatpush.msra.mxu0 %v4140
    %4238 = vmatpush.msra.mxu0 %v4139
    %4239 = vmatpush.msra.mxu0 %v4138
    %4240 = vmatpush.msra.mxu0 %v4137
    %4241 = vmatpush.msra.mxu0 %v4136
    %4242 = vmatpush.msra.mxu0 %v4135
    %4243 = vmatpush.msra.mxu0 %v4134
    %4244 = vmatpush.msra.mxu0 %v4133
    %4245 = vmatpush.msra.mxu0 %v4132
    %4246 = vmatpush.msra.mxu0 %v4131
    %4247 = vmatpush.msra.mxu0 %v4130
    %4248 = vmatpush.msra.mxu0 %v4129
    %4249 = vmatmul.f32.gmra.mxu0 %v3994
    %v4250 = vpop.f32.mrf.mxu0
    %v4251 = vadd.f32 %v4231, %v4250
    %4252 = vdwg.mxu0
    %4253 = vmatpush.msra.mxu0 %v4160
    %4254 = vmatpush.msra.mxu0 %v4159
    %4255 = vmatpush.msra.mxu0 %v4158
    %4256 = vmatpush.msra.mxu0 %v4157
    %4257 = vmatpush.msra.mxu0 %v4156
    %4258 = vmatpush.msra.mxu0 %v4155
    %4259 = vmatpush.msra.mxu0 %v4154
    %4260 = vmatpush.msra.mxu0 %v4153
    %4261 = vmatpush.msra.mxu0 %v4152
    %4262 = vmatpush.msra.mxu0 %v4151
    %4263 = vmatpush.msra.mxu0 %v4150
    %4264 = vmatpush.msra.mxu0 %v4149
    %4265 = vmatpush.msra.mxu0 %v4148
    %4266 = vmatpush.msra.mxu0 %v4147
    %4267 = vmatpush.msra.mxu0 %v4146
    %4268 = vmatpush.msra.mxu0 %v4145
    %4269 = vmatmul.f32.gmra.mxu0 %v3995
    %v4270 = vpop.f32.mrf.mxu0
    %v4271 = vadd.f32 %v4251, %v4270
    %4272 = vdwg.mxu0
    %4273 = vmatpush.msra.mxu0 %v4176
    %4274 = vmatpush.msra.mxu0 %v4175
    %4275 = vmatpush.msra.mxu0 %v4174
    %4276 = vmatpush.msra.mxu0 %v4173
    %4277 = vmatpush.msra.mxu0 %v4172
    %4278 = vmatpush.msra.mxu0 %v4171
    %4279 = vmatpush.msra.mxu0 %v4170
    %4280 = vmatpush.msra.mxu0 %v4169
    %4281 = vmatpush.msra.mxu0 %v4168
    %4282 = vmatpush.msra.mxu0 %v4167
    %4283 = vmatpush.msra.mxu0 %v4166
    %4284 = vmatpush.msra.mxu0 %v4165
    %4285 = vmatpush.msra.mxu0 %v4164
    %4286 = vmatpush.msra.mxu0 %v4163
    %4287 = vmatpush.msra.mxu0 %v4162
    %4288 = vmatpush.msra.mxu0 %v4161
    %4289 = vmatmul.f32.gmra.mxu0 %v3996
    %v4290 = vpop.f32.mrf.mxu0
    %v4291 = vadd.f32 %v4271, %v4290
    %4292 = vdwg.mxu0
    %4293 = vmatpush.msra.mxu0 %v4192
    %4294 = vmatpush.msra.mxu0 %v4191
    %4295 = vmatpush.msra.mxu0 %v4190
    %4296 = vmatpush.msra.mxu0 %v4189
    %4297 = vmatpush.msra.mxu0 %v4188
    %4298 = vmatpush.msra.mxu0 %v4187
    %4299 = vmatpush.msra.mxu0 %v4186
    %4300 = vmatpush.msra.mxu0 %v4185
    %4301 = vmatpush.msra.mxu0 %v4184
    %4302 = vmatpush.msra.mxu0 %v4183
    %4303 = vmatpush.msra.mxu0 %v4182
    %4304 = vmatpush.msra.mxu0 %v4181
    %4305 = vmatpush.msra.mxu0 %v4180
    %4306 = vmatpush.msra.mxu0 %v4179
    %4307 = vmatpush.msra.mxu0 %v4178
    %4308 = vmatpush.msra.mxu0 %v4177
    %4309 = vmatmul.f32.gmra.mxu0 %v3997
    %v4310 = vpop.f32.mrf.mxu0
    %v4311 = vadd.f32 %v4291, %v4310
    %4312 = vdwg.mxu0
    %v4313 = vld [vmem:[#allocation13] sm:$0x1]
    %v4314 = vld [vmem:[#allocation14] sm:$0x1]
    %v4315 = vrot.slane %v4311, 4
    %v4316 = vadd.f32 %v4311, %v4315
    %v4317 = vrot.slane %v4316, 2
    %v4318 = vadd.f32 %v4316, %v4317
    %v4319 = vrot.slane %v4318, 1
    %v4320 = vadd.f32 %v4318, %v4319
    %v4321 = vmul.f32 %v4320, %v976
    %v4322 = vsub.f32 %v4311, %v4321
    %v4323 = vmul.f32 %v4322, %v4322
    %v4324 = vrot.slane %v4323, 4
    %v4325 = vadd.f32 %v4323, %v4324
    %v4326 = vrot.slane %v4325, 2
    %v4327 = vadd.f32 %v4325, %v4326
    %v4328 = vrot.slane %v4327, 1
    %v4329 = vadd.f32 %v4327, %v4328
    %v4330 = vmul.f32 %v4329, %v976
    %v4331 = vadd.f32 %v4330, 1e-05
    %v4332 = vrsqrt.pop %v4331
    %v4333 = vmul.f32 %v4332, %v4331
    %v4334 = vmul.f32 %v4333, %v4332
    %v4335 = vmul.f32 0.5, %v4334
    %v4336 = vsub.f32 1.5, %v4335
    %v4337 = vmul.f32 %v4332, %v4336
    %vm4338 = vweird.f32 %v4331
    %vm4339 = vweird.f32 %v4332
    %vm4340 = vmor %vm4338, %vm4339
    %v4341 = vsel %vm4340, %v4332, %v4337
    %v4342 = vmul.f32 %v4313, %v4341
    %v4343 = vmul.f32 %v4321, %v4342
    %v4344 = vsub.f32 %v4314, %v4343
    %v4346 = vperm.slane %v4342, 0
    %v4348 = vmul.f32 %v4311, %v4346
    %v4350 = vperm.slane %v4344, 0
    %v4352 = vadd.f32 %v4348, %v4350
    %v4353 = vmax.f32 %v4352, 0.0
    %4354 = vst [vmem:[#allocation16] sm:$0xff] %v4353
    // Predicated region
    $region58: #{tpu_custom_call.1} parent=1 // pred_check
      _
    $region59: #{tpu_custom_call.1} parent=1 // pred_check_branch
      %4356 = sbr.rel (0) target = $region61
    $region60: #{tpu_custom_call.1} parent=1 // pred_region
      %4358 = vsyncadd [#allocation7], 0
      %s4360 = sshll.u32 [#allocation16], 4
      %s4361 = int_to_ptr.vmem [resolvable:$true] %s4360
      %s4362 = sshll.u32 %s8, 4
      %s4363 = int_to_ptr.hbm [resolvable:$true] %s4362
      %4365 = dma.vmem_to_hbm [thread:$0]  %s4361, 128, %s4363, [#allocation7]
    $region61: #{tpu_custom_call.1} parent=1 // pred_fallthru
      _
    // Predicated region
    $region62: #{tpu_custom_call.1} parent=1 // pred_check
      _
    $region63: #{tpu_custom_call.1} parent=1 // pred_check_branch
      %4367 = sbr.rel (0) target = $region65
    $region64: #{tpu_custom_call.1} parent=1 // pred_region
      %4369 = dma.done [#allocation7], 128
    $region65: #{tpu_custom_call.1} parent=1 // pred_fallthru
      _
    %4370 = vsyncpa [#allocation6], 1
    %4371 = vsyncpa [#allocation9], 1
    %4372 = vsyncpa [#allocation12], 1
    %4373 = vsyncpa [#allocation15], 1
    %4374 = vsyncpa [#allocation7], 1
  %4375 = vsyncmov [#allocation4]
  %s4376 = vpop.sfrf %4375
  %p4377 = scmp.eq.s32.totalorder %s4376, 0
  %p4378 = pneg %p4377
  %4380 = shalt.err (%p4378)
  %s4381 = scalar_lea.sflag [#allocation4], 1
  %4382 = vsyncmov %s4381
  %s4383 = vpop.sfrf %4382
  %p4384 = scmp.eq.s32.totalorder %s4383, 0
  %p4385 = pneg %p4384
  %4387 = shalt.err (%p4385)

</llo_original>
